<compile_context>
chip_gen: v6e
topology: v6e:2x2x1
jax: 0.10.0
libtpu: 0.0.40
codegen_flags: <defaults>
</compile_context>

<pallas_src>
import functools
import math

import jax
import jax.numpy as jnp
from jax.experimental import pallas as pl
from jax.experimental.pallas import tpu as pltpu


# ---------------------------------------------------------------- in-kernel helpers
def _erf(x):
    # Abramowitz & Stegun 7.1.26 rational approximation, |err| < 1.5e-7.
    # Matches PyTorch's exact (erf-based) GELU to well below test tolerance.
    a1, a2, a3, a4, a5 = 0.254829592, -0.284496736, 1.421413741, -1.453152027, 1.061405429
    p = 0.3275911
    sgn = jnp.where(x >= 0.0, 1.0, -1.0)
    ax = jnp.abs(x)
    t = 1.0 / (1.0 + p * ax)
    poly = t * (a1 + t * (a2 + t * (a3 + t * (a4 + t * a5))))
    return sgn * (1.0 - poly * jnp.exp(-ax * ax))


def _gelu_exact(x):
    return 0.5 * x * (1.0 + _erf(x * (1.0 / math.sqrt(2.0))))


def _layernorm(x, gamma, beta, eps=1e-5):
    mu = jnp.mean(x, axis=-1, keepdims=True)
    var = jnp.mean((x - mu) ** 2, axis=-1, keepdims=True)
    return (x - mu) * jax.lax.rsqrt(var + eps) * gamma + beta


# ---------------------------------------------------------------- kernel
def encoder_kernel(x_ref, mask_ref,
                   wqkv_ref, bqkv_ref, wo_ref, bo_ref, g1_ref, be1_ref,
                   w1_ref, b1_ref, w2_ref, b2_ref, g2_ref, be2_ref,
                   out_ref, *, num_heads, d_head, seq_len, block_b):
    H, D, S, Bt = num_heads, d_head, seq_len, block_b
    HD = H * D

    xf = x_ref[...]                               # (Bt*S, D_in) flat rows
    D_in = xf.shape[-1]

    # ---- fused Q/K/V projection: one wide MXU matmul (N = 3*H*D) -------------
    # (1/sqrt(S) scale and biases already folded into wqkv/bqkv in the wrapper)
    qkv = jnp.dot(xf, wqkv_ref[...], preferred_element_type=jnp.float32) + bqkv_ref[...]

    # ---- attention: per (batch-row-block, head); heads/D are tiny here -------
    rows = []
    for i in range(Bt):                           # static unroll over batches in block
        r0 = i * S
        madd = mask_ref[i]                        # (S, S) additive mask (0 / -1e9)
        acc = jnp.zeros((S, D_in), jnp.float32)
        for h in range(H):                        # static unroll over heads
            c0 = h * D
            q = qkv[r0:r0 + S, c0:c0 + D]
            k = qkv[r0:r0 + S, HD + c0:HD + c0 + D]
            v = qkv[r0:r0 + S, 2 * HD + c0:2 * HD + c0 + D]
            # q @ k^T via dot_general contracting last dims (no k.T relayout)
            s = jax.lax.dot_general(q, k, (((1,), (1,)), ((), ())),
                                    preferred_element_type=jnp.float32) + madd
            s = s - jnp.max(s, axis=-1, keepdims=True)
            e = jnp.exp(s)
            attn = e * pl.reciprocal(jnp.sum(e, axis=-1, keepdims=True), approx=True)
            ctx = jnp.dot(attn, v, preferred_element_type=jnp.float32)        # (S, D)
            # Fold this head's slice of the output projection here: equivalent to
            # concat(heads) @ wo, but with no lane-dim concatenate.
            acc = acc + jnp.dot(ctx, wo_ref[h], preferred_element_type=jnp.float32)
        rows.append(acc)
    proj = (jnp.concatenate(rows, axis=0) if Bt > 1 else rows[0]) + bo_ref[...]

    attn_out = _layernorm(proj, g1_ref[...], be1_ref[...])

    # Feed-forward: Linear -> Dropout -> GELU -> Linear -> Dropout
    # TODO(synk): nn.Dropout is identity in eval mode; training-mode dropout not implemented.
    h1 = jnp.dot(attn_out, w1_ref[...], preferred_element_type=jnp.float32) + b1_ref[...]
    h1 = _gelu_exact(h1)
    h2 = jnp.dot(h1, w2_ref[...], preferred_element_type=jnp.float32) + b2_ref[...]

    out_ref[...] = _layernorm(h2, g2_ref[...], be2_ref[...]).astype(out_ref.dtype)


# ---------------------------------------------------------------- wrapper
def encoder_forward(x, mask, p, *, block_b=1):
    B, S, D_in = x.shape
    H, _, D = p["wq"].shape
    HD = H * D

    # batch tile per grid step (must divide B)
    block_b = max(1, min(block_b, B))
    while B % block_b:
        block_b -= 1
    NB = B // block_b

    # PyTorch quirk: scale = query.size(1) ** 0.5 == sqrt(seq_len), NOT sqrt(d_k).
    scale = jnp.float32(math.sqrt(float(S)))

    # -------- trace-time weight re-layout (plain XLA ops, outside the kernel) --------
    def cat_heads(w):  # (H, D_in, D) -> (D_in, H*D), column h*D+d == head h, dim d
        return jnp.transpose(w, (1, 0, 2)).reshape(D_in, HD)

    wq = cat_heads(p["wq"]) / scale           # fold 1/sqrt(S) into the Q projection
    wk = cat_heads(p["wk"])
    wv = cat_heads(p["wv"])
    wqkv = jnp.concatenate([wq, wk, wv], axis=1)                      # (D_in, 3*H*D)
    bq = p["bq"].reshape(1, HD) / scale
    bk = p["bk"].reshape(1, HD)
    bv = p["bv"].reshape(1, HD)
    bqkv = jnp.concatenate([bq, bk, bv], axis=1)                      # (1, 3*H*D)
    wo3 = p["wo"].reshape(H, D, D_in)                                 # per-head output proj

    mask_add = mask.astype(jnp.float32) * jnp.float32(-1e9)           # additive mask
    xf = x.reshape(B * S, D_in)                                       # flat (rows, features)

    kernel = functools.partial(encoder_kernel, num_heads=H, d_head=D,
                               seq_len=S, block_b=block_b)

    def rep(shape):  # weight/bias resident across the whole grid (constant index_map)
        return pl.BlockSpec(shape, lambda b, n=len(shape): (0,) * n)

    in_specs = [
        pl.BlockSpec((block_b * S, D_in), lambda b: (b, 0)),   # x rows for this block
        pl.BlockSpec((block_b, S, S), lambda b: (b, 0, 0)),    # additive mask
        rep((D_in, 3 * HD)), rep((1, 3 * HD)),                 # fused QKV weight / bias
        rep((H, D, D_in)), rep((1, D_in)),                     # wo (per-head), bo
        rep((1, D_in)), rep((1, D_in)),                        # LN1 gamma / beta
        rep((D_in, D)), rep((1, D)),                           # FFN w1, b1
        rep((D, D_in)), rep((1, D_in)),                        # FFN w2, b2
        rep((1, D_in)), rep((1, D_in)),                        # LN2 gamma / beta
    ]
    out_spec = pl.BlockSpec((block_b * S, D_in), lambda b: (b, 0))

    out_flat = pl.pallas_call(
        kernel,
        out_shape=jax.ShapeDtypeStruct((B * S, D_in), jnp.float32),
        grid=(NB,),
        in_specs=in_specs,
        out_specs=out_spec,
        compiler_params=pltpu.CompilerParams(
            dimension_semantics=("parallel",),
            vmem_limit_bytes=32 * 1024 * 1024),
    )(xf, mask_add, wqkv, bqkv, wo3, p["bo"], p["g1"], p["be1"],
      p["w1"], p["b1"], p["w2"], p["b2"], p["g2"], p["be2"])

    return out_flat.reshape(B, S, D_in)


# ---------------------------------------------------------------- pure-JAX reference
def encoder_ref(x, mask, p):
    B, S, D_in = x.shape
    H = p["wq"].shape[0]
    scale = math.sqrt(float(S))

    def ln(z, g, b, eps=1e-5):
        mu = z.mean(-1, keepdims=True)
        var = ((z - mu) ** 2).mean(-1, keepdims=True)
        return (z - mu) / jnp.sqrt(var + eps) * g + b

    heads = []
    for h in range(H):
        q = x @ p["wq"][h] + p["bq"][h]
        k = x @ p["wk"][h] + p["bk"][h]
        v = x @ p["wv"][h] + p["bv"][h]
        sc = jnp.einsum("bqd,bkd->bqk", q, k) / scale
        sc = jnp.where(mask > 0.0, -1e9, sc)
        attn = jax.nn.softmax(sc, axis=-1)
        heads.append(jnp.einsum("bqk,bkd->bqd", attn, v))
    ctx = jnp.concatenate(heads, axis=-1)
    a = ln(ctx @ p["wo"] + p["bo"], p["g1"], p["be1"])
    h1 = jax.nn.gelu(a @ p["w1"] + p["b1"], approximate=False)   # exact (erf) GELU
    h2 = h1 @ p["w2"] + p["b2"]
    return ln(h2, p["g2"], p["be2"])


# ---------------------------------------------------------------- main
if __name__ == "__main__":
    B, S, D_in, D_out, H = 2, 8, 32, 32, 4

    key = jax.random.PRNGKey(0)
    ks = jax.random.split(key, 12)

    def init(k, shape, s=0.05):
        return (jax.random.normal(k, shape, jnp.float32) * s).astype(jnp.float32)

    params = {
        "wq": init(ks[0], (H, D_in, D_out)), "bq": init(ks[1], (H, 1, D_out)),
        "wk": init(ks[2], (H, D_in, D_out)), "bk": init(ks[3], (H, 1, D_out)),
        "wv": init(ks[4], (H, D_in, D_out)), "bv": init(ks[5], (H, 1, D_out)),
        "wo": init(ks[6], (H * D_out, D_in)), "bo": init(ks[7], (1, D_in)),
        "g1": jnp.ones((1, D_in), jnp.float32), "be1": jnp.zeros((1, D_in), jnp.float32),
        "w1": init(ks[8], (D_in, D_out)), "b1": init(ks[9], (1, D_out)),
        "w2": init(ks[10], (D_out, D_in)), "b2": init(ks[11], (1, D_in)),
        "g2": jnp.ones((1, D_in), jnp.float32), "be2": jnp.zeros((1, D_in), jnp.float32),
    }

    xk, _ = jax.random.split(jax.random.PRNGKey(1))
    x = jax.random.normal(xk, (B, S, D_in), jnp.float32)
    # mask: block out the last 2 key positions for every query (1.0 == masked)
    mask = jnp.zeros((B, S, S), jnp.float32).at[:, :, -2:].set(1.0)

    # block_b=2: process both batch rows in one grid step (M = 16 rows per matmul).
    out = encoder_forward(x, mask, params, block_b=2)
    jax.block_until_ready(out)

    ref = encoder_ref(x, mask, params)
    assert out.shape == (B, S, D_in)
    # Tolerance accounts for the EUP approximate-reciprocal softmax denominator and
    # the fused-matmul summation-order differences (outputs are O(1) after LayerNorm).
    assert bool(jnp.allclose(out, ref, atol=2e-3, rtol=2e-3)), \
        f"max abs err {float(jnp.max(jnp.abs(out - ref)))}"

    print("KERNEL_OK")
</pallas_src>

<mosaic_0001>
module attributes {stable_mosaic.version = 11 : i64} {
  func.func @encoder_kernel(%arg0: i32, %arg1: memref<16x32xf32, #tpu.memory_space<vmem>>, %arg2: memref<2x8x8xf32, #tpu.memory_space<vmem>>, %arg3: memref<32x384xf32, #tpu.memory_space<vmem>>, %arg4: memref<1x384xf32, #tpu.memory_space<vmem>>, %arg5: memref<4x32x32xf32, #tpu.memory_space<vmem>>, %arg6: memref<1x32xf32, #tpu.memory_space<vmem>>, %arg7: memref<1x32xf32, #tpu.memory_space<vmem>>, %arg8: memref<1x32xf32, #tpu.memory_space<vmem>>, %arg9: memref<32x32xf32, #tpu.memory_space<vmem>>, %arg10: memref<1x32xf32, #tpu.memory_space<vmem>>, %arg11: memref<32x32xf32, #tpu.memory_space<vmem>>, %arg12: memref<1x32xf32, #tpu.memory_space<vmem>>, %arg13: memref<1x32xf32, #tpu.memory_space<vmem>>, %arg14: memref<1x32xf32, #tpu.memory_space<vmem>>, %arg15: memref<16x32xf32, #tpu.memory_space<vmem>>) attributes {dimension_semantics = [#tpu.dimension_semantics<parallel>], iteration_bounds = array<i64: 1>, scalar_prefetch = 0 : i64, scratch_operands = 0 : i64, tpu.core_type = #tpu.core_type<tc>, window_params = [{transform_indices = @transform_0, window_bounds = array<i64: 16, 32>}, {transform_indices = @transform_1, window_bounds = array<i64: 2, 8, 8>}, {pipeline_mode = #tpu.pipeline_mode<synchronous>, transform_indices = @transform_2, window_bounds = array<i64: 32, 384>}, {pipeline_mode = #tpu.pipeline_mode<synchronous>, transform_indices = @transform_3, window_bounds = array<i64: 1, 384>}, {pipeline_mode = #tpu.pipeline_mode<synchronous>, transform_indices = @transform_4, window_bounds = array<i64: 4, 32, 32>}, {pipeline_mode = #tpu.pipeline_mode<synchronous>, transform_indices = @transform_5, window_bounds = array<i64: 1, 32>}, {pipeline_mode = #tpu.pipeline_mode<synchronous>, transform_indices = @transform_6, window_bounds = array<i64: 1, 32>}, {pipeline_mode = #tpu.pipeline_mode<synchronous>, transform_indices = @transform_7, window_bounds = array<i64: 1, 32>}, {pipeline_mode = #tpu.pipeline_mode<synchronous>, transform_indices = @transform_8, window_bounds = array<i64: 32, 32>}, {pipeline_mode = #tpu.pipeline_mode<synchronous>, transform_indices = @transform_9, window_bounds = array<i64: 1, 32>}, {pipeline_mode = #tpu.pipeline_mode<synchronous>, transform_indices = @transform_10, window_bounds = array<i64: 32, 32>}, {pipeline_mode = #tpu.pipeline_mode<synchronous>, transform_indices = @transform_11, window_bounds = array<i64: 1, 32>}, {pipeline_mode = #tpu.pipeline_mode<synchronous>, transform_indices = @transform_12, window_bounds = array<i64: 1, 32>}, {pipeline_mode = #tpu.pipeline_mode<synchronous>, transform_indices = @transform_13, window_bounds = array<i64: 1, 32>}, {transform_indices = @transform_14, window_bounds = array<i64: 16, 32>}]} {
    %c0 = arith.constant 0 : index
    %c0_0 = arith.constant 0 : index
    %0 = vector.load %arg1[%c0, %c0_0] : memref<16x32xf32, #tpu.memory_space<vmem>>, vector<16x32xf32>
    %c0_1 = arith.constant 0 : index
    %c0_2 = arith.constant 0 : index
    %1 = vector.load %arg3[%c0_1, %c0_2] : memref<32x384xf32, #tpu.memory_space<vmem>>, vector<32x384xf32>
    %cst = arith.constant dense<0.000000e+00> : vector<16x384xf32>
    %2 = tpu.matmul %0, %1, %cst {dimension_numbers = #tpu.dot_dimension_numbers<[1], [0], [0], [1], [0, 0, 1, 1], [], []>} : vector<16x32xf32>, vector<32x384xf32>, vector<16x384xf32> -> vector<16x384xf32>
    %c0_3 = arith.constant 0 : index
    %c0_4 = arith.constant 0 : index
    %3 = vector.load %arg4[%c0_3, %c0_4] : memref<1x384xf32, #tpu.memory_space<vmem>>, vector<1x384xf32>
    %4 = vector.broadcast %3 : vector<1x384xf32> to vector<16x384xf32>
    %5 = arith.addf %2, %4 : vector<16x384xf32>
    %c0_5 = arith.constant 0 : index
    %c0_6 = arith.constant 0 : index
    %c0_7 = arith.constant 0 : index
    %6 = vector.load %arg2[%c0_5, %c0_6, %c0_7] : memref<2x8x8xf32, #tpu.memory_space<vmem>>, vector<1x8x8xf32>
    %7 = vector.shape_cast %6 : vector<1x8x8xf32> to vector<8x8xf32>
    %cst_8 = arith.constant 0.000000e+00 : f32
    %8 = vector.broadcast %cst_8 : f32 to vector<8x32xf32>
    %9 = vector.extract_strided_slice %5 {offsets = [0, 0], sizes = [8, 32], strides = [1, 1]} : vector<16x384xf32> to vector<8x32xf32>
    %10 = vector.extract_strided_slice %5 {offsets = [0, 128], sizes = [8, 32], strides = [1, 1]} : vector<16x384xf32> to vector<8x32xf32>
    %11 = vector.extract_strided_slice %5 {offsets = [0, 256], sizes = [8, 32], strides = [1, 1]} : vector<16x384xf32> to vector<8x32xf32>
    %cst_9 = arith.constant dense<0.000000e+00> : vector<8x8xf32>
    %12 = tpu.matmul %9, %10, %cst_9 {dimension_numbers = #tpu.dot_dimension_numbers<[1], [1], [0], [0], [0, 0, 1, 0], [], []>} : vector<8x32xf32>, vector<8x32xf32>, vector<8x8xf32> -> vector<8x8xf32>
    %13 = arith.addf %12, %7 : vector<8x8xf32>
    %cst_10 = arith.constant dense<0xFF800000> : vector<8xf32>
    %14 = vector.multi_reduction <maximumf>, %13, %cst_10 [1] : vector<8x8xf32> to vector<8xf32>
    %15 = vector.shape_cast %14 : vector<8xf32> to vector<8x1xf32>
    %16 = vector.broadcast %15 : vector<8x1xf32> to vector<8x8xf32>
    %17 = arith.subf %13, %16 : vector<8x8xf32>
    %18 = math.exp %17 : vector<8x8xf32>
    %cst_11 = arith.constant dense<0.000000e+00> : vector<8xf32>
    %19 = vector.multi_reduction <add>, %18, %cst_11 [1] : vector<8x8xf32> to vector<8xf32>
    %20 = vector.shape_cast %19 : vector<8xf32> to vector<8x1xf32>
    %21 = tpu.reciprocal %20 {approx = true} : vector<8x1xf32> -> vector<8x1xf32>
    %22 = vector.broadcast %21 : vector<8x1xf32> to vector<8x8xf32>
    %23 = arith.mulf %18, %22 : vector<8x8xf32>
    %cst_12 = arith.constant dense<0.000000e+00> : vector<8x32xf32>
    %24 = tpu.matmul %23, %11, %cst_12 {dimension_numbers = #tpu.dot_dimension_numbers<[1], [0], [0], [1], [0, 0, 1, 1], [], []>} : vector<8x8xf32>, vector<8x32xf32>, vector<8x32xf32> -> vector<8x32xf32>
    %c0_13 = arith.constant 0 : index
    %c0_14 = arith.constant 0 : index
    %c0_15 = arith.constant 0 : index
    %25 = vector.load %arg5[%c0_13, %c0_14, %c0_15] : memref<4x32x32xf32, #tpu.memory_space<vmem>>, vector<1x32x32xf32>
    %26 = vector.shape_cast %25 : vector<1x32x32xf32> to vector<32x32xf32>
    %cst_16 = arith.constant dense<0.000000e+00> : vector<8x32xf32>
    %27 = tpu.matmul %24, %26, %cst_16 {dimension_numbers = #tpu.dot_dimension_numbers<[1], [0], [0], [1], [0, 0, 1, 1], [], []>} : vector<8x32xf32>, vector<32x32xf32>, vector<8x32xf32> -> vector<8x32xf32>
    %28 = arith.addf %8, %27 : vector<8x32xf32>
    %29 = vector.extract_strided_slice %5 {offsets = [0, 32], sizes = [8, 32], strides = [1, 1]} : vector<16x384xf32> to vector<8x32xf32>
    %30 = vector.extract_strided_slice %5 {offsets = [0, 160], sizes = [8, 32], strides = [1, 1]} : vector<16x384xf32> to vector<8x32xf32>
    %31 = vector.extract_strided_slice %5 {offsets = [0, 288], sizes = [8, 32], strides = [1, 1]} : vector<16x384xf32> to vector<8x32xf32>
    %cst_17 = arith.constant dense<0.000000e+00> : vector<8x8xf32>
    %32 = tpu.matmul %29, %30, %cst_17 {dimension_numbers = #tpu.dot_dimension_numbers<[1], [1], [0], [0], [0, 0, 1, 0], [], []>} : vector<8x32xf32>, vector<8x32xf32>, vector<8x8xf32> -> vector<8x8xf32>
    %33 = arith.addf %32, %7 : vector<8x8xf32>
    %cst_18 = arith.constant dense<0xFF800000> : vector<8xf32>
    %34 = vector.multi_reduction <maximumf>, %33, %cst_18 [1] : vector<8x8xf32> to vector<8xf32>
    %35 = vector.shape_cast %34 : vector<8xf32> to vector<8x1xf32>
    %36 = vector.broadcast %35 : vector<8x1xf32> to vector<8x8xf32>
    %37 = arith.subf %33, %36 : vector<8x8xf32>
    %38 = math.exp %37 : vector<8x8xf32>
    %cst_19 = arith.constant dense<0.000000e+00> : vector<8xf32>
    %39 = vector.multi_reduction <add>, %38, %cst_19 [1] : vector<8x8xf32> to vector<8xf32>
    %40 = vector.shape_cast %39 : vector<8xf32> to vector<8x1xf32>
    %41 = tpu.reciprocal %40 {approx = true} : vector<8x1xf32> -> vector<8x1xf32>
    %42 = vector.broadcast %41 : vector<8x1xf32> to vector<8x8xf32>
    %43 = arith.mulf %38, %42 : vector<8x8xf32>
    %cst_20 = arith.constant dense<0.000000e+00> : vector<8x32xf32>
    %44 = tpu.matmul %43, %31, %cst_20 {dimension_numbers = #tpu.dot_dimension_numbers<[1], [0], [0], [1], [0, 0, 1, 1], [], []>} : vector<8x8xf32>, vector<8x32xf32>, vector<8x32xf32> -> vector<8x32xf32>
    %c1 = arith.constant 1 : index
    %c0_21 = arith.constant 0 : index
    %c0_22 = arith.constant 0 : index
    %45 = vector.load %arg5[%c1, %c0_21, %c0_22] : memref<4x32x32xf32, #tpu.memory_space<vmem>>, vector<1x32x32xf32>
    %46 = vector.shape_cast %45 : vector<1x32x32xf32> to vector<32x32xf32>
    %cst_23 = arith.constant dense<0.000000e+00> : vector<8x32xf32>
    %47 = tpu.matmul %44, %46, %cst_23 {dimension_numbers = #tpu.dot_dimension_numbers<[1], [0], [0], [1], [0, 0, 1, 1], [], []>} : vector<8x32xf32>, vector<32x32xf32>, vector<8x32xf32> -> vector<8x32xf32>
    %48 = arith.addf %28, %47 : vector<8x32xf32>
    %49 = vector.extract_strided_slice %5 {offsets = [0, 64], sizes = [8, 32], strides = [1, 1]} : vector<16x384xf32> to vector<8x32xf32>
    %50 = vector.extract_strided_slice %5 {offsets = [0, 192], sizes = [8, 32], strides = [1, 1]} : vector<16x384xf32> to vector<8x32xf32>
    %51 = vector.extract_strided_slice %5 {offsets = [0, 320], sizes = [8, 32], strides = [1, 1]} : vector<16x384xf32> to vector<8x32xf32>
    %cst_24 = arith.constant dense<0.000000e+00> : vector<8x8xf32>
    %52 = tpu.matmul %49, %50, %cst_24 {dimension_numbers = #tpu.dot_dimension_numbers<[1], [1], [0], [0], [0, 0, 1, 0], [], []>} : vector<8x32xf32>, vector<8x32xf32>, vector<8x8xf32> -> vector<8x8xf32>
    %53 = arith.addf %52, %7 : vector<8x8xf32>
    %cst_25 = arith.constant dense<0xFF800000> : vector<8xf32>
    %54 = vector.multi_reduction <maximumf>, %53, %cst_25 [1] : vector<8x8xf32> to vector<8xf32>
    %55 = vector.shape_cast %54 : vector<8xf32> to vector<8x1xf32>
    %56 = vector.broadcast %55 : vector<8x1xf32> to vector<8x8xf32>
    %57 = arith.subf %53, %56 : vector<8x8xf32>
    %58 = math.exp %57 : vector<8x8xf32>
    %cst_26 = arith.constant dense<0.000000e+00> : vector<8xf32>
    %59 = vector.multi_reduction <add>, %58, %cst_26 [1] : vector<8x8xf32> to vector<8xf32>
    %60 = vector.shape_cast %59 : vector<8xf32> to vector<8x1xf32>
    %61 = tpu.reciprocal %60 {approx = true} : vector<8x1xf32> -> vector<8x1xf32>
    %62 = vector.broadcast %61 : vector<8x1xf32> to vector<8x8xf32>
    %63 = arith.mulf %58, %62 : vector<8x8xf32>
    %cst_27 = arith.constant dense<0.000000e+00> : vector<8x32xf32>
    %64 = tpu.matmul %63, %51, %cst_27 {dimension_numbers = #tpu.dot_dimension_numbers<[1], [0], [0], [1], [0, 0, 1, 1], [], []>} : vector<8x8xf32>, vector<8x32xf32>, vector<8x32xf32> -> vector<8x32xf32>
    %c2 = arith.constant 2 : index
    %c0_28 = arith.constant 0 : index
    %c0_29 = arith.constant 0 : index
    %65 = vector.load %arg5[%c2, %c0_28, %c0_29] : memref<4x32x32xf32, #tpu.memory_space<vmem>>, vector<1x32x32xf32>
    %66 = vector.shape_cast %65 : vector<1x32x32xf32> to vector<32x32xf32>
    %cst_30 = arith.constant dense<0.000000e+00> : vector<8x32xf32>
    %67 = tpu.matmul %64, %66, %cst_30 {dimension_numbers = #tpu.dot_dimension_numbers<[1], [0], [0], [1], [0, 0, 1, 1], [], []>} : vector<8x32xf32>, vector<32x32xf32>, vector<8x32xf32> -> vector<8x32xf32>
    %68 = arith.addf %48, %67 : vector<8x32xf32>
    %69 = vector.extract_strided_slice %5 {offsets = [0, 96], sizes = [8, 32], strides = [1, 1]} : vector<16x384xf32> to vector<8x32xf32>
    %70 = vector.extract_strided_slice %5 {offsets = [0, 224], sizes = [8, 32], strides = [1, 1]} : vector<16x384xf32> to vector<8x32xf32>
    %71 = vector.extract_strided_slice %5 {offsets = [0, 352], sizes = [8, 32], strides = [1, 1]} : vector<16x384xf32> to vector<8x32xf32>
    %cst_31 = arith.constant dense<0.000000e+00> : vector<8x8xf32>
    %72 = tpu.matmul %69, %70, %cst_31 {dimension_numbers = #tpu.dot_dimension_numbers<[1], [1], [0], [0], [0, 0, 1, 0], [], []>} : vector<8x32xf32>, vector<8x32xf32>, vector<8x8xf32> -> vector<8x8xf32>
    %73 = arith.addf %72, %7 : vector<8x8xf32>
    %cst_32 = arith.constant dense<0xFF800000> : vector<8xf32>
    %74 = vector.multi_reduction <maximumf>, %73, %cst_32 [1] : vector<8x8xf32> to vector<8xf32>
    %75 = vector.shape_cast %74 : vector<8xf32> to vector<8x1xf32>
    %76 = vector.broadcast %75 : vector<8x1xf32> to vector<8x8xf32>
    %77 = arith.subf %73, %76 : vector<8x8xf32>
    %78 = math.exp %77 : vector<8x8xf32>
    %cst_33 = arith.constant dense<0.000000e+00> : vector<8xf32>
    %79 = vector.multi_reduction <add>, %78, %cst_33 [1] : vector<8x8xf32> to vector<8xf32>
    %80 = vector.shape_cast %79 : vector<8xf32> to vector<8x1xf32>
    %81 = tpu.reciprocal %80 {approx = true} : vector<8x1xf32> -> vector<8x1xf32>
    %82 = vector.broadcast %81 : vector<8x1xf32> to vector<8x8xf32>
    %83 = arith.mulf %78, %82 : vector<8x8xf32>
    %cst_34 = arith.constant dense<0.000000e+00> : vector<8x32xf32>
    %84 = tpu.matmul %83, %71, %cst_34 {dimension_numbers = #tpu.dot_dimension_numbers<[1], [0], [0], [1], [0, 0, 1, 1], [], []>} : vector<8x8xf32>, vector<8x32xf32>, vector<8x32xf32> -> vector<8x32xf32>
    %c3 = arith.constant 3 : index
    %c0_35 = arith.constant 0 : index
    %c0_36 = arith.constant 0 : index
    %85 = vector.load %arg5[%c3, %c0_35, %c0_36] : memref<4x32x32xf32, #tpu.memory_space<vmem>>, vector<1x32x32xf32>
    %86 = vector.shape_cast %85 : vector<1x32x32xf32> to vector<32x32xf32>
    %cst_37 = arith.constant dense<0.000000e+00> : vector<8x32xf32>
    %87 = tpu.matmul %84, %86, %cst_37 {dimension_numbers = #tpu.dot_dimension_numbers<[1], [0], [0], [1], [0, 0, 1, 1], [], []>} : vector<8x32xf32>, vector<32x32xf32>, vector<8x32xf32> -> vector<8x32xf32>
    %88 = arith.addf %68, %87 : vector<8x32xf32>
    %c1_38 = arith.constant 1 : index
    %c0_39 = arith.constant 0 : index
    %c0_40 = arith.constant 0 : index
    %89 = vector.load %arg2[%c1_38, %c0_39, %c0_40] : memref<2x8x8xf32, #tpu.memory_space<vmem>>, vector<1x8x8xf32>
    %90 = vector.shape_cast %89 : vector<1x8x8xf32> to vector<8x8xf32>
    %cst_41 = arith.constant 0.000000e+00 : f32
    %91 = vector.broadcast %cst_41 : f32 to vector<8x32xf32>
    %92 = vector.extract_strided_slice %5 {offsets = [8, 0], sizes = [8, 32], strides = [1, 1]} : vector<16x384xf32> to vector<8x32xf32>
    %93 = vector.extract_strided_slice %5 {offsets = [8, 128], sizes = [8, 32], strides = [1, 1]} : vector<16x384xf32> to vector<8x32xf32>
    %94 = vector.extract_strided_slice %5 {offsets = [8, 256], sizes = [8, 32], strides = [1, 1]} : vector<16x384xf32> to vector<8x32xf32>
    %cst_42 = arith.constant dense<0.000000e+00> : vector<8x8xf32>
    %95 = tpu.matmul %92, %93, %cst_42 {dimension_numbers = #tpu.dot_dimension_numbers<[1], [1], [0], [0], [0, 0, 1, 0], [], []>} : vector<8x32xf32>, vector<8x32xf32>, vector<8x8xf32> -> vector<8x8xf32>
    %96 = arith.addf %95, %90 : vector<8x8xf32>
    %cst_43 = arith.constant dense<0xFF800000> : vector<8xf32>
    %97 = vector.multi_reduction <maximumf>, %96, %cst_43 [1] : vector<8x8xf32> to vector<8xf32>
    %98 = vector.shape_cast %97 : vector<8xf32> to vector<8x1xf32>
    %99 = vector.broadcast %98 : vector<8x1xf32> to vector<8x8xf32>
    %100 = arith.subf %96, %99 : vector<8x8xf32>
    %101 = math.exp %100 : vector<8x8xf32>
    %cst_44 = arith.constant dense<0.000000e+00> : vector<8xf32>
    %102 = vector.multi_reduction <add>, %101, %cst_44 [1] : vector<8x8xf32> to vector<8xf32>
    %103 = vector.shape_cast %102 : vector<8xf32> to vector<8x1xf32>
    %104 = tpu.reciprocal %103 {approx = true} : vector<8x1xf32> -> vector<8x1xf32>
    %105 = vector.broadcast %104 : vector<8x1xf32> to vector<8x8xf32>
    %106 = arith.mulf %101, %105 : vector<8x8xf32>
    %cst_45 = arith.constant dense<0.000000e+00> : vector<8x32xf32>
    %107 = tpu.matmul %106, %94, %cst_45 {dimension_numbers = #tpu.dot_dimension_numbers<[1], [0], [0], [1], [0, 0, 1, 1], [], []>} : vector<8x8xf32>, vector<8x32xf32>, vector<8x32xf32> -> vector<8x32xf32>
    %c0_46 = arith.constant 0 : index
    %c0_47 = arith.constant 0 : index
    %c0_48 = arith.constant 0 : index
    %108 = vector.load %arg5[%c0_46, %c0_47, %c0_48] : memref<4x32x32xf32, #tpu.memory_space<vmem>>, vector<1x32x32xf32>
    %109 = vector.shape_cast %108 : vector<1x32x32xf32> to vector<32x32xf32>
    %cst_49 = arith.constant dense<0.000000e+00> : vector<8x32xf32>
    %110 = tpu.matmul %107, %109, %cst_49 {dimension_numbers = #tpu.dot_dimension_numbers<[1], [0], [0], [1], [0, 0, 1, 1], [], []>} : vector<8x32xf32>, vector<32x32xf32>, vector<8x32xf32> -> vector<8x32xf32>
    %111 = arith.addf %91, %110 : vector<8x32xf32>
    %112 = vector.extract_strided_slice %5 {offsets = [8, 32], sizes = [8, 32], strides = [1, 1]} : vector<16x384xf32> to vector<8x32xf32>
    %113 = vector.extract_strided_slice %5 {offsets = [8, 160], sizes = [8, 32], strides = [1, 1]} : vector<16x384xf32> to vector<8x32xf32>
    %114 = vector.extract_strided_slice %5 {offsets = [8, 288], sizes = [8, 32], strides = [1, 1]} : vector<16x384xf32> to vector<8x32xf32>
    %cst_50 = arith.constant dense<0.000000e+00> : vector<8x8xf32>
    %115 = tpu.matmul %112, %113, %cst_50 {dimension_numbers = #tpu.dot_dimension_numbers<[1], [1], [0], [0], [0, 0, 1, 0], [], []>} : vector<8x32xf32>, vector<8x32xf32>, vector<8x8xf32> -> vector<8x8xf32>
    %116 = arith.addf %115, %90 : vector<8x8xf32>
    %cst_51 = arith.constant dense<0xFF800000> : vector<8xf32>
    %117 = vector.multi_reduction <maximumf>, %116, %cst_51 [1] : vector<8x8xf32> to vector<8xf32>
    %118 = vector.shape_cast %117 : vector<8xf32> to vector<8x1xf32>
    %119 = vector.broadcast %118 : vector<8x1xf32> to vector<8x8xf32>
    %120 = arith.subf %116, %119 : vector<8x8xf32>
    %121 = math.exp %120 : vector<8x8xf32>
    %cst_52 = arith.constant dense<0.000000e+00> : vector<8xf32>
    %122 = vector.multi_reduction <add>, %121, %cst_52 [1] : vector<8x8xf32> to vector<8xf32>
    %123 = vector.shape_cast %122 : vector<8xf32> to vector<8x1xf32>
    %124 = tpu.reciprocal %123 {approx = true} : vector<8x1xf32> -> vector<8x1xf32>
    %125 = vector.broadcast %124 : vector<8x1xf32> to vector<8x8xf32>
    %126 = arith.mulf %121, %125 : vector<8x8xf32>
    %cst_53 = arith.constant dense<0.000000e+00> : vector<8x32xf32>
    %127 = tpu.matmul %126, %114, %cst_53 {dimension_numbers = #tpu.dot_dimension_numbers<[1], [0], [0], [1], [0, 0, 1, 1], [], []>} : vector<8x8xf32>, vector<8x32xf32>, vector<8x32xf32> -> vector<8x32xf32>
    %c1_54 = arith.constant 1 : index
    %c0_55 = arith.constant 0 : index
    %c0_56 = arith.constant 0 : index
    %128 = vector.load %arg5[%c1_54, %c0_55, %c0_56] : memref<4x32x32xf32, #tpu.memory_space<vmem>>, vector<1x32x32xf32>
    %129 = vector.shape_cast %128 : vector<1x32x32xf32> to vector<32x32xf32>
    %cst_57 = arith.constant dense<0.000000e+00> : vector<8x32xf32>
    %130 = tpu.matmul %127, %129, %cst_57 {dimension_numbers = #tpu.dot_dimension_numbers<[1], [0], [0], [1], [0, 0, 1, 1], [], []>} : vector<8x32xf32>, vector<32x32xf32>, vector<8x32xf32> -> vector<8x32xf32>
    %131 = arith.addf %111, %130 : vector<8x32xf32>
    %132 = vector.extract_strided_slice %5 {offsets = [8, 64], sizes = [8, 32], strides = [1, 1]} : vector<16x384xf32> to vector<8x32xf32>
    %133 = vector.extract_strided_slice %5 {offsets = [8, 192], sizes = [8, 32], strides = [1, 1]} : vector<16x384xf32> to vector<8x32xf32>
    %134 = vector.extract_strided_slice %5 {offsets = [8, 320], sizes = [8, 32], strides = [1, 1]} : vector<16x384xf32> to vector<8x32xf32>
    %cst_58 = arith.constant dense<0.000000e+00> : vector<8x8xf32>
    %135 = tpu.matmul %132, %133, %cst_58 {dimension_numbers = #tpu.dot_dimension_numbers<[1], [1], [0], [0], [0, 0, 1, 0], [], []>} : vector<8x32xf32>, vector<8x32xf32>, vector<8x8xf32> -> vector<8x8xf32>
    %136 = arith.addf %135, %90 : vector<8x8xf32>
    %cst_59 = arith.constant dense<0xFF800000> : vector<8xf32>
    %137 = vector.multi_reduction <maximumf>, %136, %cst_59 [1] : vector<8x8xf32> to vector<8xf32>
    %138 = vector.shape_cast %137 : vector<8xf32> to vector<8x1xf32>
    %139 = vector.broadcast %138 : vector<8x1xf32> to vector<8x8xf32>
    %140 = arith.subf %136, %139 : vector<8x8xf32>
    %141 = math.exp %140 : vector<8x8xf32>
    %cst_60 = arith.constant dense<0.000000e+00> : vector<8xf32>
    %142 = vector.multi_reduction <add>, %141, %cst_60 [1] : vector<8x8xf32> to vector<8xf32>
    %143 = vector.shape_cast %142 : vector<8xf32> to vector<8x1xf32>
    %144 = tpu.reciprocal %143 {approx = true} : vector<8x1xf32> -> vector<8x1xf32>
    %145 = vector.broadcast %144 : vector<8x1xf32> to vector<8x8xf32>
    %146 = arith.mulf %141, %145 : vector<8x8xf32>
    %cst_61 = arith.constant dense<0.000000e+00> : vector<8x32xf32>
    %147 = tpu.matmul %146, %134, %cst_61 {dimension_numbers = #tpu.dot_dimension_numbers<[1], [0], [0], [1], [0, 0, 1, 1], [], []>} : vector<8x8xf32>, vector<8x32xf32>, vector<8x32xf32> -> vector<8x32xf32>
    %c2_62 = arith.constant 2 : index
    %c0_63 = arith.constant 0 : index
    %c0_64 = arith.constant 0 : index
    %148 = vector.load %arg5[%c2_62, %c0_63, %c0_64] : memref<4x32x32xf32, #tpu.memory_space<vmem>>, vector<1x32x32xf32>
    %149 = vector.shape_cast %148 : vector<1x32x32xf32> to vector<32x32xf32>
    %cst_65 = arith.constant dense<0.000000e+00> : vector<8x32xf32>
    %150 = tpu.matmul %147, %149, %cst_65 {dimension_numbers = #tpu.dot_dimension_numbers<[1], [0], [0], [1], [0, 0, 1, 1], [], []>} : vector<8x32xf32>, vector<32x32xf32>, vector<8x32xf32> -> vector<8x32xf32>
    %151 = arith.addf %131, %150 : vector<8x32xf32>
    %152 = vector.extract_strided_slice %5 {offsets = [8, 96], sizes = [8, 32], strides = [1, 1]} : vector<16x384xf32> to vector<8x32xf32>
    %153 = vector.extract_strided_slice %5 {offsets = [8, 224], sizes = [8, 32], strides = [1, 1]} : vector<16x384xf32> to vector<8x32xf32>
    %154 = vector.extract_strided_slice %5 {offsets = [8, 352], sizes = [8, 32], strides = [1, 1]} : vector<16x384xf32> to vector<8x32xf32>
    %cst_66 = arith.constant dense<0.000000e+00> : vector<8x8xf32>
    %155 = tpu.matmul %152, %153, %cst_66 {dimension_numbers = #tpu.dot_dimension_numbers<[1], [1], [0], [0], [0, 0, 1, 0], [], []>} : vector<8x32xf32>, vector<8x32xf32>, vector<8x8xf32> -> vector<8x8xf32>
    %156 = arith.addf %155, %90 : vector<8x8xf32>
    %cst_67 = arith.constant dense<0xFF800000> : vector<8xf32>
    %157 = vector.multi_reduction <maximumf>, %156, %cst_67 [1] : vector<8x8xf32> to vector<8xf32>
    %158 = vector.shape_cast %157 : vector<8xf32> to vector<8x1xf32>
    %159 = vector.broadcast %158 : vector<8x1xf32> to vector<8x8xf32>
    %160 = arith.subf %156, %159 : vector<8x8xf32>
    %161 = math.exp %160 : vector<8x8xf32>
    %cst_68 = arith.constant dense<0.000000e+00> : vector<8xf32>
    %162 = vector.multi_reduction <add>, %161, %cst_68 [1] : vector<8x8xf32> to vector<8xf32>
    %163 = vector.shape_cast %162 : vector<8xf32> to vector<8x1xf32>
    %164 = tpu.reciprocal %163 {approx = true} : vector<8x1xf32> -> vector<8x1xf32>
    %165 = vector.broadcast %164 : vector<8x1xf32> to vector<8x8xf32>
    %166 = arith.mulf %161, %165 : vector<8x8xf32>
    %cst_69 = arith.constant dense<0.000000e+00> : vector<8x32xf32>
    %167 = tpu.matmul %166, %154, %cst_69 {dimension_numbers = #tpu.dot_dimension_numbers<[1], [0], [0], [1], [0, 0, 1, 1], [], []>} : vector<8x8xf32>, vector<8x32xf32>, vector<8x32xf32> -> vector<8x32xf32>
    %c3_70 = arith.constant 3 : index
    %c0_71 = arith.constant 0 : index
    %c0_72 = arith.constant 0 : index
    %168 = vector.load %arg5[%c3_70, %c0_71, %c0_72] : memref<4x32x32xf32, #tpu.memory_space<vmem>>, vector<1x32x32xf32>
    %169 = vector.shape_cast %168 : vector<1x32x32xf32> to vector<32x32xf32>
    %cst_73 = arith.constant dense<0.000000e+00> : vector<8x32xf32>
    %170 = tpu.matmul %167, %169, %cst_73 {dimension_numbers = #tpu.dot_dimension_numbers<[1], [0], [0], [1], [0, 0, 1, 1], [], []>} : vector<8x32xf32>, vector<32x32xf32>, vector<8x32xf32> -> vector<8x32xf32>
    %171 = arith.addf %151, %170 : vector<8x32xf32>
    %172 = tpu.concatenate %88, %171 in 0 : vector<8x32xf32>, vector<8x32xf32> -> vector<16x32xf32>
    %c0_74 = arith.constant 0 : index
    %c0_75 = arith.constant 0 : index
    %173 = vector.load %arg6[%c0_74, %c0_75] : memref<1x32xf32, #tpu.memory_space<vmem>>, vector<1x32xf32>
    %174 = vector.broadcast %173 : vector<1x32xf32> to vector<16x32xf32>
    %175 = arith.addf %172, %174 : vector<16x32xf32>
    %c0_76 = arith.constant 0 : index
    %c0_77 = arith.constant 0 : index
    %176 = vector.load %arg7[%c0_76, %c0_77] : memref<1x32xf32, #tpu.memory_space<vmem>>, vector<1x32xf32>
    %c0_78 = arith.constant 0 : index
    %c0_79 = arith.constant 0 : index
    %177 = vector.load %arg8[%c0_78, %c0_79] : memref<1x32xf32, #tpu.memory_space<vmem>>, vector<1x32xf32>
    %cst_80 = arith.constant dense<0.000000e+00> : vector<16xf32>
    %178 = vector.multi_reduction <add>, %175, %cst_80 [1] : vector<16x32xf32> to vector<16xf32>
    %179 = vector.shape_cast %178 : vector<16xf32> to vector<16x1xf32>
    %cst_81 = arith.constant 3.200000e+01 : f32
    %180 = vector.broadcast %cst_81 : f32 to vector<16x1xf32>
    %181 = arith.divf %179, %180 : vector<16x1xf32>
    %182 = vector.broadcast %181 : vector<16x1xf32> to vector<16x32xf32>
    %183 = arith.subf %175, %182 : vector<16x32xf32>
    %184 = arith.mulf %183, %183 : vector<16x32xf32>
    %cst_82 = arith.constant dense<0.000000e+00> : vector<16xf32>
    %185 = vector.multi_reduction <add>, %184, %cst_82 [1] : vector<16x32xf32> to vector<16xf32>
    %186 = vector.shape_cast %185 : vector<16xf32> to vector<16x1xf32>
    %cst_83 = arith.constant 3.200000e+01 : f32
    %187 = vector.broadcast %cst_83 : f32 to vector<16x1xf32>
    %188 = arith.divf %186, %187 : vector<16x1xf32>
    %189 = vector.broadcast %181 : vector<16x1xf32> to vector<16x32xf32>
    %190 = arith.subf %175, %189 : vector<16x32xf32>
    %cst_84 = arith.constant 9.99999974E-6 : f32
    %191 = vector.broadcast %cst_84 : f32 to vector<16x1xf32>
    %192 = arith.addf %188, %191 : vector<16x1xf32>
    %193 = math.rsqrt %192 : vector<16x1xf32>
    %194 = vector.broadcast %193 : vector<16x1xf32> to vector<16x32xf32>
    %195 = arith.mulf %190, %194 : vector<16x32xf32>
    %196 = vector.broadcast %176 : vector<1x32xf32> to vector<16x32xf32>
    %197 = arith.mulf %195, %196 : vector<16x32xf32>
    %198 = vector.broadcast %177 : vector<1x32xf32> to vector<16x32xf32>
    %199 = arith.addf %197, %198 : vector<16x32xf32>
    %c0_85 = arith.constant 0 : index
    %c0_86 = arith.constant 0 : index
    %200 = vector.load %arg9[%c0_85, %c0_86] : memref<32x32xf32, #tpu.memory_space<vmem>>, vector<32x32xf32>
    %cst_87 = arith.constant dense<0.000000e+00> : vector<16x32xf32>
    %201 = tpu.matmul %199, %200, %cst_87 {dimension_numbers = #tpu.dot_dimension_numbers<[1], [0], [0], [1], [0, 0, 1, 1], [], []>} : vector<16x32xf32>, vector<32x32xf32>, vector<16x32xf32> -> vector<16x32xf32>
    %c0_88 = arith.constant 0 : index
    %c0_89 = arith.constant 0 : index
    %202 = vector.load %arg10[%c0_88, %c0_89] : memref<1x32xf32, #tpu.memory_space<vmem>>, vector<1x32xf32>
    %203 = vector.broadcast %202 : vector<1x32xf32> to vector<16x32xf32>
    %204 = arith.addf %201, %203 : vector<16x32xf32>
    %cst_90 = arith.constant 5.000000e-01 : f32
    %205 = vector.broadcast %cst_90 : f32 to vector<16x32xf32>
    %206 = arith.mulf %205, %204 : vector<16x32xf32>
    %cst_91 = arith.constant 0.707106769 : f32
    %207 = vector.broadcast %cst_91 : f32 to vector<16x32xf32>
    %208 = arith.mulf %204, %207 : vector<16x32xf32>
    %cst_92 = arith.constant 0.000000e+00 : f32
    %209 = vector.broadcast %cst_92 : f32 to vector<16x32xf32>
    %210 = arith.cmpf oge, %208, %209 : vector<16x32xf32>
    %cst_93 = arith.constant 1.000000e+00 : f32
    %cst_94 = arith.constant -1.000000e+00 : f32
    %211 = vector.broadcast %cst_93 : f32 to vector<16x32xf32>
    %212 = vector.broadcast %cst_94 : f32 to vector<16x32xf32>
    %213 = arith.select %210, %211, %212 : vector<16x32xi1>, vector<16x32xf32>
    %214 = math.absf %208 : vector<16x32xf32>
    %cst_95 = arith.constant 0.327591091 : f32
    %215 = vector.broadcast %cst_95 : f32 to vector<16x32xf32>
    %216 = arith.mulf %215, %214 : vector<16x32xf32>
    %cst_96 = arith.constant 1.000000e+00 : f32
    %217 = vector.broadcast %cst_96 : f32 to vector<16x32xf32>
    %218 = arith.addf %217, %216 : vector<16x32xf32>
    %cst_97 = arith.constant 1.000000e+00 : f32
    %219 = vector.broadcast %cst_97 : f32 to vector<16x32xf32>
    %220 = arith.divf %219, %218 : vector<16x32xf32>
    %cst_98 = arith.constant 1.06140542 : f32
    %221 = vector.broadcast %cst_98 : f32 to vector<16x32xf32>
    %222 = arith.mulf %220, %221 : vector<16x32xf32>
    %cst_99 = arith.constant -1.45315206 : f32
    %223 = vector.broadcast %cst_99 : f32 to vector<16x32xf32>
    %224 = arith.addf %223, %222 : vector<16x32xf32>
    %225 = arith.mulf %220, %224 : vector<16x32xf32>
    %cst_100 = arith.constant 1.42141378 : f32
    %226 = vector.broadcast %cst_100 : f32 to vector<16x32xf32>
    %227 = arith.addf %226, %225 : vector<16x32xf32>
    %228 = arith.mulf %220, %227 : vector<16x32xf32>
    %cst_101 = arith.constant -0.284496725 : f32
    %229 = vector.broadcast %cst_101 : f32 to vector<16x32xf32>
    %230 = arith.addf %229, %228 : vector<16x32xf32>
    %231 = arith.mulf %220, %230 : vector<16x32xf32>
    %cst_102 = arith.constant 0.254829586 : f32
    %232 = vector.broadcast %cst_102 : f32 to vector<16x32xf32>
    %233 = arith.addf %232, %231 : vector<16x32xf32>
    %234 = arith.mulf %220, %233 : vector<16x32xf32>
    %cst_103 = arith.constant 0.000000e+00 : f32
    %235 = vector.broadcast %cst_103 : f32 to vector<16x32xf32>
    %236 = arith.subf %235, %214 : vector<16x32xf32>
    %237 = arith.mulf %236, %214 : vector<16x32xf32>
    %238 = math.exp %237 : vector<16x32xf32>
    %239 = arith.mulf %234, %238 : vector<16x32xf32>
    %cst_104 = arith.constant 1.000000e+00 : f32
    %240 = vector.broadcast %cst_104 : f32 to vector<16x32xf32>
    %241 = arith.subf %240, %239 : vector<16x32xf32>
    %242 = arith.mulf %213, %241 : vector<16x32xf32>
    %cst_105 = arith.constant 1.000000e+00 : f32
    %243 = vector.broadcast %cst_105 : f32 to vector<16x32xf32>
    %244 = arith.addf %243, %242 : vector<16x32xf32>
    %245 = arith.mulf %206, %244 : vector<16x32xf32>
    %c0_106 = arith.constant 0 : index
    %c0_107 = arith.constant 0 : index
    %246 = vector.load %arg11[%c0_106, %c0_107] : memref<32x32xf32, #tpu.memory_space<vmem>>, vector<32x32xf32>
    %cst_108 = arith.constant dense<0.000000e+00> : vector<16x32xf32>
    %247 = tpu.matmul %245, %246, %cst_108 {dimension_numbers = #tpu.dot_dimension_numbers<[1], [0], [0], [1], [0, 0, 1, 1], [], []>} : vector<16x32xf32>, vector<32x32xf32>, vector<16x32xf32> -> vector<16x32xf32>
    %c0_109 = arith.constant 0 : index
    %c0_110 = arith.constant 0 : index
    %248 = vector.load %arg12[%c0_109, %c0_110] : memref<1x32xf32, #tpu.memory_space<vmem>>, vector<1x32xf32>
    %249 = vector.broadcast %248 : vector<1x32xf32> to vector<16x32xf32>
    %250 = arith.addf %247, %249 : vector<16x32xf32>
    %c0_111 = arith.constant 0 : index
    %c0_112 = arith.constant 0 : index
    %251 = vector.load %arg13[%c0_111, %c0_112] : memref<1x32xf32, #tpu.memory_space<vmem>>, vector<1x32xf32>
    %c0_113 = arith.constant 0 : index
    %c0_114 = arith.constant 0 : index
    %252 = vector.load %arg14[%c0_113, %c0_114] : memref<1x32xf32, #tpu.memory_space<vmem>>, vector<1x32xf32>
    %cst_115 = arith.constant dense<0.000000e+00> : vector<16xf32>
    %253 = vector.multi_reduction <add>, %250, %cst_115 [1] : vector<16x32xf32> to vector<16xf32>
    %254 = vector.shape_cast %253 : vector<16xf32> to vector<16x1xf32>
    %cst_116 = arith.constant 3.200000e+01 : f32
    %255 = vector.broadcast %cst_116 : f32 to vector<16x1xf32>
    %256 = arith.divf %254, %255 : vector<16x1xf32>
    %257 = vector.broadcast %256 : vector<16x1xf32> to vector<16x32xf32>
    %258 = arith.subf %250, %257 : vector<16x32xf32>
    %259 = arith.mulf %258, %258 : vector<16x32xf32>
    %cst_117 = arith.constant dense<0.000000e+00> : vector<16xf32>
    %260 = vector.multi_reduction <add>, %259, %cst_117 [1] : vector<16x32xf32> to vector<16xf32>
    %261 = vector.shape_cast %260 : vector<16xf32> to vector<16x1xf32>
    %cst_118 = arith.constant 3.200000e+01 : f32
    %262 = vector.broadcast %cst_118 : f32 to vector<16x1xf32>
    %263 = arith.divf %261, %262 : vector<16x1xf32>
    %264 = vector.broadcast %256 : vector<16x1xf32> to vector<16x32xf32>
    %265 = arith.subf %250, %264 : vector<16x32xf32>
    %cst_119 = arith.constant 9.99999974E-6 : f32
    %266 = vector.broadcast %cst_119 : f32 to vector<16x1xf32>
    %267 = arith.addf %263, %266 : vector<16x1xf32>
    %268 = math.rsqrt %267 : vector<16x1xf32>
    %269 = vector.broadcast %268 : vector<16x1xf32> to vector<16x32xf32>
    %270 = arith.mulf %265, %269 : vector<16x32xf32>
    %271 = vector.broadcast %251 : vector<1x32xf32> to vector<16x32xf32>
    %272 = arith.mulf %270, %271 : vector<16x32xf32>
    %273 = vector.broadcast %252 : vector<1x32xf32> to vector<16x32xf32>
    %274 = arith.addf %272, %273 : vector<16x32xf32>
    %c0_120 = arith.constant 0 : index
    %c0_121 = arith.constant 0 : index
    %275 = vector.load %arg15[%c0_120, %c0_121] : memref<16x32xf32, #tpu.memory_space<vmem>>, vector<16x32xf32>
    tpu.vector_store %arg15[%c0_120, %c0_121], %274 {strides = array<i32>} : memref<16x32xf32, #tpu.memory_space<vmem>>, vector<16x32xf32>,
    return
  }
  func.func @transform_0(%arg0: i32) -> (i32, i32) {
    %c0_i32 = arith.constant 0 : i32
    %c0_i32_0 = arith.constant 0 : i32
    return %arg0, %c0_i32 : i32, i32
  }
  func.func @transform_1(%arg0: i32) -> (i32, i32, i32) {
    %c0_i32 = arith.constant 0 : i32
    %c0_i32_0 = arith.constant 0 : i32
    %c0_i32_1 = arith.constant 0 : i32
    return %arg0, %c0_i32, %c0_i32_0 : i32, i32, i32
  }
  func.func @transform_2(%arg0: i32) -> (i32, i32) {
    %c0_i32 = arith.constant 0 : i32
    %c0_i32_0 = arith.constant 0 : i32
    %c0_i32_1 = arith.constant 0 : i32
    return %c0_i32, %c0_i32_0 : i32, i32
  }
  func.func @transform_3(%arg0: i32) -> (i32, i32) {
    %c0_i32 = arith.constant 0 : i32
    %c0_i32_0 = arith.constant 0 : i32
    %c0_i32_1 = arith.constant 0 : i32
    return %c0_i32, %c0_i32_0 : i32, i32
  }
  func.func @transform_4(%arg0: i32) -> (i32, i32, i32) {
    %c0_i32 = arith.constant 0 : i32
    %c0_i32_0 = arith.constant 0 : i32
    %c0_i32_1 = arith.constant 0 : i32
    %c0_i32_2 = arith.constant 0 : i32
    return %c0_i32, %c0_i32_0, %c0_i32_1 : i32, i32, i32
  }
  func.func @transform_5(%arg0: i32) -> (i32, i32) {
    %c0_i32 = arith.constant 0 : i32
    %c0_i32_0 = arith.constant 0 : i32
    %c0_i32_1 = arith.constant 0 : i32
    return %c0_i32, %c0_i32_0 : i32, i32
  }
  func.func @transform_6(%arg0: i32) -> (i32, i32) {
    %c0_i32 = arith.constant 0 : i32
    %c0_i32_0 = arith.constant 0 : i32
    %c0_i32_1 = arith.constant 0 : i32
    return %c0_i32, %c0_i32_0 : i32, i32
  }
  func.func @transform_7(%arg0: i32) -> (i32, i32) {
    %c0_i32 = arith.constant 0 : i32
    %c0_i32_0 = arith.constant 0 : i32
    %c0_i32_1 = arith.constant 0 : i32
    return %c0_i32, %c0_i32_0 : i32, i32
  }
  func.func @transform_8(%arg0: i32) -> (i32, i32) {
    %c0_i32 = arith.constant 0 : i32
    %c0_i32_0 = arith.constant 0 : i32
    %c0_i32_1 = arith.constant 0 : i32
    return %c0_i32, %c0_i32_0 : i32, i32
  }
  func.func @transform_9(%arg0: i32) -> (i32, i32) {
    %c0_i32 = arith.constant 0 : i32
    %c0_i32_0 = arith.constant 0 : i32
    %c0_i32_1 = arith.constant 0 : i32
    return %c0_i32, %c0_i32_0 : i32, i32
  }
  func.func @transform_10(%arg0: i32) -> (i32, i32) {
    %c0_i32 = arith.constant 0 : i32
    %c0_i32_0 = arith.constant 0 : i32
    %c0_i32_1 = arith.constant 0 : i32
    return %c0_i32, %c0_i32_0 : i32, i32
  }
  func.func @transform_11(%arg0: i32) -> (i32, i32) {
    %c0_i32 = arith.constant 0 : i32
    %c0_i32_0 = arith.constant 0 : i32
    %c0_i32_1 = arith.constant 0 : i32
    return %c0_i32, %c0_i32_0 : i32, i32
  }
  func.func @transform_12(%arg0: i32) -> (i32, i32) {
    %c0_i32 = arith.constant 0 : i32
    %c0_i32_0 = arith.constant 0 : i32
    %c0_i32_1 = arith.constant 0 : i32
    return %c0_i32, %c0_i32_0 : i32, i32
  }
  func.func @transform_13(%arg0: i32) -> (i32, i32) {
    %c0_i32 = arith.constant 0 : i32
    %c0_i32_0 = arith.constant 0 : i32
    %c0_i32_1 = arith.constant 0 : i32
    return %c0_i32, %c0_i32_0 : i32, i32
  }
  func.func @transform_14(%arg0: i32) -> (i32, i32) {
    %c0_i32 = arith.constant 0 : i32
    %c0_i32_0 = arith.constant 0 : i32
    return %arg0, %c0_i32 : i32, i32
  }
}

</mosaic_0001>

<llo_original>
// kernel: tpu_custom_call.1
$region0: #{tpu_custom_call.1}
  #allocation0 [shape = 'u32[]', space=smem, size = 0x4, offset = 0x4, fixed_abs, tag = 'smem constant byte address 0x4 - core index']
  #allocation1 [shape = 'u32[144,128]{1,0:T(1,128)}', space=vmem, size = 0x12000, scoped, tag = 'internal scratch']
  %s0 = inlined_call_operand.hbm [shape: f32[16,32], index: 0, kind: input, shape index: {}]
  %s1 = inlined_call_operand.hbm [shape: f32[2,8,8], index: 1, kind: input, shape index: {}]
  %s2 = inlined_call_operand.hbm [shape: f32[32,384], index: 2, kind: input, shape index: {}]
  %s3 = inlined_call_operand.vmem [shape: f32[1,384], index: 3, kind: input, shape index: {}]
  %s4 = inlined_call_operand.hbm [shape: f32[4,32,32], index: 4, kind: input, shape index: {}]
  %s5 = inlined_call_operand.vmem [shape: f32[1,32], index: 5, kind: input, shape index: {}]
  %s6 = inlined_call_operand.vmem [shape: f32[1,32], index: 6, kind: input, shape index: {}]
  %s7 = inlined_call_operand.vmem [shape: f32[1,32], index: 7, kind: input, shape index: {}]
  %s8 = inlined_call_operand.hbm [shape: f32[32,32], index: 8, kind: input, shape index: {}]
  %s9 = inlined_call_operand.vmem [shape: f32[1,32], index: 9, kind: input, shape index: {}]
  %s10 = inlined_call_operand.hbm [shape: f32[32,32], index: 10, kind: input, shape index: {}]
  %s11 = inlined_call_operand.vmem [shape: f32[1,32], index: 11, kind: input, shape index: {}]
  %s12 = inlined_call_operand.vmem [shape: f32[1,32], index: 12, kind: input, shape index: {}]
  %s13 = inlined_call_operand.vmem [shape: f32[1,32], index: 13, kind: input, shape index: {}]
  %s14 = inlined_call_operand.hbm [shape: f32[16,32], index: 14, kind: output, shape index: {}]
  %s15 = sld [smem:[#allocation0]]
  $region90: #{tpu_custom_call.1} parent=0
    _
  %s17 = ssub.s32 1, %s15
  %s18 = scalar_select 0, %s17, %s15
  $region1: #{tpu_custom_call.1} parent=0
    #allocation2 [shape = 'u8[8192]{0}', space=vmem, size = 0x2000, scoped, tag = 'input window, operand 0, single buffered']
    #allocation3 [shape = 's32[1]{0}', space=sflag, size = 0x4, scoped, tag = 'scoped memory for tpu_custom_call.1']
    #allocation4 [shape = 's32[1]{0}', space=sflag, size = 0x4, scoped, tag = 'scoped memory for tpu_custom_call.1']
    #allocation5 [shape = 'u8[8192]{0}', space=vmem, size = 0x2000, scoped, tag = 'input window, operand 1, single buffered']
    #allocation6 [shape = 's32[1]{0}', space=sflag, size = 0x4, scoped, tag = 'scoped memory for tpu_custom_call.1']
    #allocation7 [shape = 'u8[49152]{0}', space=vmem, size = 0xc000, scoped, tag = 'input window, operand 2, single buffered']
    #allocation8 [shape = 'u8[65536]{0}', space=vmem, size = 0x10000, scoped, tag = 'input window, operand 4, single buffered']
    #allocation9 [shape = 's32[1]{0}', space=sflag, size = 0x4, scoped, tag = 'scoped memory for tpu_custom_call.1']
    #allocation10 [shape = 'u8[16384]{0}', space=vmem, size = 0x4000, scoped, tag = 'input window, operand 8, single buffered']
    #allocation11 [shape = 'u8[16384]{0}', space=vmem, size = 0x4000, scoped, tag = 'input window, operand 10, single buffered']
    #allocation12 [shape = 's32[1]{0}', space=sflag, size = 0x4, scoped, tag = 'scoped memory for tpu_custom_call.1']
    #allocation13 [shape = 'u8[8192]{0}', space=vmem, size = 0x2000, scoped, tag = 'output window, operand 0, single buffered']
    %19 = vsyncpa [#allocation3], 0
    %20 = vsyncpa [#allocation6], 0
    %21 = vsyncpa [#allocation9], 0
    %22 = vsyncpa [#allocation12], 0
    %23 = vsyncpa [#allocation4], 0
    // Predicated region
    $region2: #{tpu_custom_call.1} parent=1 // pred_check
      _
    $region3: #{tpu_custom_call.1} parent=1 // pred_check_branch
      %25 = sbr.rel (0) target = $region5
    $region4: #{tpu_custom_call.1} parent=1 // pred_region
      %s27 = ssub.s32 256, 256
      %28 = vsyncadd [#allocation3], %s27
      %s29 = sshll.u32 [#allocation2], 4
      %s30 = int_to_ptr.vmem [resolvable:$true] %s29
      %35 = dma.hbm_to_vmem [thread:$0]  %s0, 256, %s30, [#allocation3], 128, 128, 8
    $region5: #{tpu_custom_call.1} parent=1 // pred_fallthru
      _
    // Predicated region
    $region6: #{tpu_custom_call.1} parent=1 // pred_check
      _
    $region7: #{tpu_custom_call.1} parent=1 // pred_check_branch
      %37 = sbr.rel (0) target = $region9
    $region8: #{tpu_custom_call.1} parent=1 // pred_region
      %s39 = ssub.s32 256, 256
      %40 = vsyncadd [#allocation6], %s39
      %s41 = sshll.u32 [#allocation5], 4
      %s42 = int_to_ptr.vmem [resolvable:$true] %s41
      %47 = dma.hbm_to_vmem [thread:$0]  %s1, 256, %s42, [#allocation6], 128, 128, 8
    $region9: #{tpu_custom_call.1} parent=1 // pred_fallthru
      _
    // Predicated region
    $region10: #{tpu_custom_call.1} parent=1 // pred_check
      _
    $region11: #{tpu_custom_call.1} parent=1 // pred_check_branch
      %49 = sbr.rel (0) target = $region13
    $region12: #{tpu_custom_call.1} parent=1 // pred_region
      %s51 = ssub.s32 1536, 1536
      %52 = vsyncadd [#allocation6], %s51
      %s53 = sshll.u32 [#allocation7], 4
      %s54 = int_to_ptr.vmem [resolvable:$true] %s53
      %59 = dma.hbm_to_vmem [thread:$0]  %s2, 1536, %s54, [#allocation6], 384, 384, 24
    $region13: #{tpu_custom_call.1} parent=1 // pred_fallthru
      _
    // Predicated region
    $region14: #{tpu_custom_call.1} parent=1 // pred_check
      _
    $region15: #{tpu_custom_call.1} parent=1 // pred_check_branch
      %61 = sbr.rel (0) target = $region17
    $region16: #{tpu_custom_call.1} parent=1 // pred_region
      _
    $region17: #{tpu_custom_call.1} parent=1 // pred_fallthru
      _
    // Predicated region
    $region18: #{tpu_custom_call.1} parent=1 // pred_check
      _
    $region19: #{tpu_custom_call.1} parent=1 // pred_check_branch
      %63 = sbr.rel (0) target = $region21
    $region20: #{tpu_custom_call.1} parent=1 // pred_region
      %s65 = ssub.s32 2048, 2048
      %66 = vsyncadd [#allocation9], %s65
      %s67 = sshll.u32 [#allocation8], 4
      %s68 = int_to_ptr.vmem [resolvable:$true] %s67
      %73 = dma.hbm_to_vmem [thread:$0]  %s4, 2048, %s68, [#allocation9], 128, 128, 8
    $region21: #{tpu_custom_call.1} parent=1 // pred_fallthru
      _
    // Predicated region
    $region22: #{tpu_custom_call.1} parent=1 // pred_check
      _
    $region23: #{tpu_custom_call.1} parent=1 // pred_check_branch
      %75 = sbr.rel (0) target = $region25
    $region24: #{tpu_custom_call.1} parent=1 // pred_region
      _
    $region25: #{tpu_custom_call.1} parent=1 // pred_fallthru
      _
    // Predicated region
    $region26: #{tpu_custom_call.1} parent=1 // pred_check
      _
    $region27: #{tpu_custom_call.1} parent=1 // pred_check_branch
      %77 = sbr.rel (0) target = $region29
    $region28: #{tpu_custom_call.1} parent=1 // pred_region
      _
    $region29: #{tpu_custom_call.1} parent=1 // pred_fallthru
      _
    // Predicated region
    $region30: #{tpu_custom_call.1} parent=1 // pred_check
      _
    $region31: #{tpu_custom_call.1} parent=1 // pred_check_branch
      %79 = sbr.rel (0) target = $region33
    $region32: #{tpu_custom_call.1} parent=1 // pred_region
      _
    $region33: #{tpu_custom_call.1} parent=1 // pred_fallthru
      _
    // Predicated region
    $region34: #{tpu_custom_call.1} parent=1 // pred_check
      _
    $region35: #{tpu_custom_call.1} parent=1 // pred_check_branch
      %81 = sbr.rel (0) target = $region37
    $region36: #{tpu_custom_call.1} parent=1 // pred_region
      %s83 = ssub.s32 512, 512
      %84 = vsyncadd [#allocation9], %s83
      %s85 = sshll.u32 [#allocation10], 4
      %s86 = int_to_ptr.vmem [resolvable:$true] %s85
      %91 = dma.hbm_to_vmem [thread:$0]  %s8, 512, %s86, [#allocation9], 128, 128, 8
    $region37: #{tpu_custom_call.1} parent=1 // pred_fallthru
      _
    // Predicated region
    $region38: #{tpu_custom_call.1} parent=1 // pred_check
      _
    $region39: #{tpu_custom_call.1} parent=1 // pred_check_branch
      %93 = sbr.rel (0) target = $region41
    $region40: #{tpu_custom_call.1} parent=1 // pred_region
      _
    $region41: #{tpu_custom_call.1} parent=1 // pred_fallthru
      _
    // Predicated region
    $region42: #{tpu_custom_call.1} parent=1 // pred_check
      _
    $region43: #{tpu_custom_call.1} parent=1 // pred_check_branch
      %95 = sbr.rel (0) target = $region45
    $region44: #{tpu_custom_call.1} parent=1 // pred_region
      %s97 = ssub.s32 512, 512
      %98 = vsyncadd [#allocation12], %s97
      %s99 = sshll.u32 [#allocation11], 4
      %s100 = int_to_ptr.vmem [resolvable:$true] %s99
      %105 = dma.hbm_to_vmem [thread:$0]  %s10, 512, %s100, [#allocation12], 128, 128, 8
    $region45: #{tpu_custom_call.1} parent=1 // pred_fallthru
      _
    // Predicated region
    $region46: #{tpu_custom_call.1} parent=1 // pred_check
      _
    $region47: #{tpu_custom_call.1} parent=1 // pred_check_branch
      %107 = sbr.rel (0) target = $region49
    $region48: #{tpu_custom_call.1} parent=1 // pred_region
      _
    $region49: #{tpu_custom_call.1} parent=1 // pred_fallthru
      _
    // Predicated region
    $region50: #{tpu_custom_call.1} parent=1 // pred_check
      _
    $region51: #{tpu_custom_call.1} parent=1 // pred_check_branch
      %109 = sbr.rel (0) target = $region53
    $region52: #{tpu_custom_call.1} parent=1 // pred_region
      _
    $region53: #{tpu_custom_call.1} parent=1 // pred_fallthru
      _
    // Predicated region
    $region54: #{tpu_custom_call.1} parent=1 // pred_check
      _
    $region55: #{tpu_custom_call.1} parent=1 // pred_check_branch
      %111 = sbr.rel (0) target = $region57
    $region56: #{tpu_custom_call.1} parent=1 // pred_region
      _
    $region57: #{tpu_custom_call.1} parent=1 // pred_fallthru
      _
    // Predicated region
    $region58: #{tpu_custom_call.1} parent=1 // pred_check
      _
    $region59: #{tpu_custom_call.1} parent=1 // pred_check_branch
      %113 = sbr.rel (0) target = $region61
    $region60: #{tpu_custom_call.1} parent=1 // pred_region
      %114 = dma.done [#allocation3], 256
    $region61: #{tpu_custom_call.1} parent=1 // pred_fallthru
      _
    // Predicated region
    $region62: #{tpu_custom_call.1} parent=1 // pred_check
      _
    $region63: #{tpu_custom_call.1} parent=1 // pred_check_branch
      %116 = sbr.rel (0) target = $region65
    $region64: #{tpu_custom_call.1} parent=1 // pred_region
      %117 = dma.done [#allocation6], 256
    $region65: #{tpu_custom_call.1} parent=1 // pred_fallthru
      _
    // Predicated region
    $region66: #{tpu_custom_call.1} parent=1 // pred_check
      _
    $region67: #{tpu_custom_call.1} parent=1 // pred_check_branch
      %119 = sbr.rel (0) target = $region69
    $region68: #{tpu_custom_call.1} parent=1 // pred_region
      %120 = dma.done [#allocation6], 1536
    $region69: #{tpu_custom_call.1} parent=1 // pred_fallthru
      _
    // Predicated region
    $region70: #{tpu_custom_call.1} parent=1 // pred_check
      _
    $region71: #{tpu_custom_call.1} parent=1 // pred_check_branch
      %122 = sbr.rel (0) target = $region73
    $region72: #{tpu_custom_call.1} parent=1 // pred_region
      %123 = dma.done [#allocation9], 2048
    $region73: #{tpu_custom_call.1} parent=1 // pred_fallthru
      _
    // Predicated region
    $region74: #{tpu_custom_call.1} parent=1 // pred_check
      _
    $region75: #{tpu_custom_call.1} parent=1 // pred_check_branch
      %125 = sbr.rel (0) target = $region77
    $region76: #{tpu_custom_call.1} parent=1 // pred_region
      %126 = dma.done [#allocation9], 512
    $region77: #{tpu_custom_call.1} parent=1 // pred_fallthru
      _
    // Predicated region
    $region78: #{tpu_custom_call.1} parent=1 // pred_check
      _
    $region79: #{tpu_custom_call.1} parent=1 // pred_check_branch
      %128 = sbr.rel (0) target = $region81
    $region80: #{tpu_custom_call.1} parent=1 // pred_region
      %129 = dma.done [#allocation12], 512
    $region81: #{tpu_custom_call.1} parent=1 // pred_fallthru
      _
    %v130 = vld [vmem:[#allocation2] sm:$0xff]
    %v131 = vld [vmem:[#allocation2 + $0x8] sm:$0xff]
    %v132 = vld [vmem:[#allocation7] sm:$0xff]
    %v133 = vld [vmem:[#allocation7 + $0x8] sm:$0xff]
    %v134 = vld [vmem:[#allocation7 + $0x10] sm:$0xff]
    %v135 = vld [vmem:[#allocation7 + $0x18] sm:$0xff]
    %v136 = vld [vmem:[#allocation7 + $0x20] sm:$0xff]
    %v137 = vld [vmem:[#allocation7 + $0x28] sm:$0xff]
    %v138 = vld [vmem:[#allocation7 + $0x30] sm:$0xff]
    %v139 = vld [vmem:[#allocation7 + $0x38] sm:$0xff]
    %v140 = vld [vmem:[#allocation7 + $0x40] sm:$0xff]
    %v141 = vld [vmem:[#allocation7 + $0x48] sm:$0xff]
    %v142 = vld [vmem:[#allocation7 + $0x50] sm:$0xff]
    %v143 = vld [vmem:[#allocation7 + $0x58] sm:$0xff]
    %v144 = vld [vmem:[%s3] sm:$0x7]
    %v146 = vlaneseq
    %v147 = vshrl.u32 %v146, 7
    %v148 = vsub.s32 0, %v147
    %v149 = vrot.slane %v144, %v148
    %v150 = vlaneseq
    %v151 = vshrl.u32 %v150, 7
    %v152 = vsub.s32 1, %v151
    %v153 = vrot.slane %v144, %v152
    %v154 = vlaneseq
    %v155 = vshrl.u32 %v154, 7
    %v156 = vsub.s32 2, %v155
    %v157 = vrot.slane %v144, %v156
    %vm161 = vcmask 261120
    %v163 = vsel %vm161, %v130, 0
    %v166 = vsel %vm161, %v131, 0
    %168 = vmatprep.subr.mxu0 0.0
    %169 = vmatpush1.msra.mxu0 0.0
    %170 = vmatprep.subr.mxu0 0.0
    %171 = vmatpush1.msra.mxu0 0.0
    %172 = vmatprep.subr.mxu0 0.0
    %173 = vmatpush1.msra.mxu0 0.0
    %174 = vmatprep.subr.mxu0 0.0
    %175 = vmatpush1.msra.mxu0 0.0
    %176 = vmatprep.subr.mxu0 0.0
    %177 = vmatpush1.msra.mxu0 0.0
    %178 = vmatprep.subr.mxu0 0.0
    %179 = vmatpush1.msra.mxu0 0.0
    %180 = vmatprep.subr.mxu0 0.0
    %181 = vmatpush1.msra.mxu0 0.0
    %182 = vmatprep.subr.mxu0 0.0
    %183 = vmatpush1.msra.mxu0 0.0
    %184 = vmatprep.subr.mxu0 0.0
    %185 = vmatpush1.msra.mxu0 0.0
    %186 = vmatprep.subr.mxu0 0.0
    %187 = vmatpush1.msra.mxu0 0.0
    %188 = vmatprep.subr.mxu0 0.0
    %189 = vmatpush1.msra.mxu0 0.0
    %190 = vmatprep.subr.mxu0 0.0
    %191 = vmatpush1.msra.mxu0 0.0
    %192 = vmatprep.subr.mxu0 %v142
    %193 = vmatpush1.msra.mxu0 %v141
    %194 = vmatprep.subr.mxu0 %v139
    %195 = vmatpush1.msra.mxu0 %v138
    %196 = vmatprep.subr.mxu0 %v136
    %197 = vmatpush1.msra.mxu0 %v135
    %198 = vmatprep.subr.mxu0 %v133
    %199 = vmatpush1.msra.mxu0 %v132
    %200 = vmatprep.subr.mxu0 0.0
    %201 = vmatpush2.msra.mxu0 0.0
    %202 = vmatprep.subr.mxu0 0.0
    %203 = vmatpush2.msra.mxu0 0.0
    %204 = vmatprep.subr.mxu0 0.0
    %205 = vmatpush2.msra.mxu0 0.0
    %206 = vmatprep.subr.mxu0 0.0
    %207 = vmatpush2.msra.mxu0 0.0
    %208 = vmatprep.subr.mxu0 0.0
    %209 = vmatpush2.msra.mxu0 0.0
    %210 = vmatprep.subr.mxu0 0.0
    %211 = vmatpush2.msra.mxu0 0.0
    %212 = vmatprep.subr.mxu0 0.0
    %213 = vmatpush2.msra.mxu0 0.0
    %214 = vmatprep.subr.mxu0 0.0
    %215 = vmatpush2.msra.mxu0 0.0
    %216 = vmatprep.subr.mxu0 0.0
    %217 = vmatpush2.msra.mxu0 0.0
    %218 = vmatprep.subr.mxu0 0.0
    %219 = vmatpush2.msra.mxu0 0.0
    %220 = vmatprep.subr.mxu0 0.0
    %221 = vmatpush2.msra.mxu0 0.0
    %222 = vmatprep.subr.mxu0 0.0
    %223 = vmatpush2.msra.mxu0 0.0
    %224 = vmatprep.subr.mxu0 0.0
    %225 = vmatpush2.msra.mxu0 0.0
    %226 = vmatprep.subr.mxu0 0.0
    %227 = vmatpush2.msra.mxu0 0.0
    %228 = vmatprep.subr.mxu0 0.0
    %229 = vmatpush2.msra.mxu0 0.0
    %230 = vmatprep.subr.mxu0 0.0
    %231 = vmatpush2.msra.mxu0 0.0
    %232 = vmatprep.mubr.f32.mxu0 0.0
    %233 = vmatmul.mubr.f32.gmra.mxu0 %v163
    %v234 = vpop.f32.mrf.mxu0
    %v235 = vadd.f32 %v149, %v234
    %v236 = vpop.f32.mrf.mxu0
    %v237 = vadd.f32 %v153, %v236
    %238 = vmatprep.mubr.f32.mxu0 0.0
    %239 = vmatmul.mubr.f32.gmra.mxu0 %v166
    %v240 = vpop.f32.mrf.mxu0
    %v241 = vadd.f32 %v149, %v240
    %v242 = vpop.f32.mrf.mxu0
    %v243 = vadd.f32 %v153, %v242
    %244 = vdwg.mxu0
    %245 = vmatprep.subr.mxu0 0.0
    %246 = vmatpush1.msra.mxu0 0.0
    %247 = vmatprep.subr.mxu0 0.0
    %248 = vmatpush1.msra.mxu0 0.0
    %249 = vmatprep.subr.mxu0 0.0
    %250 = vmatpush1.msra.mxu0 0.0
    %251 = vmatprep.subr.mxu0 0.0
    %252 = vmatpush1.msra.mxu0 0.0
    %253 = vmatprep.subr.mxu0 0.0
    %254 = vmatpush1.msra.mxu0 0.0
    %255 = vmatprep.subr.mxu0 0.0
    %256 = vmatpush1.msra.mxu0 0.0
    %257 = vmatprep.subr.mxu0 0.0
    %258 = vmatpush1.msra.mxu0 0.0
    %259 = vmatprep.subr.mxu0 0.0
    %260 = vmatpush1.msra.mxu0 0.0
    %261 = vmatprep.subr.mxu0 0.0
    %262 = vmatpush1.msra.mxu0 0.0
    %263 = vmatprep.subr.mxu0 0.0
    %264 = vmatpush1.msra.mxu0 0.0
    %265 = vmatprep.subr.mxu0 0.0
    %266 = vmatpush1.msra.mxu0 0.0
    %267 = vmatprep.subr.mxu0 0.0
    %268 = vmatpush1.msra.mxu0 0.0
    %269 = vmatprep.subr.mxu0 0.0
    %270 = vmatpush1.msra.mxu0 %v143
    %271 = vmatprep.subr.mxu0 0.0
    %272 = vmatpush1.msra.mxu0 %v140
    %273 = vmatprep.subr.mxu0 0.0
    %274 = vmatpush1.msra.mxu0 %v137
    %275 = vmatprep.subr.mxu0 0.0
    %276 = vmatpush1.msra.mxu0 %v134
    %277 = vmatprep.subr.mxu0 0.0
    %278 = vmatpush2.msra.mxu0 0.0
    %279 = vmatprep.subr.mxu0 0.0
    %280 = vmatpush2.msra.mxu0 0.0
    %281 = vmatprep.subr.mxu0 0.0
    %282 = vmatpush2.msra.mxu0 0.0
    %283 = vmatprep.subr.mxu0 0.0
    %284 = vmatpush2.msra.mxu0 0.0
    %285 = vmatprep.subr.mxu0 0.0
    %286 = vmatpush2.msra.mxu0 0.0
    %287 = vmatprep.subr.mxu0 0.0
    %288 = vmatpush2.msra.mxu0 0.0
    %289 = vmatprep.subr.mxu0 0.0
    %290 = vmatpush2.msra.mxu0 0.0
    %291 = vmatprep.subr.mxu0 0.0
    %292 = vmatpush2.msra.mxu0 0.0
    %293 = vmatprep.subr.mxu0 0.0
    %294 = vmatpush2.msra.mxu0 0.0
    %295 = vmatprep.subr.mxu0 0.0
    %296 = vmatpush2.msra.mxu0 0.0
    %297 = vmatprep.subr.mxu0 0.0
    %298 = vmatpush2.msra.mxu0 0.0
    %299 = vmatprep.subr.mxu0 0.0
    %300 = vmatpush2.msra.mxu0 0.0
    %301 = vmatprep.subr.mxu0 0.0
    %302 = vmatpush2.msra.mxu0 0.0
    %303 = vmatprep.subr.mxu0 0.0
    %304 = vmatpush2.msra.mxu0 0.0
    %305 = vmatprep.subr.mxu0 0.0
    %306 = vmatpush2.msra.mxu0 0.0
    %307 = vmatprep.subr.mxu0 0.0
    %308 = vmatpush2.msra.mxu0 0.0
    %309 = vmatprep.mubr.f32.mxu0 0.0
    %310 = vmatmul.mubr.f32.gmra.mxu0 %v163
    %v311 = vpop.f32.mrf.mxu0
    %v312 = vadd.f32 %v157, %v311
    %v313 = vpop.f32.mrf.mxu0
    %314 = vmatprep.mubr.f32.mxu0 0.0
    %315 = vmatmul.mubr.f32.gmra.mxu0 %v166
    %v316 = vpop.f32.mrf.mxu0
    %v317 = vadd.f32 %v157, %v316
    %v318 = vpop.f32.mrf.mxu0
    %319 = vdwg.mxu0
    %v320 = vld [vmem:[#allocation5] sm:$0xff]
    %v322 = vsel %vm161, %v235, 0
    %v325 = vsel %vm161, %v237, 0
    %327 = vmatprep.subr.mxu0 0.0
    %328 = vmatpush1.xpose.msra.mxu0 0.0
    %329 = vmatprep.subr.mxu0 0.0
    %330 = vmatpush1.xpose.msra.mxu0 0.0
    %331 = vmatprep.subr.mxu0 0.0
    %332 = vmatpush1.xpose.msra.mxu0 0.0
    %333 = vmatprep.subr.mxu0 0.0
    %334 = vmatpush1.xpose.msra.mxu0 0.0
    %335 = vmatprep.subr.mxu0 0.0
    %336 = vmatpush1.xpose.msra.mxu0 0.0
    %337 = vmatprep.subr.mxu0 0.0
    %338 = vmatpush1.xpose.msra.mxu0 0.0
    %339 = vmatprep.subr.mxu0 0.0
    %340 = vmatpush1.xpose.msra.mxu0 0.0
    %341 = vmatprep.subr.mxu0 0.0
    %342 = vmatpush1.xpose.msra.mxu0 0.0
    %343 = vmatprep.subr.mxu0 0.0
    %344 = vmatpush1.xpose.msra.mxu0 0.0
    %345 = vmatprep.subr.mxu0 0.0
    %346 = vmatpush1.xpose.msra.mxu0 0.0
    %347 = vmatprep.subr.mxu0 0.0
    %348 = vmatpush1.xpose.msra.mxu0 0.0
    %349 = vmatprep.subr.mxu0 0.0
    %350 = vmatpush1.xpose.msra.mxu0 0.0
    %351 = vmatprep.subr.mxu0 0.0
    %352 = vmatpush1.xpose.msra.mxu0 0.0
    %353 = vmatprep.subr.mxu0 0.0
    %354 = vmatpush1.xpose.msra.mxu0 0.0
    %355 = vmatprep.subr.mxu0 0.0
    %356 = vmatpush1.xpose.msra.mxu0 0.0
    %357 = vmatprep.subr.mxu0 0.0
    %358 = vmatpush1.xpose.msra.mxu0 %v325
    %359 = vmatprep.subr.mxu0 0.0
    %360 = vmatpush2.xpose.msra.mxu0 0.0
    %361 = vmatprep.subr.mxu0 0.0
    %362 = vmatpush2.xpose.msra.mxu0 0.0
    %363 = vmatprep.subr.mxu0 0.0
    %364 = vmatpush2.xpose.msra.mxu0 0.0
    %365 = vmatprep.subr.mxu0 0.0
    %366 = vmatpush2.xpose.msra.mxu0 0.0
    %367 = vmatprep.subr.mxu0 0.0
    %368 = vmatpush2.xpose.msra.mxu0 0.0
    %369 = vmatprep.subr.mxu0 0.0
    %370 = vmatpush2.xpose.msra.mxu0 0.0
    %371 = vmatprep.subr.mxu0 0.0
    %372 = vmatpush2.xpose.msra.mxu0 0.0
    %373 = vmatprep.subr.mxu0 0.0
    %374 = vmatpush2.xpose.msra.mxu0 0.0
    %375 = vmatprep.subr.mxu0 0.0
    %376 = vmatpush2.xpose.msra.mxu0 0.0
    %377 = vmatprep.subr.mxu0 0.0
    %378 = vmatpush2.xpose.msra.mxu0 0.0
    %379 = vmatprep.subr.mxu0 0.0
    %380 = vmatpush2.xpose.msra.mxu0 0.0
    %381 = vmatprep.subr.mxu0 0.0
    %382 = vmatpush2.xpose.msra.mxu0 0.0
    %383 = vmatprep.subr.mxu0 0.0
    %384 = vmatpush2.xpose.msra.mxu0 0.0
    %385 = vmatprep.subr.mxu0 0.0
    %386 = vmatpush2.xpose.msra.mxu0 0.0
    %387 = vmatprep.subr.mxu0 0.0
    %388 = vmatpush2.xpose.msra.mxu0 0.0
    %389 = vmatprep.subr.mxu0 0.0
    %390 = vmatpush2.xpose.msra.mxu0 0.0
    %391 = vmatprep.mubr.f32.mxu0 0.0
    %392 = vmatmul.mubr.f32.gmra.mxu0 %v322
    %v393 = vpop.f32.mrf.mxu0
    %v394 = vadd.f32 %v320, %v393
    %v395 = vpop.f32.mrf.mxu0
    %396 = vdwg.mxu0
    %vm397 = vcmask 64512
    %v398 = vsel %vm397, %v394, -inf
    %399 = vmax.xlane.f32.xlu0 %v398
    %v400 = vpop.xlane.xlu0 %399
    %v401 = vsub.f32 %v394, %v400
    %v402 = vmul.f32 %v401, 1.442695
    %v403 = vpow.pop %v402
    %v404 = vsel %vm397, %v403, 0.0
    %405 = vadd.xlane.f32.xlu0 %v404
    %v406 = vpop.xlane.xlu0 %405
    %v407 = vrcp.pop %v406
    %v408 = vmul.f32 %v403, %v407
    %v410 = vsel %vm397, %v408, 0
    %412 = vmatprep.subr.mxu0 0.0
    %413 = vmatpush1.msra.mxu0 0.0
    %414 = vmatprep.subr.mxu0 0.0
    %415 = vmatpush1.msra.mxu0 0.0
    %416 = vmatprep.subr.mxu0 0.0
    %417 = vmatpush1.msra.mxu0 0.0
    %418 = vmatprep.subr.mxu0 0.0
    %419 = vmatpush1.msra.mxu0 0.0
    %420 = vmatprep.subr.mxu0 0.0
    %421 = vmatpush1.msra.mxu0 0.0
    %422 = vmatprep.subr.mxu0 0.0
    %423 = vmatpush1.msra.mxu0 0.0
    %424 = vmatprep.subr.mxu0 0.0
    %425 = vmatpush1.msra.mxu0 0.0
    %426 = vmatprep.subr.mxu0 0.0
    %427 = vmatpush1.msra.mxu0 0.0
    %428 = vmatprep.subr.mxu0 0.0
    %429 = vmatpush1.msra.mxu0 0.0
    %430 = vmatprep.subr.mxu0 0.0
    %431 = vmatpush1.msra.mxu0 0.0
    %432 = vmatprep.subr.mxu0 0.0
    %433 = vmatpush1.msra.mxu0 0.0
    %434 = vmatprep.subr.mxu0 0.0
    %435 = vmatpush1.msra.mxu0 0.0
    %436 = vmatprep.subr.mxu0 0.0
    %437 = vmatpush1.msra.mxu0 0.0
    %438 = vmatprep.subr.mxu0 0.0
    %439 = vmatpush1.msra.mxu0 0.0
    %440 = vmatprep.subr.mxu0 0.0
    %441 = vmatpush1.msra.mxu0 0.0
    %442 = vmatprep.subr.mxu0 0.0
    %443 = vmatpush1.msra.mxu0 %v312
    %444 = vmatprep.subr.mxu0 0.0
    %445 = vmatpush2.msra.mxu0 0.0
    %446 = vmatprep.subr.mxu0 0.0
    %447 = vmatpush2.msra.mxu0 0.0
    %448 = vmatprep.subr.mxu0 0.0
    %449 = vmatpush2.msra.mxu0 0.0
    %450 = vmatprep.subr.mxu0 0.0
    %451 = vmatpush2.msra.mxu0 0.0
    %452 = vmatprep.subr.mxu0 0.0
    %453 = vmatpush2.msra.mxu0 0.0
    %454 = vmatprep.subr.mxu0 0.0
    %455 = vmatpush2.msra.mxu0 0.0
    %456 = vmatprep.subr.mxu0 0.0
    %457 = vmatpush2.msra.mxu0 0.0
    %458 = vmatprep.subr.mxu0 0.0
    %459 = vmatpush2.msra.mxu0 0.0
    %460 = vmatprep.subr.mxu0 0.0
    %461 = vmatpush2.msra.mxu0 0.0
    %462 = vmatprep.subr.mxu0 0.0
    %463 = vmatpush2.msra.mxu0 0.0
    %464 = vmatprep.subr.mxu0 0.0
    %465 = vmatpush2.msra.mxu0 0.0
    %466 = vmatprep.subr.mxu0 0.0
    %467 = vmatpush2.msra.mxu0 0.0
    %468 = vmatprep.subr.mxu0 0.0
    %469 = vmatpush2.msra.mxu0 0.0
    %470 = vmatprep.subr.mxu0 0.0
    %471 = vmatpush2.msra.mxu0 0.0
    %472 = vmatprep.subr.mxu0 0.0
    %473 = vmatpush2.msra.mxu0 0.0
    %474 = vmatprep.subr.mxu0 0.0
    %475 = vmatpush2.msra.mxu0 0.0
    %476 = vmatprep.mubr.f32.mxu0 0.0
    %477 = vmatmul.mubr.f32.gmra.mxu0 %v410
    %v478 = vpop.f32.mrf.mxu0
    %v479 = vadd.f32 0.0, %v478
    %v480 = vpop.f32.mrf.mxu0
    %481 = vdwg.mxu0
    %v482 = vld [vmem:[#allocation8] sm:$0xff]
    %v483 = vld [vmem:[#allocation8 + $0x8] sm:$0xff]
    %v484 = vld [vmem:[#allocation8 + $0x10] sm:$0xff]
    %v485 = vld [vmem:[#allocation8 + $0x18] sm:$0xff]
    %486 = vrot.lane.b32.xlu0 %v235, 96
    %v487 = vpop.permute.xlu0 %486
    %488 = vrot.lane.b32.xlu0 %v237, 96
    %v489 = vpop.permute.xlu0 %488
    %v490 = vsel %vm161, %v487, 0
    %v492 = vsel %vm161, %v489, 0
    %494 = vmatprep.subr.mxu0 0.0
    %495 = vmatpush1.xpose.msra.mxu0 0.0
    %496 = vmatprep.subr.mxu0 0.0
    %497 = vmatpush1.xpose.msra.mxu0 0.0
    %498 = vmatprep.subr.mxu0 0.0
    %499 = vmatpush1.xpose.msra.mxu0 0.0
    %500 = vmatprep.subr.mxu0 0.0
    %501 = vmatpush1.xpose.msra.mxu0 0.0
    %502 = vmatprep.subr.mxu0 0.0
    %503 = vmatpush1.xpose.msra.mxu0 0.0
    %504 = vmatprep.subr.mxu0 0.0
    %505 = vmatpush1.xpose.msra.mxu0 0.0
    %506 = vmatprep.subr.mxu0 0.0
    %507 = vmatpush1.xpose.msra.mxu0 0.0
    %508 = vmatprep.subr.mxu0 0.0
    %509 = vmatpush1.xpose.msra.mxu0 0.0
    %510 = vmatprep.subr.mxu0 0.0
    %511 = vmatpush1.xpose.msra.mxu0 0.0
    %512 = vmatprep.subr.mxu0 0.0
    %513 = vmatpush1.xpose.msra.mxu0 0.0
    %514 = vmatprep.subr.mxu0 0.0
    %515 = vmatpush1.xpose.msra.mxu0 0.0
    %516 = vmatprep.subr.mxu0 0.0
    %517 = vmatpush1.xpose.msra.mxu0 0.0
    %518 = vmatprep.subr.mxu0 0.0
    %519 = vmatpush1.xpose.msra.mxu0 0.0
    %520 = vmatprep.subr.mxu0 0.0
    %521 = vmatpush1.xpose.msra.mxu0 0.0
    %522 = vmatprep.subr.mxu0 0.0
    %523 = vmatpush1.xpose.msra.mxu0 0.0
    %524 = vmatprep.subr.mxu0 0.0
    %525 = vmatpush1.xpose.msra.mxu0 %v492
    %526 = vmatprep.subr.mxu0 0.0
    %527 = vmatpush2.xpose.msra.mxu0 0.0
    %528 = vmatprep.subr.mxu0 0.0
    %529 = vmatpush2.xpose.msra.mxu0 0.0
    %530 = vmatprep.subr.mxu0 0.0
    %531 = vmatpush2.xpose.msra.mxu0 0.0
    %532 = vmatprep.subr.mxu0 0.0
    %533 = vmatpush2.xpose.msra.mxu0 0.0
    %534 = vmatprep.subr.mxu0 0.0
    %535 = vmatpush2.xpose.msra.mxu0 0.0
    %536 = vmatprep.subr.mxu0 0.0
    %537 = vmatpush2.xpose.msra.mxu0 0.0
    %538 = vmatprep.subr.mxu0 0.0
    %539 = vmatpush2.xpose.msra.mxu0 0.0
    %540 = vmatprep.subr.mxu0 0.0
    %541 = vmatpush2.xpose.msra.mxu0 0.0
    %542 = vmatprep.subr.mxu0 0.0
    %543 = vmatpush2.xpose.msra.mxu0 0.0
    %544 = vmatprep.subr.mxu0 0.0
    %545 = vmatpush2.xpose.msra.mxu0 0.0
    %546 = vmatprep.subr.mxu0 0.0
    %547 = vmatpush2.xpose.msra.mxu0 0.0
    %548 = vmatprep.subr.mxu0 0.0
    %549 = vmatpush2.xpose.msra.mxu0 0.0
    %550 = vmatprep.subr.mxu0 0.0
    %551 = vmatpush2.xpose.msra.mxu0 0.0
    %552 = vmatprep.subr.mxu0 0.0
    %553 = vmatpush2.xpose.msra.mxu0 0.0
    %554 = vmatprep.subr.mxu0 0.0
    %555 = vmatpush2.xpose.msra.mxu0 0.0
    %556 = vmatprep.subr.mxu0 0.0
    %557 = vmatpush2.xpose.msra.mxu0 0.0
    %558 = vmatprep.mubr.f32.mxu0 0.0
    %559 = vmatmul.mubr.f32.gmra.mxu0 %v490
    %v560 = vpop.f32.mrf.mxu0
    %v561 = vadd.f32 %v320, %v560
    %v562 = vpop.f32.mrf.mxu0
    %563 = vdwg.mxu0
    %v564 = vsel %vm397, %v561, -inf
    %565 = vmax.xlane.f32.xlu0 %v564
    %v566 = vpop.xlane.xlu0 %565
    %v567 = vsub.f32 %v561, %v566
    %v568 = vmul.f32 %v567, 1.442695
    %v569 = vpow.pop %v568
    %v570 = vsel %vm397, %v569, 0.0
    %571 = vadd.xlane.f32.xlu0 %v570
    %v572 = vpop.xlane.xlu0 %571
    %v573 = vrcp.pop %v572
    %v574 = vmul.f32 %v569, %v573
    %576 = vrot.lane.b32.xlu0 %v312, 96
    %v577 = vpop.permute.xlu0 %576
    %v580 = vsel %vm397, %v574, 0
    %582 = vmatprep.subr.mxu0 0.0
    %583 = vmatpush1.msra.mxu0 0.0
    %584 = vmatprep.subr.mxu0 0.0
    %585 = vmatpush1.msra.mxu0 0.0
    %586 = vmatprep.subr.mxu0 0.0
    %587 = vmatpush1.msra.mxu0 0.0
    %588 = vmatprep.subr.mxu0 0.0
    %589 = vmatpush1.msra.mxu0 0.0
    %590 = vmatprep.subr.mxu0 0.0
    %591 = vmatpush1.msra.mxu0 0.0
    %592 = vmatprep.subr.mxu0 0.0
    %593 = vmatpush1.msra.mxu0 0.0
    %594 = vmatprep.subr.mxu0 0.0
    %595 = vmatpush1.msra.mxu0 0.0
    %596 = vmatprep.subr.mxu0 0.0
    %597 = vmatpush1.msra.mxu0 0.0
    %598 = vmatprep.subr.mxu0 0.0
    %599 = vmatpush1.msra.mxu0 0.0
    %600 = vmatprep.subr.mxu0 0.0
    %601 = vmatpush1.msra.mxu0 0.0
    %602 = vmatprep.subr.mxu0 0.0
    %603 = vmatpush1.msra.mxu0 0.0
    %604 = vmatprep.subr.mxu0 0.0
    %605 = vmatpush1.msra.mxu0 0.0
    %606 = vmatprep.subr.mxu0 0.0
    %607 = vmatpush1.msra.mxu0 0.0
    %608 = vmatprep.subr.mxu0 0.0
    %609 = vmatpush1.msra.mxu0 0.0
    %610 = vmatprep.subr.mxu0 0.0
    %611 = vmatpush1.msra.mxu0 0.0
    %612 = vmatprep.subr.mxu0 0.0
    %613 = vmatpush1.msra.mxu0 %v577
    %614 = vmatprep.subr.mxu0 0.0
    %615 = vmatpush2.msra.mxu0 0.0
    %616 = vmatprep.subr.mxu0 0.0
    %617 = vmatpush2.msra.mxu0 0.0
    %618 = vmatprep.subr.mxu0 0.0
    %619 = vmatpush2.msra.mxu0 0.0
    %620 = vmatprep.subr.mxu0 0.0
    %621 = vmatpush2.msra.mxu0 0.0
    %622 = vmatprep.subr.mxu0 0.0
    %623 = vmatpush2.msra.mxu0 0.0
    %624 = vmatprep.subr.mxu0 0.0
    %625 = vmatpush2.msra.mxu0 0.0
    %626 = vmatprep.subr.mxu0 0.0
    %627 = vmatpush2.msra.mxu0 0.0
    %628 = vmatprep.subr.mxu0 0.0
    %629 = vmatpush2.msra.mxu0 0.0
    %630 = vmatprep.subr.mxu0 0.0
    %631 = vmatpush2.msra.mxu0 0.0
    %632 = vmatprep.subr.mxu0 0.0
    %633 = vmatpush2.msra.mxu0 0.0
    %634 = vmatprep.subr.mxu0 0.0
    %635 = vmatpush2.msra.mxu0 0.0
    %636 = vmatprep.subr.mxu0 0.0
    %637 = vmatpush2.msra.mxu0 0.0
    %638 = vmatprep.subr.mxu0 0.0
    %639 = vmatpush2.msra.mxu0 0.0
    %640 = vmatprep.subr.mxu0 0.0
    %641 = vmatpush2.msra.mxu0 0.0
    %642 = vmatprep.subr.mxu0 0.0
    %643 = vmatpush2.msra.mxu0 0.0
    %644 = vmatprep.subr.mxu0 0.0
    %645 = vmatpush2.msra.mxu0 0.0
    %646 = vmatprep.mubr.f32.mxu0 0.0
    %647 = vmatmul.mubr.f32.gmra.mxu0 %v580
    %v648 = vpop.f32.mrf.mxu0
    %v649 = vadd.f32 0.0, %v648
    %v650 = vpop.f32.mrf.mxu0
    %651 = vdwg.mxu0
    %s652 = scalar_lea.vmem [#allocation8], 32
    %v653 = vld [vmem:[%s652] sm:$0xff]
    %v654 = vld [vmem:[%s652 + $0x8] sm:$0xff]
    %v655 = vld [vmem:[%s652 + $0x10] sm:$0xff]
    %v656 = vld [vmem:[%s652 + $0x18] sm:$0xff]
    %v658 = vsel %vm161, %v649, 0
    %660 = vmatprep.subr.mxu0 0.0
    %661 = vmatpush1.msra.mxu0 0.0
    %662 = vmatprep.subr.mxu0 0.0
    %663 = vmatpush1.msra.mxu0 0.0
    %664 = vmatprep.subr.mxu0 0.0
    %665 = vmatpush1.msra.mxu0 0.0
    %666 = vmatprep.subr.mxu0 0.0
    %667 = vmatpush1.msra.mxu0 0.0
    %668 = vmatprep.subr.mxu0 0.0
    %669 = vmatpush1.msra.mxu0 0.0
    %670 = vmatprep.subr.mxu0 0.0
    %671 = vmatpush1.msra.mxu0 0.0
    %672 = vmatprep.subr.mxu0 0.0
    %673 = vmatpush1.msra.mxu0 0.0
    %674 = vmatprep.subr.mxu0 0.0
    %675 = vmatpush1.msra.mxu0 0.0
    %676 = vmatprep.subr.mxu0 0.0
    %677 = vmatpush1.msra.mxu0 0.0
    %678 = vmatprep.subr.mxu0 0.0
    %679 = vmatpush1.msra.mxu0 0.0
    %680 = vmatprep.subr.mxu0 0.0
    %681 = vmatpush1.msra.mxu0 0.0
    %682 = vmatprep.subr.mxu0 0.0
    %683 = vmatpush1.msra.mxu0 0.0
    %684 = vmatprep.subr.mxu0 0.0
    %685 = vmatpush1.msra.mxu0 %v656
    %686 = vmatprep.subr.mxu0 0.0
    %687 = vmatpush1.msra.mxu0 %v655
    %688 = vmatprep.subr.mxu0 0.0
    %689 = vmatpush1.msra.mxu0 %v654
    %690 = vmatprep.subr.mxu0 0.0
    %691 = vmatpush1.msra.mxu0 %v653
    %692 = vmatprep.subr.mxu0 0.0
    %693 = vmatpush2.msra.mxu0 0.0
    %694 = vmatprep.subr.mxu0 0.0
    %695 = vmatpush2.msra.mxu0 0.0
    %696 = vmatprep.subr.mxu0 0.0
    %697 = vmatpush2.msra.mxu0 0.0
    %698 = vmatprep.subr.mxu0 0.0
    %699 = vmatpush2.msra.mxu0 0.0
    %700 = vmatprep.subr.mxu0 0.0
    %701 = vmatpush2.msra.mxu0 0.0
    %702 = vmatprep.subr.mxu0 0.0
    %703 = vmatpush2.msra.mxu0 0.0
    %704 = vmatprep.subr.mxu0 0.0
    %705 = vmatpush2.msra.mxu0 0.0
    %706 = vmatprep.subr.mxu0 0.0
    %707 = vmatpush2.msra.mxu0 0.0
    %708 = vmatprep.subr.mxu0 0.0
    %709 = vmatpush2.msra.mxu0 0.0
    %710 = vmatprep.subr.mxu0 0.0
    %711 = vmatpush2.msra.mxu0 0.0
    %712 = vmatprep.subr.mxu0 0.0
    %713 = vmatpush2.msra.mxu0 0.0
    %714 = vmatprep.subr.mxu0 0.0
    %715 = vmatpush2.msra.mxu0 0.0
    %716 = vmatprep.subr.mxu0 0.0
    %717 = vmatpush2.msra.mxu0 0.0
    %718 = vmatprep.subr.mxu0 0.0
    %719 = vmatpush2.msra.mxu0 0.0
    %720 = vmatprep.subr.mxu0 0.0
    %721 = vmatpush2.msra.mxu0 0.0
    %722 = vmatprep.subr.mxu0 0.0
    %723 = vmatpush2.msra.mxu0 0.0
    %724 = vmatprep.mubr.f32.mxu0 0.0
    %725 = vmatmul.mubr.f32.gmra.mxu0 %v658
    %v726 = vpop.f32.mrf.mxu0
    %v727 = vadd.f32 0.0, %v726
    %v728 = vpop.f32.mrf.mxu0
    %729 = vdwg.mxu0
    %v731 = vsel %vm161, %v479, 0
    %733 = vmatprep.subr.mxu0 0.0
    %734 = vmatpush1.msra.mxu0 0.0
    %735 = vmatprep.subr.mxu0 0.0
    %736 = vmatpush1.msra.mxu0 0.0
    %737 = vmatprep.subr.mxu0 0.0
    %738 = vmatpush1.msra.mxu0 0.0
    %739 = vmatprep.subr.mxu0 0.0
    %740 = vmatpush1.msra.mxu0 0.0
    %741 = vmatprep.subr.mxu0 0.0
    %742 = vmatpush1.msra.mxu0 0.0
    %743 = vmatprep.subr.mxu0 0.0
    %744 = vmatpush1.msra.mxu0 0.0
    %745 = vmatprep.subr.mxu0 0.0
    %746 = vmatpush1.msra.mxu0 0.0
    %747 = vmatprep.subr.mxu0 0.0
    %748 = vmatpush1.msra.mxu0 0.0
    %749 = vmatprep.subr.mxu0 0.0
    %750 = vmatpush1.msra.mxu0 0.0
    %751 = vmatprep.subr.mxu0 0.0
    %752 = vmatpush1.msra.mxu0 0.0
    %753 = vmatprep.subr.mxu0 0.0
    %754 = vmatpush1.msra.mxu0 0.0
    %755 = vmatprep.subr.mxu0 0.0
    %756 = vmatpush1.msra.mxu0 0.0
    %757 = vmatprep.subr.mxu0 0.0
    %758 = vmatpush1.msra.mxu0 %v485
    %759 = vmatprep.subr.mxu0 0.0
    %760 = vmatpush1.msra.mxu0 %v484
    %761 = vmatprep.subr.mxu0 0.0
    %762 = vmatpush1.msra.mxu0 %v483
    %763 = vmatprep.subr.mxu0 0.0
    %764 = vmatpush1.msra.mxu0 %v482
    %765 = vmatprep.subr.mxu0 0.0
    %766 = vmatpush2.msra.mxu0 0.0
    %767 = vmatprep.subr.mxu0 0.0
    %768 = vmatpush2.msra.mxu0 0.0
    %769 = vmatprep.subr.mxu0 0.0
    %770 = vmatpush2.msra.mxu0 0.0
    %771 = vmatprep.subr.mxu0 0.0
    %772 = vmatpush2.msra.mxu0 0.0
    %773 = vmatprep.subr.mxu0 0.0
    %774 = vmatpush2.msra.mxu0 0.0
    %775 = vmatprep.subr.mxu0 0.0
    %776 = vmatpush2.msra.mxu0 0.0
    %777 = vmatprep.subr.mxu0 0.0
    %778 = vmatpush2.msra.mxu0 0.0
    %779 = vmatprep.subr.mxu0 0.0
    %780 = vmatpush2.msra.mxu0 0.0
    %781 = vmatprep.subr.mxu0 0.0
    %782 = vmatpush2.msra.mxu0 0.0
    %783 = vmatprep.subr.mxu0 0.0
    %784 = vmatpush2.msra.mxu0 0.0
    %785 = vmatprep.subr.mxu0 0.0
    %786 = vmatpush2.msra.mxu0 0.0
    %787 = vmatprep.subr.mxu0 0.0
    %788 = vmatpush2.msra.mxu0 0.0
    %789 = vmatprep.subr.mxu0 0.0
    %790 = vmatpush2.msra.mxu0 0.0
    %791 = vmatprep.subr.mxu0 0.0
    %792 = vmatpush2.msra.mxu0 0.0
    %793 = vmatprep.subr.mxu0 0.0
    %794 = vmatpush2.msra.mxu0 0.0
    %795 = vmatprep.subr.mxu0 0.0
    %796 = vmatpush2.msra.mxu0 0.0
    %797 = vmatprep.mubr.f32.mxu0 0.0
    %798 = vmatmul.mubr.f32.gmra.mxu0 %v731
    %v799 = vpop.f32.mrf.mxu0
    %v800 = vadd.f32 %v727, %v799
    %v801 = vpop.f32.mrf.mxu0
    %802 = vdwg.mxu0
    %803 = vrot.lane.b32.xlu0 %v235, 64
    %v804 = vpop.permute.xlu0 %803
    %805 = vrot.lane.b32.xlu0 %v237, 64
    %v806 = vpop.permute.xlu0 %805
    %v807 = vsel %vm161, %v804, 0
    %v809 = vsel %vm161, %v806, 0
    %811 = vmatprep.subr.mxu0 0.0
    %812 = vmatpush1.xpose.msra.mxu0 0.0
    %813 = vmatprep.subr.mxu0 0.0
    %814 = vmatpush1.xpose.msra.mxu0 0.0
    %815 = vmatprep.subr.mxu0 0.0
    %816 = vmatpush1.xpose.msra.mxu0 0.0
    %817 = vmatprep.subr.mxu0 0.0
    %818 = vmatpush1.xpose.msra.mxu0 0.0
    %819 = vmatprep.subr.mxu0 0.0
    %820 = vmatpush1.xpose.msra.mxu0 0.0
    %821 = vmatprep.subr.mxu0 0.0
    %822 = vmatpush1.xpose.msra.mxu0 0.0
    %823 = vmatprep.subr.mxu0 0.0
    %824 = vmatpush1.xpose.msra.mxu0 0.0
    %825 = vmatprep.subr.mxu0 0.0
    %826 = vmatpush1.xpose.msra.mxu0 0.0
    %827 = vmatprep.subr.mxu0 0.0
    %828 = vmatpush1.xpose.msra.mxu0 0.0
    %829 = vmatprep.subr.mxu0 0.0
    %830 = vmatpush1.xpose.msra.mxu0 0.0
    %831 = vmatprep.subr.mxu0 0.0
    %832 = vmatpush1.xpose.msra.mxu0 0.0
    %833 = vmatprep.subr.mxu0 0.0
    %834 = vmatpush1.xpose.msra.mxu0 0.0
    %835 = vmatprep.subr.mxu0 0.0
    %836 = vmatpush1.xpose.msra.mxu0 0.0
    %837 = vmatprep.subr.mxu0 0.0
    %838 = vmatpush1.xpose.msra.mxu0 0.0
    %839 = vmatprep.subr.mxu0 0.0
    %840 = vmatpush1.xpose.msra.mxu0 0.0
    %841 = vmatprep.subr.mxu0 0.0
    %842 = vmatpush1.xpose.msra.mxu0 %v809
    %843 = vmatprep.subr.mxu0 0.0
    %844 = vmatpush2.xpose.msra.mxu0 0.0
    %845 = vmatprep.subr.mxu0 0.0
    %846 = vmatpush2.xpose.msra.mxu0 0.0
    %847 = vmatprep.subr.mxu0 0.0
    %848 = vmatpush2.xpose.msra.mxu0 0.0
    %849 = vmatprep.subr.mxu0 0.0
    %850 = vmatpush2.xpose.msra.mxu0 0.0
    %851 = vmatprep.subr.mxu0 0.0
    %852 = vmatpush2.xpose.msra.mxu0 0.0
    %853 = vmatprep.subr.mxu0 0.0
    %854 = vmatpush2.xpose.msra.mxu0 0.0
    %855 = vmatprep.subr.mxu0 0.0
    %856 = vmatpush2.xpose.msra.mxu0 0.0
    %857 = vmatprep.subr.mxu0 0.0
    %858 = vmatpush2.xpose.msra.mxu0 0.0
    %859 = vmatprep.subr.mxu0 0.0
    %860 = vmatpush2.xpose.msra.mxu0 0.0
    %861 = vmatprep.subr.mxu0 0.0
    %862 = vmatpush2.xpose.msra.mxu0 0.0
    %863 = vmatprep.subr.mxu0 0.0
    %864 = vmatpush2.xpose.msra.mxu0 0.0
    %865 = vmatprep.subr.mxu0 0.0
    %866 = vmatpush2.xpose.msra.mxu0 0.0
    %867 = vmatprep.subr.mxu0 0.0
    %868 = vmatpush2.xpose.msra.mxu0 0.0
    %869 = vmatprep.subr.mxu0 0.0
    %870 = vmatpush2.xpose.msra.mxu0 0.0
    %871 = vmatprep.subr.mxu0 0.0
    %872 = vmatpush2.xpose.msra.mxu0 0.0
    %873 = vmatprep.subr.mxu0 0.0
    %874 = vmatpush2.xpose.msra.mxu0 0.0
    %875 = vmatprep.mubr.f32.mxu0 0.0
    %876 = vmatmul.mubr.f32.gmra.mxu0 %v807
    %v877 = vpop.f32.mrf.mxu0
    %v878 = vadd.f32 %v320, %v877
    %v879 = vpop.f32.mrf.mxu0
    %880 = vdwg.mxu0
    %v881 = vsel %vm397, %v878, -inf
    %882 = vmax.xlane.f32.xlu0 %v881
    %v883 = vpop.xlane.xlu0 %882
    %v884 = vsub.f32 %v878, %v883
    %v885 = vmul.f32 %v884, 1.442695
    %v886 = vpow.pop %v885
    %v887 = vsel %vm397, %v886, 0.0
    %888 = vadd.xlane.f32.xlu0 %v887
    %v889 = vpop.xlane.xlu0 %888
    %v890 = vrcp.pop %v889
    %v891 = vmul.f32 %v886, %v890
    %892 = vrot.lane.b32.xlu0 %v312, 64
    %v893 = vpop.permute.xlu0 %892
    %v896 = vsel %vm397, %v891, 0
    %898 = vmatprep.subr.mxu0 0.0
    %899 = vmatpush1.msra.mxu0 0.0
    %900 = vmatprep.subr.mxu0 0.0
    %901 = vmatpush1.msra.mxu0 0.0
    %902 = vmatprep.subr.mxu0 0.0
    %903 = vmatpush1.msra.mxu0 0.0
    %904 = vmatprep.subr.mxu0 0.0
    %905 = vmatpush1.msra.mxu0 0.0
    %906 = vmatprep.subr.mxu0 0.0
    %907 = vmatpush1.msra.mxu0 0.0
    %908 = vmatprep.subr.mxu0 0.0
    %909 = vmatpush1.msra.mxu0 0.0
    %910 = vmatprep.subr.mxu0 0.0
    %911 = vmatpush1.msra.mxu0 0.0
    %912 = vmatprep.subr.mxu0 0.0
    %913 = vmatpush1.msra.mxu0 0.0
    %914 = vmatprep.subr.mxu0 0.0
    %915 = vmatpush1.msra.mxu0 0.0
    %916 = vmatprep.subr.mxu0 0.0
    %917 = vmatpush1.msra.mxu0 0.0
    %918 = vmatprep.subr.mxu0 0.0
    %919 = vmatpush1.msra.mxu0 0.0
    %920 = vmatprep.subr.mxu0 0.0
    %921 = vmatpush1.msra.mxu0 0.0
    %922 = vmatprep.subr.mxu0 0.0
    %923 = vmatpush1.msra.mxu0 0.0
    %924 = vmatprep.subr.mxu0 0.0
    %925 = vmatpush1.msra.mxu0 0.0
    %926 = vmatprep.subr.mxu0 0.0
    %927 = vmatpush1.msra.mxu0 0.0
    %928 = vmatprep.subr.mxu0 0.0
    %929 = vmatpush1.msra.mxu0 %v893
    %930 = vmatprep.subr.mxu0 0.0
    %931 = vmatpush2.msra.mxu0 0.0
    %932 = vmatprep.subr.mxu0 0.0
    %933 = vmatpush2.msra.mxu0 0.0
    %934 = vmatprep.subr.mxu0 0.0
    %935 = vmatpush2.msra.mxu0 0.0
    %936 = vmatprep.subr.mxu0 0.0
    %937 = vmatpush2.msra.mxu0 0.0
    %938 = vmatprep.subr.mxu0 0.0
    %939 = vmatpush2.msra.mxu0 0.0
    %940 = vmatprep.subr.mxu0 0.0
    %941 = vmatpush2.msra.mxu0 0.0
    %942 = vmatprep.subr.mxu0 0.0
    %943 = vmatpush2.msra.mxu0 0.0
    %944 = vmatprep.subr.mxu0 0.0
    %945 = vmatpush2.msra.mxu0 0.0
    %946 = vmatprep.subr.mxu0 0.0
    %947 = vmatpush2.msra.mxu0 0.0
    %948 = vmatprep.subr.mxu0 0.0
    %949 = vmatpush2.msra.mxu0 0.0
    %950 = vmatprep.subr.mxu0 0.0
    %951 = vmatpush2.msra.mxu0 0.0
    %952 = vmatprep.subr.mxu0 0.0
    %953 = vmatpush2.msra.mxu0 0.0
    %954 = vmatprep.subr.mxu0 0.0
    %955 = vmatpush2.msra.mxu0 0.0
    %956 = vmatprep.subr.mxu0 0.0
    %957 = vmatpush2.msra.mxu0 0.0
    %958 = vmatprep.subr.mxu0 0.0
    %959 = vmatpush2.msra.mxu0 0.0
    %960 = vmatprep.subr.mxu0 0.0
    %961 = vmatpush2.msra.mxu0 0.0
    %962 = vmatprep.mubr.f32.mxu0 0.0
    %963 = vmatmul.mubr.f32.gmra.mxu0 %v896
    %v964 = vpop.f32.mrf.mxu0
    %v965 = vadd.f32 0.0, %v964
    %v966 = vpop.f32.mrf.mxu0
    %967 = vdwg.mxu0
    %s968 = scalar_lea.vmem [#allocation8], 64
    %v969 = vld [vmem:[%s968] sm:$0xff]
    %v970 = vld [vmem:[%s968 + $0x8] sm:$0xff]
    %v971 = vld [vmem:[%s968 + $0x10] sm:$0xff]
    %v972 = vld [vmem:[%s968 + $0x18] sm:$0xff]
    %v974 = vsel %vm161, %v965, 0
    %976 = vmatprep.subr.mxu0 0.0
    %977 = vmatpush1.msra.mxu0 0.0
    %978 = vmatprep.subr.mxu0 0.0
    %979 = vmatpush1.msra.mxu0 0.0
    %980 = vmatprep.subr.mxu0 0.0
    %981 = vmatpush1.msra.mxu0 0.0
    %982 = vmatprep.subr.mxu0 0.0
    %983 = vmatpush1.msra.mxu0 0.0
    %984 = vmatprep.subr.mxu0 0.0
    %985 = vmatpush1.msra.mxu0 0.0
    %986 = vmatprep.subr.mxu0 0.0
    %987 = vmatpush1.msra.mxu0 0.0
    %988 = vmatprep.subr.mxu0 0.0
    %989 = vmatpush1.msra.mxu0 0.0
    %990 = vmatprep.subr.mxu0 0.0
    %991 = vmatpush1.msra.mxu0 0.0
    %992 = vmatprep.subr.mxu0 0.0
    %993 = vmatpush1.msra.mxu0 0.0
    %994 = vmatprep.subr.mxu0 0.0
    %995 = vmatpush1.msra.mxu0 0.0
    %996 = vmatprep.subr.mxu0 0.0
    %997 = vmatpush1.msra.mxu0 0.0
    %998 = vmatprep.subr.mxu0 0.0
    %999 = vmatpush1.msra.mxu0 0.0
    %1000 = vmatprep.subr.mxu0 0.0
    %1001 = vmatpush1.msra.mxu0 %v972
    %1002 = vmatprep.subr.mxu0 0.0
    %1003 = vmatpush1.msra.mxu0 %v971
    %1004 = vmatprep.subr.mxu0 0.0
    %1005 = vmatpush1.msra.mxu0 %v970
    %1006 = vmatprep.subr.mxu0 0.0
    %1007 = vmatpush1.msra.mxu0 %v969
    %1008 = vmatprep.subr.mxu0 0.0
    %1009 = vmatpush2.msra.mxu0 0.0
    %1010 = vmatprep.subr.mxu0 0.0
    %1011 = vmatpush2.msra.mxu0 0.0
    %1012 = vmatprep.subr.mxu0 0.0
    %1013 = vmatpush2.msra.mxu0 0.0
    %1014 = vmatprep.subr.mxu0 0.0
    %1015 = vmatpush2.msra.mxu0 0.0
    %1016 = vmatprep.subr.mxu0 0.0
    %1017 = vmatpush2.msra.mxu0 0.0
    %1018 = vmatprep.subr.mxu0 0.0
    %1019 = vmatpush2.msra.mxu0 0.0
    %1020 = vmatprep.subr.mxu0 0.0
    %1021 = vmatpush2.msra.mxu0 0.0
    %1022 = vmatprep.subr.mxu0 0.0
    %1023 = vmatpush2.msra.mxu0 0.0
    %1024 = vmatprep.subr.mxu0 0.0
    %1025 = vmatpush2.msra.mxu0 0.0
    %1026 = vmatprep.subr.mxu0 0.0
    %1027 = vmatpush2.msra.mxu0 0.0
    %1028 = vmatprep.subr.mxu0 0.0
    %1029 = vmatpush2.msra.mxu0 0.0
    %1030 = vmatprep.subr.mxu0 0.0
    %1031 = vmatpush2.msra.mxu0 0.0
    %1032 = vmatprep.subr.mxu0 0.0
    %1033 = vmatpush2.msra.mxu0 0.0
    %1034 = vmatprep.subr.mxu0 0.0
    %1035 = vmatpush2.msra.mxu0 0.0
    %1036 = vmatprep.subr.mxu0 0.0
    %1037 = vmatpush2.msra.mxu0 0.0
    %1038 = vmatprep.subr.mxu0 0.0
    %1039 = vmatpush2.msra.mxu0 0.0
    %1040 = vmatprep.mubr.f32.mxu0 0.0
    %1041 = vmatmul.mubr.f32.gmra.mxu0 %v974
    %v1042 = vpop.f32.mrf.mxu0
    %v1043 = vadd.f32 0.0, %v1042
    %v1044 = vpop.f32.mrf.mxu0
    %1045 = vdwg.mxu0
    %v1046 = vadd.f32 %v800, %v1043
    %1047 = vrot.lane.b32.xlu0 %v235, 32
    %v1048 = vpop.permute.xlu0 %1047
    %1049 = vrot.lane.b32.xlu0 %v237, 32
    %v1050 = vpop.permute.xlu0 %1049
    %v1051 = vsel %vm161, %v1048, 0
    %v1053 = vsel %vm161, %v1050, 0
    %1055 = vmatprep.subr.mxu0 0.0
    %1056 = vmatpush1.xpose.msra.mxu0 0.0
    %1057 = vmatprep.subr.mxu0 0.0
    %1058 = vmatpush1.xpose.msra.mxu0 0.0
    %1059 = vmatprep.subr.mxu0 0.0
    %1060 = vmatpush1.xpose.msra.mxu0 0.0
    %1061 = vmatprep.subr.mxu0 0.0
    %1062 = vmatpush1.xpose.msra.mxu0 0.0
    %1063 = vmatprep.subr.mxu0 0.0
    %1064 = vmatpush1.xpose.msra.mxu0 0.0
    %1065 = vmatprep.subr.mxu0 0.0
    %1066 = vmatpush1.xpose.msra.mxu0 0.0
    %1067 = vmatprep.subr.mxu0 0.0
    %1068 = vmatpush1.xpose.msra.mxu0 0.0
    %1069 = vmatprep.subr.mxu0 0.0
    %1070 = vmatpush1.xpose.msra.mxu0 0.0
    %1071 = vmatprep.subr.mxu0 0.0
    %1072 = vmatpush1.xpose.msra.mxu0 0.0
    %1073 = vmatprep.subr.mxu0 0.0
    %1074 = vmatpush1.xpose.msra.mxu0 0.0
    %1075 = vmatprep.subr.mxu0 0.0
    %1076 = vmatpush1.xpose.msra.mxu0 0.0
    %1077 = vmatprep.subr.mxu0 0.0
    %1078 = vmatpush1.xpose.msra.mxu0 0.0
    %1079 = vmatprep.subr.mxu0 0.0
    %1080 = vmatpush1.xpose.msra.mxu0 0.0
    %1081 = vmatprep.subr.mxu0 0.0
    %1082 = vmatpush1.xpose.msra.mxu0 0.0
    %1083 = vmatprep.subr.mxu0 0.0
    %1084 = vmatpush1.xpose.msra.mxu0 0.0
    %1085 = vmatprep.subr.mxu0 0.0
    %1086 = vmatpush1.xpose.msra.mxu0 %v1053
    %1087 = vmatprep.subr.mxu0 0.0
    %1088 = vmatpush2.xpose.msra.mxu0 0.0
    %1089 = vmatprep.subr.mxu0 0.0
    %1090 = vmatpush2.xpose.msra.mxu0 0.0
    %1091 = vmatprep.subr.mxu0 0.0
    %1092 = vmatpush2.xpose.msra.mxu0 0.0
    %1093 = vmatprep.subr.mxu0 0.0
    %1094 = vmatpush2.xpose.msra.mxu0 0.0
    %1095 = vmatprep.subr.mxu0 0.0
    %1096 = vmatpush2.xpose.msra.mxu0 0.0
    %1097 = vmatprep.subr.mxu0 0.0
    %1098 = vmatpush2.xpose.msra.mxu0 0.0
    %1099 = vmatprep.subr.mxu0 0.0
    %1100 = vmatpush2.xpose.msra.mxu0 0.0
    %1101 = vmatprep.subr.mxu0 0.0
    %1102 = vmatpush2.xpose.msra.mxu0 0.0
    %1103 = vmatprep.subr.mxu0 0.0
    %1104 = vmatpush2.xpose.msra.mxu0 0.0
    %1105 = vmatprep.subr.mxu0 0.0
    %1106 = vmatpush2.xpose.msra.mxu0 0.0
    %1107 = vmatprep.subr.mxu0 0.0
    %1108 = vmatpush2.xpose.msra.mxu0 0.0
    %1109 = vmatprep.subr.mxu0 0.0
    %1110 = vmatpush2.xpose.msra.mxu0 0.0
    %1111 = vmatprep.subr.mxu0 0.0
    %1112 = vmatpush2.xpose.msra.mxu0 0.0
    %1113 = vmatprep.subr.mxu0 0.0
    %1114 = vmatpush2.xpose.msra.mxu0 0.0
    %1115 = vmatprep.subr.mxu0 0.0
    %1116 = vmatpush2.xpose.msra.mxu0 0.0
    %1117 = vmatprep.subr.mxu0 0.0
    %1118 = vmatpush2.xpose.msra.mxu0 0.0
    %1119 = vmatprep.mubr.f32.mxu0 0.0
    %1120 = vmatmul.mubr.f32.gmra.mxu0 %v1051
    %v1121 = vpop.f32.mrf.mxu0
    %v1122 = vadd.f32 %v320, %v1121
    %v1123 = vpop.f32.mrf.mxu0
    %1124 = vdwg.mxu0
    %v1125 = vsel %vm397, %v1122, -inf
    %1126 = vmax.xlane.f32.xlu0 %v1125
    %v1127 = vpop.xlane.xlu0 %1126
    %v1128 = vsub.f32 %v1122, %v1127
    %v1129 = vmul.f32 %v1128, 1.442695
    %v1130 = vpow.pop %v1129
    %v1131 = vsel %vm397, %v1130, 0.0
    %1132 = vadd.xlane.f32.xlu0 %v1131
    %v1133 = vpop.xlane.xlu0 %1132
    %v1134 = vrcp.pop %v1133
    %v1135 = vmul.f32 %v1130, %v1134
    %1136 = vrot.lane.b32.xlu0 %v312, 32
    %v1137 = vpop.permute.xlu0 %1136
    %v1140 = vsel %vm397, %v1135, 0
    %1142 = vmatprep.subr.mxu0 0.0
    %1143 = vmatpush1.msra.mxu0 0.0
    %1144 = vmatprep.subr.mxu0 0.0
    %1145 = vmatpush1.msra.mxu0 0.0
    %1146 = vmatprep.subr.mxu0 0.0
    %1147 = vmatpush1.msra.mxu0 0.0
    %1148 = vmatprep.subr.mxu0 0.0
    %1149 = vmatpush1.msra.mxu0 0.0
    %1150 = vmatprep.subr.mxu0 0.0
    %1151 = vmatpush1.msra.mxu0 0.0
    %1152 = vmatprep.subr.mxu0 0.0
    %1153 = vmatpush1.msra.mxu0 0.0
    %1154 = vmatprep.subr.mxu0 0.0
    %1155 = vmatpush1.msra.mxu0 0.0
    %1156 = vmatprep.subr.mxu0 0.0
    %1157 = vmatpush1.msra.mxu0 0.0
    %1158 = vmatprep.subr.mxu0 0.0
    %1159 = vmatpush1.msra.mxu0 0.0
    %1160 = vmatprep.subr.mxu0 0.0
    %1161 = vmatpush1.msra.mxu0 0.0
    %1162 = vmatprep.subr.mxu0 0.0
    %1163 = vmatpush1.msra.mxu0 0.0
    %1164 = vmatprep.subr.mxu0 0.0
    %1165 = vmatpush1.msra.mxu0 0.0
    %1166 = vmatprep.subr.mxu0 0.0
    %1167 = vmatpush1.msra.mxu0 0.0
    %1168 = vmatprep.subr.mxu0 0.0
    %1169 = vmatpush1.msra.mxu0 0.0
    %1170 = vmatprep.subr.mxu0 0.0
    %1171 = vmatpush1.msra.mxu0 0.0
    %1172 = vmatprep.subr.mxu0 0.0
    %1173 = vmatpush1.msra.mxu0 %v1137
    %1174 = vmatprep.subr.mxu0 0.0
    %1175 = vmatpush2.msra.mxu0 0.0
    %1176 = vmatprep.subr.mxu0 0.0
    %1177 = vmatpush2.msra.mxu0 0.0
    %1178 = vmatprep.subr.mxu0 0.0
    %1179 = vmatpush2.msra.mxu0 0.0
    %1180 = vmatprep.subr.mxu0 0.0
    %1181 = vmatpush2.msra.mxu0 0.0
    %1182 = vmatprep.subr.mxu0 0.0
    %1183 = vmatpush2.msra.mxu0 0.0
    %1184 = vmatprep.subr.mxu0 0.0
    %1185 = vmatpush2.msra.mxu0 0.0
    %1186 = vmatprep.subr.mxu0 0.0
    %1187 = vmatpush2.msra.mxu0 0.0
    %1188 = vmatprep.subr.mxu0 0.0
    %1189 = vmatpush2.msra.mxu0 0.0
    %1190 = vmatprep.subr.mxu0 0.0
    %1191 = vmatpush2.msra.mxu0 0.0
    %1192 = vmatprep.subr.mxu0 0.0
    %1193 = vmatpush2.msra.mxu0 0.0
    %1194 = vmatprep.subr.mxu0 0.0
    %1195 = vmatpush2.msra.mxu0 0.0
    %1196 = vmatprep.subr.mxu0 0.0
    %1197 = vmatpush2.msra.mxu0 0.0
    %1198 = vmatprep.subr.mxu0 0.0
    %1199 = vmatpush2.msra.mxu0 0.0
    %1200 = vmatprep.subr.mxu0 0.0
    %1201 = vmatpush2.msra.mxu0 0.0
    %1202 = vmatprep.subr.mxu0 0.0
    %1203 = vmatpush2.msra.mxu0 0.0
    %1204 = vmatprep.subr.mxu0 0.0
    %1205 = vmatpush2.msra.mxu0 0.0
    %1206 = vmatprep.mubr.f32.mxu0 0.0
    %1207 = vmatmul.mubr.f32.gmra.mxu0 %v1140
    %v1208 = vpop.f32.mrf.mxu0
    %v1209 = vadd.f32 0.0, %v1208
    %v1210 = vpop.f32.mrf.mxu0
    %1211 = vdwg.mxu0
    %s1212 = scalar_lea.vmem [#allocation8], 96
    %v1213 = vld [vmem:[%s1212] sm:$0xff]
    %v1214 = vld [vmem:[%s1212 + $0x8] sm:$0xff]
    %v1215 = vld [vmem:[%s1212 + $0x10] sm:$0xff]
    %v1216 = vld [vmem:[%s1212 + $0x18] sm:$0xff]
    %v1218 = vsel %vm161, %v1209, 0
    %1220 = vmatprep.subr.mxu0 0.0
    %1221 = vmatpush1.msra.mxu0 0.0
    %1222 = vmatprep.subr.mxu0 0.0
    %1223 = vmatpush1.msra.mxu0 0.0
    %1224 = vmatprep.subr.mxu0 0.0
    %1225 = vmatpush1.msra.mxu0 0.0
    %1226 = vmatprep.subr.mxu0 0.0
    %1227 = vmatpush1.msra.mxu0 0.0
    %1228 = vmatprep.subr.mxu0 0.0
    %1229 = vmatpush1.msra.mxu0 0.0
    %1230 = vmatprep.subr.mxu0 0.0
    %1231 = vmatpush1.msra.mxu0 0.0
    %1232 = vmatprep.subr.mxu0 0.0
    %1233 = vmatpush1.msra.mxu0 0.0
    %1234 = vmatprep.subr.mxu0 0.0
    %1235 = vmatpush1.msra.mxu0 0.0
    %1236 = vmatprep.subr.mxu0 0.0
    %1237 = vmatpush1.msra.mxu0 0.0
    %1238 = vmatprep.subr.mxu0 0.0
    %1239 = vmatpush1.msra.mxu0 0.0
    %1240 = vmatprep.subr.mxu0 0.0
    %1241 = vmatpush1.msra.mxu0 0.0
    %1242 = vmatprep.subr.mxu0 0.0
    %1243 = vmatpush1.msra.mxu0 0.0
    %1244 = vmatprep.subr.mxu0 0.0
    %1245 = vmatpush1.msra.mxu0 %v1216
    %1246 = vmatprep.subr.mxu0 0.0
    %1247 = vmatpush1.msra.mxu0 %v1215
    %1248 = vmatprep.subr.mxu0 0.0
    %1249 = vmatpush1.msra.mxu0 %v1214
    %1250 = vmatprep.subr.mxu0 0.0
    %1251 = vmatpush1.msra.mxu0 %v1213
    %1252 = vmatprep.subr.mxu0 0.0
    %1253 = vmatpush2.msra.mxu0 0.0
    %1254 = vmatprep.subr.mxu0 0.0
    %1255 = vmatpush2.msra.mxu0 0.0
    %1256 = vmatprep.subr.mxu0 0.0
    %1257 = vmatpush2.msra.mxu0 0.0
    %1258 = vmatprep.subr.mxu0 0.0
    %1259 = vmatpush2.msra.mxu0 0.0
    %1260 = vmatprep.subr.mxu0 0.0
    %1261 = vmatpush2.msra.mxu0 0.0
    %1262 = vmatprep.subr.mxu0 0.0
    %1263 = vmatpush2.msra.mxu0 0.0
    %1264 = vmatprep.subr.mxu0 0.0
    %1265 = vmatpush2.msra.mxu0 0.0
    %1266 = vmatprep.subr.mxu0 0.0
    %1267 = vmatpush2.msra.mxu0 0.0
    %1268 = vmatprep.subr.mxu0 0.0
    %1269 = vmatpush2.msra.mxu0 0.0
    %1270 = vmatprep.subr.mxu0 0.0
    %1271 = vmatpush2.msra.mxu0 0.0
    %1272 = vmatprep.subr.mxu0 0.0
    %1273 = vmatpush2.msra.mxu0 0.0
    %1274 = vmatprep.subr.mxu0 0.0
    %1275 = vmatpush2.msra.mxu0 0.0
    %1276 = vmatprep.subr.mxu0 0.0
    %1277 = vmatpush2.msra.mxu0 0.0
    %1278 = vmatprep.subr.mxu0 0.0
    %1279 = vmatpush2.msra.mxu0 0.0
    %1280 = vmatprep.subr.mxu0 0.0
    %1281 = vmatpush2.msra.mxu0 0.0
    %1282 = vmatprep.subr.mxu0 0.0
    %1283 = vmatpush2.msra.mxu0 0.0
    %1284 = vmatprep.mubr.f32.mxu0 0.0
    %1285 = vmatmul.mubr.f32.gmra.mxu0 %v1218
    %v1286 = vpop.f32.mrf.mxu0
    %v1287 = vadd.f32 0.0, %v1286
    %v1288 = vpop.f32.mrf.mxu0
    %1289 = vdwg.mxu0
    %v1290 = vadd.f32 %v1046, %v1287
    %s1291 = scalar_lea.vmem [#allocation5], 8
    %v1292 = vld [vmem:[%s1291] sm:$0xff]
    %v1294 = vsel %vm161, %v241, 0
    %v1297 = vsel %vm161, %v243, 0
    %1299 = vmatprep.subr.mxu0 0.0
    %1300 = vmatpush1.xpose.msra.mxu0 0.0
    %1301 = vmatprep.subr.mxu0 0.0
    %1302 = vmatpush1.xpose.msra.mxu0 0.0
    %1303 = vmatprep.subr.mxu0 0.0
    %1304 = vmatpush1.xpose.msra.mxu0 0.0
    %1305 = vmatprep.subr.mxu0 0.0
    %1306 = vmatpush1.xpose.msra.mxu0 0.0
    %1307 = vmatprep.subr.mxu0 0.0
    %1308 = vmatpush1.xpose.msra.mxu0 0.0
    %1309 = vmatprep.subr.mxu0 0.0
    %1310 = vmatpush1.xpose.msra.mxu0 0.0
    %1311 = vmatprep.subr.mxu0 0.0
    %1312 = vmatpush1.xpose.msra.mxu0 0.0
    %1313 = vmatprep.subr.mxu0 0.0
    %1314 = vmatpush1.xpose.msra.mxu0 0.0
    %1315 = vmatprep.subr.mxu0 0.0
    %1316 = vmatpush1.xpose.msra.mxu0 0.0
    %1317 = vmatprep.subr.mxu0 0.0
    %1318 = vmatpush1.xpose.msra.mxu0 0.0
    %1319 = vmatprep.subr.mxu0 0.0
    %1320 = vmatpush1.xpose.msra.mxu0 0.0
    %1321 = vmatprep.subr.mxu0 0.0
    %1322 = vmatpush1.xpose.msra.mxu0 0.0
    %1323 = vmatprep.subr.mxu0 0.0
    %1324 = vmatpush1.xpose.msra.mxu0 0.0
    %1325 = vmatprep.subr.mxu0 0.0
    %1326 = vmatpush1.xpose.msra.mxu0 0.0
    %1327 = vmatprep.subr.mxu0 0.0
    %1328 = vmatpush1.xpose.msra.mxu0 0.0
    %1329 = vmatprep.subr.mxu0 0.0
    %1330 = vmatpush1.xpose.msra.mxu0 %v1297
    %1331 = vmatprep.subr.mxu0 0.0
    %1332 = vmatpush2.xpose.msra.mxu0 0.0
    %1333 = vmatprep.subr.mxu0 0.0
    %1334 = vmatpush2.xpose.msra.mxu0 0.0
    %1335 = vmatprep.subr.mxu0 0.0
    %1336 = vmatpush2.xpose.msra.mxu0 0.0
    %1337 = vmatprep.subr.mxu0 0.0
    %1338 = vmatpush2.xpose.msra.mxu0 0.0
    %1339 = vmatprep.subr.mxu0 0.0
    %1340 = vmatpush2.xpose.msra.mxu0 0.0
    %1341 = vmatprep.subr.mxu0 0.0
    %1342 = vmatpush2.xpose.msra.mxu0 0.0
    %1343 = vmatprep.subr.mxu0 0.0
    %1344 = vmatpush2.xpose.msra.mxu0 0.0
    %1345 = vmatprep.subr.mxu0 0.0
    %1346 = vmatpush2.xpose.msra.mxu0 0.0
    %1347 = vmatprep.subr.mxu0 0.0
    %1348 = vmatpush2.xpose.msra.mxu0 0.0
    %1349 = vmatprep.subr.mxu0 0.0
    %1350 = vmatpush2.xpose.msra.mxu0 0.0
    %1351 = vmatprep.subr.mxu0 0.0
    %1352 = vmatpush2.xpose.msra.mxu0 0.0
    %1353 = vmatprep.subr.mxu0 0.0
    %1354 = vmatpush2.xpose.msra.mxu0 0.0
    %1355 = vmatprep.subr.mxu0 0.0
    %1356 = vmatpush2.xpose.msra.mxu0 0.0
    %1357 = vmatprep.subr.mxu0 0.0
    %1358 = vmatpush2.xpose.msra.mxu0 0.0
    %1359 = vmatprep.subr.mxu0 0.0
    %1360 = vmatpush2.xpose.msra.mxu0 0.0
    %1361 = vmatprep.subr.mxu0 0.0
    %1362 = vmatpush2.xpose.msra.mxu0 0.0
    %1363 = vmatprep.mubr.f32.mxu0 0.0
    %1364 = vmatmul.mubr.f32.gmra.mxu0 %v1294
    %v1365 = vpop.f32.mrf.mxu0
    %v1366 = vadd.f32 %v1292, %v1365
    %v1367 = vpop.f32.mrf.mxu0
    %1368 = vdwg.mxu0
    %v1369 = vsel %vm397, %v1366, -inf
    %1370 = vmax.xlane.f32.xlu0 %v1369
    %v1371 = vpop.xlane.xlu0 %1370
    %v1372 = vsub.f32 %v1366, %v1371
    %v1373 = vmul.f32 %v1372, 1.442695
    %v1374 = vpow.pop %v1373
    %v1375 = vsel %vm397, %v1374, 0.0
    %1376 = vadd.xlane.f32.xlu0 %v1375
    %v1377 = vpop.xlane.xlu0 %1376
    %v1378 = vrcp.pop %v1377
    %v1379 = vmul.f32 %v1374, %v1378
    %v1381 = vsel %vm397, %v1379, 0
    %1383 = vmatprep.subr.mxu0 0.0
    %1384 = vmatpush1.msra.mxu0 0.0
    %1385 = vmatprep.subr.mxu0 0.0
    %1386 = vmatpush1.msra.mxu0 0.0
    %1387 = vmatprep.subr.mxu0 0.0
    %1388 = vmatpush1.msra.mxu0 0.0
    %1389 = vmatprep.subr.mxu0 0.0
    %1390 = vmatpush1.msra.mxu0 0.0
    %1391 = vmatprep.subr.mxu0 0.0
    %1392 = vmatpush1.msra.mxu0 0.0
    %1393 = vmatprep.subr.mxu0 0.0
    %1394 = vmatpush1.msra.mxu0 0.0
    %1395 = vmatprep.subr.mxu0 0.0
    %1396 = vmatpush1.msra.mxu0 0.0
    %1397 = vmatprep.subr.mxu0 0.0
    %1398 = vmatpush1.msra.mxu0 0.0
    %1399 = vmatprep.subr.mxu0 0.0
    %1400 = vmatpush1.msra.mxu0 0.0
    %1401 = vmatprep.subr.mxu0 0.0
    %1402 = vmatpush1.msra.mxu0 0.0
    %1403 = vmatprep.subr.mxu0 0.0
    %1404 = vmatpush1.msra.mxu0 0.0
    %1405 = vmatprep.subr.mxu0 0.0
    %1406 = vmatpush1.msra.mxu0 0.0
    %1407 = vmatprep.subr.mxu0 0.0
    %1408 = vmatpush1.msra.mxu0 0.0
    %1409 = vmatprep.subr.mxu0 0.0
    %1410 = vmatpush1.msra.mxu0 0.0
    %1411 = vmatprep.subr.mxu0 0.0
    %1412 = vmatpush1.msra.mxu0 0.0
    %1413 = vmatprep.subr.mxu0 0.0
    %1414 = vmatpush1.msra.mxu0 %v317
    %1415 = vmatprep.subr.mxu0 0.0
    %1416 = vmatpush2.msra.mxu0 0.0
    %1417 = vmatprep.subr.mxu0 0.0
    %1418 = vmatpush2.msra.mxu0 0.0
    %1419 = vmatprep.subr.mxu0 0.0
    %1420 = vmatpush2.msra.mxu0 0.0
    %1421 = vmatprep.subr.mxu0 0.0
    %1422 = vmatpush2.msra.mxu0 0.0
    %1423 = vmatprep.subr.mxu0 0.0
    %1424 = vmatpush2.msra.mxu0 0.0
    %1425 = vmatprep.subr.mxu0 0.0
    %1426 = vmatpush2.msra.mxu0 0.0
    %1427 = vmatprep.subr.mxu0 0.0
    %1428 = vmatpush2.msra.mxu0 0.0
    %1429 = vmatprep.subr.mxu0 0.0
    %1430 = vmatpush2.msra.mxu0 0.0
    %1431 = vmatprep.subr.mxu0 0.0
    %1432 = vmatpush2.msra.mxu0 0.0
    %1433 = vmatprep.subr.mxu0 0.0
    %1434 = vmatpush2.msra.mxu0 0.0
    %1435 = vmatprep.subr.mxu0 0.0
    %1436 = vmatpush2.msra.mxu0 0.0
    %1437 = vmatprep.subr.mxu0 0.0
    %1438 = vmatpush2.msra.mxu0 0.0
    %1439 = vmatprep.subr.mxu0 0.0
    %1440 = vmatpush2.msra.mxu0 0.0
    %1441 = vmatprep.subr.mxu0 0.0
    %1442 = vmatpush2.msra.mxu0 0.0
    %1443 = vmatprep.subr.mxu0 0.0
    %1444 = vmatpush2.msra.mxu0 0.0
    %1445 = vmatprep.subr.mxu0 0.0
    %1446 = vmatpush2.msra.mxu0 0.0
    %1447 = vmatprep.mubr.f32.mxu0 0.0
    %1448 = vmatmul.mubr.f32.gmra.mxu0 %v1381
    %v1449 = vpop.f32.mrf.mxu0
    %v1450 = vadd.f32 0.0, %v1449
    %v1451 = vpop.f32.mrf.mxu0
    %1452 = vdwg.mxu0
    %1453 = vrot.lane.b32.xlu0 %v241, 96
    %v1454 = vpop.permute.xlu0 %1453
    %1455 = vrot.lane.b32.xlu0 %v243, 96
    %v1456 = vpop.permute.xlu0 %1455
    %v1457 = vsel %vm161, %v1454, 0
    %v1459 = vsel %vm161, %v1456, 0
    %1461 = vmatprep.subr.mxu0 0.0
    %1462 = vmatpush1.xpose.msra.mxu0 0.0
    %1463 = vmatprep.subr.mxu0 0.0
    %1464 = vmatpush1.xpose.msra.mxu0 0.0
    %1465 = vmatprep.subr.mxu0 0.0
    %1466 = vmatpush1.xpose.msra.mxu0 0.0
    %1467 = vmatprep.subr.mxu0 0.0
    %1468 = vmatpush1.xpose.msra.mxu0 0.0
    %1469 = vmatprep.subr.mxu0 0.0
    %1470 = vmatpush1.xpose.msra.mxu0 0.0
    %1471 = vmatprep.subr.mxu0 0.0
    %1472 = vmatpush1.xpose.msra.mxu0 0.0
    %1473 = vmatprep.subr.mxu0 0.0
    %1474 = vmatpush1.xpose.msra.mxu0 0.0
    %1475 = vmatprep.subr.mxu0 0.0
    %1476 = vmatpush1.xpose.msra.mxu0 0.0
    %1477 = vmatprep.subr.mxu0 0.0
    %1478 = vmatpush1.xpose.msra.mxu0 0.0
    %1479 = vmatprep.subr.mxu0 0.0
    %1480 = vmatpush1.xpose.msra.mxu0 0.0
    %1481 = vmatprep.subr.mxu0 0.0
    %1482 = vmatpush1.xpose.msra.mxu0 0.0
    %1483 = vmatprep.subr.mxu0 0.0
    %1484 = vmatpush1.xpose.msra.mxu0 0.0
    %1485 = vmatprep.subr.mxu0 0.0
    %1486 = vmatpush1.xpose.msra.mxu0 0.0
    %1487 = vmatprep.subr.mxu0 0.0
    %1488 = vmatpush1.xpose.msra.mxu0 0.0
    %1489 = vmatprep.subr.mxu0 0.0
    %1490 = vmatpush1.xpose.msra.mxu0 0.0
    %1491 = vmatprep.subr.mxu0 0.0
    %1492 = vmatpush1.xpose.msra.mxu0 %v1459
    %1493 = vmatprep.subr.mxu0 0.0
    %1494 = vmatpush2.xpose.msra.mxu0 0.0
    %1495 = vmatprep.subr.mxu0 0.0
    %1496 = vmatpush2.xpose.msra.mxu0 0.0
    %1497 = vmatprep.subr.mxu0 0.0
    %1498 = vmatpush2.xpose.msra.mxu0 0.0
    %1499 = vmatprep.subr.mxu0 0.0
    %1500 = vmatpush2.xpose.msra.mxu0 0.0
    %1501 = vmatprep.subr.mxu0 0.0
    %1502 = vmatpush2.xpose.msra.mxu0 0.0
    %1503 = vmatprep.subr.mxu0 0.0
    %1504 = vmatpush2.xpose.msra.mxu0 0.0
    %1505 = vmatprep.subr.mxu0 0.0
    %1506 = vmatpush2.xpose.msra.mxu0 0.0
    %1507 = vmatprep.subr.mxu0 0.0
    %1508 = vmatpush2.xpose.msra.mxu0 0.0
    %1509 = vmatprep.subr.mxu0 0.0
    %1510 = vmatpush2.xpose.msra.mxu0 0.0
    %1511 = vmatprep.subr.mxu0 0.0
    %1512 = vmatpush2.xpose.msra.mxu0 0.0
    %1513 = vmatprep.subr.mxu0 0.0
    %1514 = vmatpush2.xpose.msra.mxu0 0.0
    %1515 = vmatprep.subr.mxu0 0.0
    %1516 = vmatpush2.xpose.msra.mxu0 0.0
    %1517 = vmatprep.subr.mxu0 0.0
    %1518 = vmatpush2.xpose.msra.mxu0 0.0
    %1519 = vmatprep.subr.mxu0 0.0
    %1520 = vmatpush2.xpose.msra.mxu0 0.0
    %1521 = vmatprep.subr.mxu0 0.0
    %1522 = vmatpush2.xpose.msra.mxu0 0.0
    %1523 = vmatprep.subr.mxu0 0.0
    %1524 = vmatpush2.xpose.msra.mxu0 0.0
    %1525 = vmatprep.mubr.f32.mxu0 0.0
    %1526 = vmatmul.mubr.f32.gmra.mxu0 %v1457
    %v1527 = vpop.f32.mrf.mxu0
    %v1528 = vadd.f32 %v1292, %v1527
    %v1529 = vpop.f32.mrf.mxu0
    %1530 = vdwg.mxu0
    %v1531 = vsel %vm397, %v1528, -inf
    %1532 = vmax.xlane.f32.xlu0 %v1531
    %v1533 = vpop.xlane.xlu0 %1532
    %v1534 = vsub.f32 %v1528, %v1533
    %v1535 = vmul.f32 %v1534, 1.442695
    %v1536 = vpow.pop %v1535
    %v1537 = vsel %vm397, %v1536, 0.0
    %1538 = vadd.xlane.f32.xlu0 %v1537
    %v1539 = vpop.xlane.xlu0 %1538
    %v1540 = vrcp.pop %v1539
    %v1541 = vmul.f32 %v1536, %v1540
    %1543 = vrot.lane.b32.xlu0 %v317, 96
    %v1544 = vpop.permute.xlu0 %1543
    %v1547 = vsel %vm397, %v1541, 0
    %1549 = vmatprep.subr.mxu0 0.0
    %1550 = vmatpush1.msra.mxu0 0.0
    %1551 = vmatprep.subr.mxu0 0.0
    %1552 = vmatpush1.msra.mxu0 0.0
    %1553 = vmatprep.subr.mxu0 0.0
    %1554 = vmatpush1.msra.mxu0 0.0
    %1555 = vmatprep.subr.mxu0 0.0
    %1556 = vmatpush1.msra.mxu0 0.0
    %1557 = vmatprep.subr.mxu0 0.0
    %1558 = vmatpush1.msra.mxu0 0.0
    %1559 = vmatprep.subr.mxu0 0.0
    %1560 = vmatpush1.msra.mxu0 0.0
    %1561 = vmatprep.subr.mxu0 0.0
    %1562 = vmatpush1.msra.mxu0 0.0
    %1563 = vmatprep.subr.mxu0 0.0
    %1564 = vmatpush1.msra.mxu0 0.0
    %1565 = vmatprep.subr.mxu0 0.0
    %1566 = vmatpush1.msra.mxu0 0.0
    %1567 = vmatprep.subr.mxu0 0.0
    %1568 = vmatpush1.msra.mxu0 0.0
    %1569 = vmatprep.subr.mxu0 0.0
    %1570 = vmatpush1.msra.mxu0 0.0
    %1571 = vmatprep.subr.mxu0 0.0
    %1572 = vmatpush1.msra.mxu0 0.0
    %1573 = vmatprep.subr.mxu0 0.0
    %1574 = vmatpush1.msra.mxu0 0.0
    %1575 = vmatprep.subr.mxu0 0.0
    %1576 = vmatpush1.msra.mxu0 0.0
    %1577 = vmatprep.subr.mxu0 0.0
    %1578 = vmatpush1.msra.mxu0 0.0
    %1579 = vmatprep.subr.mxu0 0.0
    %1580 = vmatpush1.msra.mxu0 %v1544
    %1581 = vmatprep.subr.mxu0 0.0
    %1582 = vmatpush2.msra.mxu0 0.0
    %1583 = vmatprep.subr.mxu0 0.0
    %1584 = vmatpush2.msra.mxu0 0.0
    %1585 = vmatprep.subr.mxu0 0.0
    %1586 = vmatpush2.msra.mxu0 0.0
    %1587 = vmatprep.subr.mxu0 0.0
    %1588 = vmatpush2.msra.mxu0 0.0
    %1589 = vmatprep.subr.mxu0 0.0
    %1590 = vmatpush2.msra.mxu0 0.0
    %1591 = vmatprep.subr.mxu0 0.0
    %1592 = vmatpush2.msra.mxu0 0.0
    %1593 = vmatprep.subr.mxu0 0.0
    %1594 = vmatpush2.msra.mxu0 0.0
    %1595 = vmatprep.subr.mxu0 0.0
    %1596 = vmatpush2.msra.mxu0 0.0
    %1597 = vmatprep.subr.mxu0 0.0
    %1598 = vmatpush2.msra.mxu0 0.0
    %1599 = vmatprep.subr.mxu0 0.0
    %1600 = vmatpush2.msra.mxu0 0.0
    %1601 = vmatprep.subr.mxu0 0.0
    %1602 = vmatpush2.msra.mxu0 0.0
    %1603 = vmatprep.subr.mxu0 0.0
    %1604 = vmatpush2.msra.mxu0 0.0
    %1605 = vmatprep.subr.mxu0 0.0
    %1606 = vmatpush2.msra.mxu0 0.0
    %1607 = vmatprep.subr.mxu0 0.0
    %1608 = vmatpush2.msra.mxu0 0.0
    %1609 = vmatprep.subr.mxu0 0.0
    %1610 = vmatpush2.msra.mxu0 0.0
    %1611 = vmatprep.subr.mxu0 0.0
    %1612 = vmatpush2.msra.mxu0 0.0
    %1613 = vmatprep.mubr.f32.mxu0 0.0
    %1614 = vmatmul.mubr.f32.gmra.mxu0 %v1547
    %v1615 = vpop.f32.mrf.mxu0
    %v1616 = vadd.f32 0.0, %v1615
    %v1617 = vpop.f32.mrf.mxu0
    %1618 = vdwg.mxu0
    %v1620 = vsel %vm161, %v1616, 0
    %1622 = vmatprep.subr.mxu0 0.0
    %1623 = vmatpush1.msra.mxu0 0.0
    %1624 = vmatprep.subr.mxu0 0.0
    %1625 = vmatpush1.msra.mxu0 0.0
    %1626 = vmatprep.subr.mxu0 0.0
    %1627 = vmatpush1.msra.mxu0 0.0
    %1628 = vmatprep.subr.mxu0 0.0
    %1629 = vmatpush1.msra.mxu0 0.0
    %1630 = vmatprep.subr.mxu0 0.0
    %1631 = vmatpush1.msra.mxu0 0.0
    %1632 = vmatprep.subr.mxu0 0.0
    %1633 = vmatpush1.msra.mxu0 0.0
    %1634 = vmatprep.subr.mxu0 0.0
    %1635 = vmatpush1.msra.mxu0 0.0
    %1636 = vmatprep.subr.mxu0 0.0
    %1637 = vmatpush1.msra.mxu0 0.0
    %1638 = vmatprep.subr.mxu0 0.0
    %1639 = vmatpush1.msra.mxu0 0.0
    %1640 = vmatprep.subr.mxu0 0.0
    %1641 = vmatpush1.msra.mxu0 0.0
    %1642 = vmatprep.subr.mxu0 0.0
    %1643 = vmatpush1.msra.mxu0 0.0
    %1644 = vmatprep.subr.mxu0 0.0
    %1645 = vmatpush1.msra.mxu0 0.0
    %1646 = vmatprep.subr.mxu0 0.0
    %1647 = vmatpush1.msra.mxu0 %v656
    %1648 = vmatprep.subr.mxu0 0.0
    %1649 = vmatpush1.msra.mxu0 %v655
    %1650 = vmatprep.subr.mxu0 0.0
    %1651 = vmatpush1.msra.mxu0 %v654
    %1652 = vmatprep.subr.mxu0 0.0
    %1653 = vmatpush1.msra.mxu0 %v653
    %1654 = vmatprep.subr.mxu0 0.0
    %1655 = vmatpush2.msra.mxu0 0.0
    %1656 = vmatprep.subr.mxu0 0.0
    %1657 = vmatpush2.msra.mxu0 0.0
    %1658 = vmatprep.subr.mxu0 0.0
    %1659 = vmatpush2.msra.mxu0 0.0
    %1660 = vmatprep.subr.mxu0 0.0
    %1661 = vmatpush2.msra.mxu0 0.0
    %1662 = vmatprep.subr.mxu0 0.0
    %1663 = vmatpush2.msra.mxu0 0.0
    %1664 = vmatprep.subr.mxu0 0.0
    %1665 = vmatpush2.msra.mxu0 0.0
    %1666 = vmatprep.subr.mxu0 0.0
    %1667 = vmatpush2.msra.mxu0 0.0
    %1668 = vmatprep.subr.mxu0 0.0
    %1669 = vmatpush2.msra.mxu0 0.0
    %1670 = vmatprep.subr.mxu0 0.0
    %1671 = vmatpush2.msra.mxu0 0.0
    %1672 = vmatprep.subr.mxu0 0.0
    %1673 = vmatpush2.msra.mxu0 0.0
    %1674 = vmatprep.subr.mxu0 0.0
    %1675 = vmatpush2.msra.mxu0 0.0
    %1676 = vmatprep.subr.mxu0 0.0
    %1677 = vmatpush2.msra.mxu0 0.0
    %1678 = vmatprep.subr.mxu0 0.0
    %1679 = vmatpush2.msra.mxu0 0.0
    %1680 = vmatprep.subr.mxu0 0.0
    %1681 = vmatpush2.msra.mxu0 0.0
    %1682 = vmatprep.subr.mxu0 0.0
    %1683 = vmatpush2.msra.mxu0 0.0
    %1684 = vmatprep.subr.mxu0 0.0
    %1685 = vmatpush2.msra.mxu0 0.0
    %1686 = vmatprep.mubr.f32.mxu0 0.0
    %1687 = vmatmul.mubr.f32.gmra.mxu0 %v1620
    %v1688 = vpop.f32.mrf.mxu0
    %v1689 = vadd.f32 0.0, %v1688
    %v1690 = vpop.f32.mrf.mxu0
    %1691 = vdwg.mxu0
    %v1693 = vsel %vm161, %v1450, 0
    %1695 = vmatprep.subr.mxu0 0.0
    %1696 = vmatpush1.msra.mxu0 0.0
    %1697 = vmatprep.subr.mxu0 0.0
    %1698 = vmatpush1.msra.mxu0 0.0
    %1699 = vmatprep.subr.mxu0 0.0
    %1700 = vmatpush1.msra.mxu0 0.0
    %1701 = vmatprep.subr.mxu0 0.0
    %1702 = vmatpush1.msra.mxu0 0.0
    %1703 = vmatprep.subr.mxu0 0.0
    %1704 = vmatpush1.msra.mxu0 0.0
    %1705 = vmatprep.subr.mxu0 0.0
    %1706 = vmatpush1.msra.mxu0 0.0
    %1707 = vmatprep.subr.mxu0 0.0
    %1708 = vmatpush1.msra.mxu0 0.0
    %1709 = vmatprep.subr.mxu0 0.0
    %1710 = vmatpush1.msra.mxu0 0.0
    %1711 = vmatprep.subr.mxu0 0.0
    %1712 = vmatpush1.msra.mxu0 0.0
    %1713 = vmatprep.subr.mxu0 0.0
    %1714 = vmatpush1.msra.mxu0 0.0
    %1715 = vmatprep.subr.mxu0 0.0
    %1716 = vmatpush1.msra.mxu0 0.0
    %1717 = vmatprep.subr.mxu0 0.0
    %1718 = vmatpush1.msra.mxu0 0.0
    %1719 = vmatprep.subr.mxu0 0.0
    %1720 = vmatpush1.msra.mxu0 %v485
    %1721 = vmatprep.subr.mxu0 0.0
    %1722 = vmatpush1.msra.mxu0 %v484
    %1723 = vmatprep.subr.mxu0 0.0
    %1724 = vmatpush1.msra.mxu0 %v483
    %1725 = vmatprep.subr.mxu0 0.0
    %1726 = vmatpush1.msra.mxu0 %v482
    %1727 = vmatprep.subr.mxu0 0.0
    %1728 = vmatpush2.msra.mxu0 0.0
    %1729 = vmatprep.subr.mxu0 0.0
    %1730 = vmatpush2.msra.mxu0 0.0
    %1731 = vmatprep.subr.mxu0 0.0
    %1732 = vmatpush2.msra.mxu0 0.0
    %1733 = vmatprep.subr.mxu0 0.0
    %1734 = vmatpush2.msra.mxu0 0.0
    %1735 = vmatprep.subr.mxu0 0.0
    %1736 = vmatpush2.msra.mxu0 0.0
    %1737 = vmatprep.subr.mxu0 0.0
    %1738 = vmatpush2.msra.mxu0 0.0
    %1739 = vmatprep.subr.mxu0 0.0
    %1740 = vmatpush2.msra.mxu0 0.0
    %1741 = vmatprep.subr.mxu0 0.0
    %1742 = vmatpush2.msra.mxu0 0.0
    %1743 = vmatprep.subr.mxu0 0.0
    %1744 = vmatpush2.msra.mxu0 0.0
    %1745 = vmatprep.subr.mxu0 0.0
    %1746 = vmatpush2.msra.mxu0 0.0
    %1747 = vmatprep.subr.mxu0 0.0
    %1748 = vmatpush2.msra.mxu0 0.0
    %1749 = vmatprep.subr.mxu0 0.0
    %1750 = vmatpush2.msra.mxu0 0.0
    %1751 = vmatprep.subr.mxu0 0.0
    %1752 = vmatpush2.msra.mxu0 0.0
    %1753 = vmatprep.subr.mxu0 0.0
    %1754 = vmatpush2.msra.mxu0 0.0
    %1755 = vmatprep.subr.mxu0 0.0
    %1756 = vmatpush2.msra.mxu0 0.0
    %1757 = vmatprep.subr.mxu0 0.0
    %1758 = vmatpush2.msra.mxu0 0.0
    %1759 = vmatprep.mubr.f32.mxu0 0.0
    %1760 = vmatmul.mubr.f32.gmra.mxu0 %v1693
    %v1761 = vpop.f32.mrf.mxu0
    %v1762 = vadd.f32 %v1689, %v1761
    %v1763 = vpop.f32.mrf.mxu0
    %1764 = vdwg.mxu0
    %1765 = vrot.lane.b32.xlu0 %v241, 64
    %v1766 = vpop.permute.xlu0 %1765
    %1767 = vrot.lane.b32.xlu0 %v243, 64
    %v1768 = vpop.permute.xlu0 %1767
    %v1769 = vsel %vm161, %v1766, 0
    %v1771 = vsel %vm161, %v1768, 0
    %1773 = vmatprep.subr.mxu0 0.0
    %1774 = vmatpush1.xpose.msra.mxu0 0.0
    %1775 = vmatprep.subr.mxu0 0.0
    %1776 = vmatpush1.xpose.msra.mxu0 0.0
    %1777 = vmatprep.subr.mxu0 0.0
    %1778 = vmatpush1.xpose.msra.mxu0 0.0
    %1779 = vmatprep.subr.mxu0 0.0
    %1780 = vmatpush1.xpose.msra.mxu0 0.0
    %1781 = vmatprep.subr.mxu0 0.0
    %1782 = vmatpush1.xpose.msra.mxu0 0.0
    %1783 = vmatprep.subr.mxu0 0.0
    %1784 = vmatpush1.xpose.msra.mxu0 0.0
    %1785 = vmatprep.subr.mxu0 0.0
    %1786 = vmatpush1.xpose.msra.mxu0 0.0
    %1787 = vmatprep.subr.mxu0 0.0
    %1788 = vmatpush1.xpose.msra.mxu0 0.0
    %1789 = vmatprep.subr.mxu0 0.0
    %1790 = vmatpush1.xpose.msra.mxu0 0.0
    %1791 = vmatprep.subr.mxu0 0.0
    %1792 = vmatpush1.xpose.msra.mxu0 0.0
    %1793 = vmatprep.subr.mxu0 0.0
    %1794 = vmatpush1.xpose.msra.mxu0 0.0
    %1795 = vmatprep.subr.mxu0 0.0
    %1796 = vmatpush1.xpose.msra.mxu0 0.0
    %1797 = vmatprep.subr.mxu0 0.0
    %1798 = vmatpush1.xpose.msra.mxu0 0.0
    %1799 = vmatprep.subr.mxu0 0.0
    %1800 = vmatpush1.xpose.msra.mxu0 0.0
    %1801 = vmatprep.subr.mxu0 0.0
    %1802 = vmatpush1.xpose.msra.mxu0 0.0
    %1803 = vmatprep.subr.mxu0 0.0
    %1804 = vmatpush1.xpose.msra.mxu0 %v1771
    %1805 = vmatprep.subr.mxu0 0.0
    %1806 = vmatpush2.xpose.msra.mxu0 0.0
    %1807 = vmatprep.subr.mxu0 0.0
    %1808 = vmatpush2.xpose.msra.mxu0 0.0
    %1809 = vmatprep.subr.mxu0 0.0
    %1810 = vmatpush2.xpose.msra.mxu0 0.0
    %1811 = vmatprep.subr.mxu0 0.0
    %1812 = vmatpush2.xpose.msra.mxu0 0.0
    %1813 = vmatprep.subr.mxu0 0.0
    %1814 = vmatpush2.xpose.msra.mxu0 0.0
    %1815 = vmatprep.subr.mxu0 0.0
    %1816 = vmatpush2.xpose.msra.mxu0 0.0
    %1817 = vmatprep.subr.mxu0 0.0
    %1818 = vmatpush2.xpose.msra.mxu0 0.0
    %1819 = vmatprep.subr.mxu0 0.0
    %1820 = vmatpush2.xpose.msra.mxu0 0.0
    %1821 = vmatprep.subr.mxu0 0.0
    %1822 = vmatpush2.xpose.msra.mxu0 0.0
    %1823 = vmatprep.subr.mxu0 0.0
    %1824 = vmatpush2.xpose.msra.mxu0 0.0
    %1825 = vmatprep.subr.mxu0 0.0
    %1826 = vmatpush2.xpose.msra.mxu0 0.0
    %1827 = vmatprep.subr.mxu0 0.0
    %1828 = vmatpush2.xpose.msra.mxu0 0.0
    %1829 = vmatprep.subr.mxu0 0.0
    %1830 = vmatpush2.xpose.msra.mxu0 0.0
    %1831 = vmatprep.subr.mxu0 0.0
    %1832 = vmatpush2.xpose.msra.mxu0 0.0
    %1833 = vmatprep.subr.mxu0 0.0
    %1834 = vmatpush2.xpose.msra.mxu0 0.0
    %1835 = vmatprep.subr.mxu0 0.0
    %1836 = vmatpush2.xpose.msra.mxu0 0.0
    %1837 = vmatprep.mubr.f32.mxu0 0.0
    %1838 = vmatmul.mubr.f32.gmra.mxu0 %v1769
    %v1839 = vpop.f32.mrf.mxu0
    %v1840 = vadd.f32 %v1292, %v1839
    %v1841 = vpop.f32.mrf.mxu0
    %1842 = vdwg.mxu0
    %v1843 = vsel %vm397, %v1840, -inf
    %1844 = vmax.xlane.f32.xlu0 %v1843
    %v1845 = vpop.xlane.xlu0 %1844
    %v1846 = vsub.f32 %v1840, %v1845
    %v1847 = vmul.f32 %v1846, 1.442695
    %v1848 = vpow.pop %v1847
    %v1849 = vsel %vm397, %v1848, 0.0
    %1850 = vadd.xlane.f32.xlu0 %v1849
    %v1851 = vpop.xlane.xlu0 %1850
    %v1852 = vrcp.pop %v1851
    %v1853 = vmul.f32 %v1848, %v1852
    %1854 = vrot.lane.b32.xlu0 %v317, 64
    %v1855 = vpop.permute.xlu0 %1854
    %v1858 = vsel %vm397, %v1853, 0
    %1860 = vmatprep.subr.mxu0 0.0
    %1861 = vmatpush1.msra.mxu0 0.0
    %1862 = vmatprep.subr.mxu0 0.0
    %1863 = vmatpush1.msra.mxu0 0.0
    %1864 = vmatprep.subr.mxu0 0.0
    %1865 = vmatpush1.msra.mxu0 0.0
    %1866 = vmatprep.subr.mxu0 0.0
    %1867 = vmatpush1.msra.mxu0 0.0
    %1868 = vmatprep.subr.mxu0 0.0
    %1869 = vmatpush1.msra.mxu0 0.0
    %1870 = vmatprep.subr.mxu0 0.0
    %1871 = vmatpush1.msra.mxu0 0.0
    %1872 = vmatprep.subr.mxu0 0.0
    %1873 = vmatpush1.msra.mxu0 0.0
    %1874 = vmatprep.subr.mxu0 0.0
    %1875 = vmatpush1.msra.mxu0 0.0
    %1876 = vmatprep.subr.mxu0 0.0
    %1877 = vmatpush1.msra.mxu0 0.0
    %1878 = vmatprep.subr.mxu0 0.0
    %1879 = vmatpush1.msra.mxu0 0.0
    %1880 = vmatprep.subr.mxu0 0.0
    %1881 = vmatpush1.msra.mxu0 0.0
    %1882 = vmatprep.subr.mxu0 0.0
    %1883 = vmatpush1.msra.mxu0 0.0
    %1884 = vmatprep.subr.mxu0 0.0
    %1885 = vmatpush1.msra.mxu0 0.0
    %1886 = vmatprep.subr.mxu0 0.0
    %1887 = vmatpush1.msra.mxu0 0.0
    %1888 = vmatprep.subr.mxu0 0.0
    %1889 = vmatpush1.msra.mxu0 0.0
    %1890 = vmatprep.subr.mxu0 0.0
    %1891 = vmatpush1.msra.mxu0 %v1855
    %1892 = vmatprep.subr.mxu0 0.0
    %1893 = vmatpush2.msra.mxu0 0.0
    %1894 = vmatprep.subr.mxu0 0.0
    %1895 = vmatpush2.msra.mxu0 0.0
    %1896 = vmatprep.subr.mxu0 0.0
    %1897 = vmatpush2.msra.mxu0 0.0
    %1898 = vmatprep.subr.mxu0 0.0
    %1899 = vmatpush2.msra.mxu0 0.0
    %1900 = vmatprep.subr.mxu0 0.0
    %1901 = vmatpush2.msra.mxu0 0.0
    %1902 = vmatprep.subr.mxu0 0.0
    %1903 = vmatpush2.msra.mxu0 0.0
    %1904 = vmatprep.subr.mxu0 0.0
    %1905 = vmatpush2.msra.mxu0 0.0
    %1906 = vmatprep.subr.mxu0 0.0
    %1907 = vmatpush2.msra.mxu0 0.0
    %1908 = vmatprep.subr.mxu0 0.0
    %1909 = vmatpush2.msra.mxu0 0.0
    %1910 = vmatprep.subr.mxu0 0.0
    %1911 = vmatpush2.msra.mxu0 0.0
    %1912 = vmatprep.subr.mxu0 0.0
    %1913 = vmatpush2.msra.mxu0 0.0
    %1914 = vmatprep.subr.mxu0 0.0
    %1915 = vmatpush2.msra.mxu0 0.0
    %1916 = vmatprep.subr.mxu0 0.0
    %1917 = vmatpush2.msra.mxu0 0.0
    %1918 = vmatprep.subr.mxu0 0.0
    %1919 = vmatpush2.msra.mxu0 0.0
    %1920 = vmatprep.subr.mxu0 0.0
    %1921 = vmatpush2.msra.mxu0 0.0
    %1922 = vmatprep.subr.mxu0 0.0
    %1923 = vmatpush2.msra.mxu0 0.0
    %1924 = vmatprep.mubr.f32.mxu0 0.0
    %1925 = vmatmul.mubr.f32.gmra.mxu0 %v1858
    %v1926 = vpop.f32.mrf.mxu0
    %v1927 = vadd.f32 0.0, %v1926
    %v1928 = vpop.f32.mrf.mxu0
    %1929 = vdwg.mxu0
    %v1931 = vsel %vm161, %v1927, 0
    %1933 = vmatprep.subr.mxu0 0.0
    %1934 = vmatpush1.msra.mxu0 0.0
    %1935 = vmatprep.subr.mxu0 0.0
    %1936 = vmatpush1.msra.mxu0 0.0
    %1937 = vmatprep.subr.mxu0 0.0
    %1938 = vmatpush1.msra.mxu0 0.0
    %1939 = vmatprep.subr.mxu0 0.0
    %1940 = vmatpush1.msra.mxu0 0.0
    %1941 = vmatprep.subr.mxu0 0.0
    %1942 = vmatpush1.msra.mxu0 0.0
    %1943 = vmatprep.subr.mxu0 0.0
    %1944 = vmatpush1.msra.mxu0 0.0
    %1945 = vmatprep.subr.mxu0 0.0
    %1946 = vmatpush1.msra.mxu0 0.0
    %1947 = vmatprep.subr.mxu0 0.0
    %1948 = vmatpush1.msra.mxu0 0.0
    %1949 = vmatprep.subr.mxu0 0.0
    %1950 = vmatpush1.msra.mxu0 0.0
    %1951 = vmatprep.subr.mxu0 0.0
    %1952 = vmatpush1.msra.mxu0 0.0
    %1953 = vmatprep.subr.mxu0 0.0
    %1954 = vmatpush1.msra.mxu0 0.0
    %1955 = vmatprep.subr.mxu0 0.0
    %1956 = vmatpush1.msra.mxu0 0.0
    %1957 = vmatprep.subr.mxu0 0.0
    %1958 = vmatpush1.msra.mxu0 %v972
    %1959 = vmatprep.subr.mxu0 0.0
    %1960 = vmatpush1.msra.mxu0 %v971
    %1961 = vmatprep.subr.mxu0 0.0
    %1962 = vmatpush1.msra.mxu0 %v970
    %1963 = vmatprep.subr.mxu0 0.0
    %1964 = vmatpush1.msra.mxu0 %v969
    %1965 = vmatprep.subr.mxu0 0.0
    %1966 = vmatpush2.msra.mxu0 0.0
    %1967 = vmatprep.subr.mxu0 0.0
    %1968 = vmatpush2.msra.mxu0 0.0
    %1969 = vmatprep.subr.mxu0 0.0
    %1970 = vmatpush2.msra.mxu0 0.0
    %1971 = vmatprep.subr.mxu0 0.0
    %1972 = vmatpush2.msra.mxu0 0.0
    %1973 = vmatprep.subr.mxu0 0.0
    %1974 = vmatpush2.msra.mxu0 0.0
    %1975 = vmatprep.subr.mxu0 0.0
    %1976 = vmatpush2.msra.mxu0 0.0
    %1977 = vmatprep.subr.mxu0 0.0
    %1978 = vmatpush2.msra.mxu0 0.0
    %1979 = vmatprep.subr.mxu0 0.0
    %1980 = vmatpush2.msra.mxu0 0.0
    %1981 = vmatprep.subr.mxu0 0.0
    %1982 = vmatpush2.msra.mxu0 0.0
    %1983 = vmatprep.subr.mxu0 0.0
    %1984 = vmatpush2.msra.mxu0 0.0
    %1985 = vmatprep.subr.mxu0 0.0
    %1986 = vmatpush2.msra.mxu0 0.0
    %1987 = vmatprep.subr.mxu0 0.0
    %1988 = vmatpush2.msra.mxu0 0.0
    %1989 = vmatprep.subr.mxu0 0.0
    %1990 = vmatpush2.msra.mxu0 0.0
    %1991 = vmatprep.subr.mxu0 0.0
    %1992 = vmatpush2.msra.mxu0 0.0
    %1993 = vmatprep.subr.mxu0 0.0
    %1994 = vmatpush2.msra.mxu0 0.0
    %1995 = vmatprep.subr.mxu0 0.0
    %1996 = vmatpush2.msra.mxu0 0.0
    %1997 = vmatprep.mubr.f32.mxu0 0.0
    %1998 = vmatmul.mubr.f32.gmra.mxu0 %v1931
    %v1999 = vpop.f32.mrf.mxu0
    %v2000 = vadd.f32 0.0, %v1999
    %v2001 = vpop.f32.mrf.mxu0
    %2002 = vdwg.mxu0
    %v2003 = vadd.f32 %v1762, %v2000
    %2004 = vrot.lane.b32.xlu0 %v241, 32
    %v2005 = vpop.permute.xlu0 %2004
    %2006 = vrot.lane.b32.xlu0 %v243, 32
    %v2007 = vpop.permute.xlu0 %2006
    %v2008 = vsel %vm161, %v2005, 0
    %v2010 = vsel %vm161, %v2007, 0
    %2012 = vmatprep.subr.mxu0 0.0
    %2013 = vmatpush1.xpose.msra.mxu0 0.0
    %2014 = vmatprep.subr.mxu0 0.0
    %2015 = vmatpush1.xpose.msra.mxu0 0.0
    %2016 = vmatprep.subr.mxu0 0.0
    %2017 = vmatpush1.xpose.msra.mxu0 0.0
    %2018 = vmatprep.subr.mxu0 0.0
    %2019 = vmatpush1.xpose.msra.mxu0 0.0
    %2020 = vmatprep.subr.mxu0 0.0
    %2021 = vmatpush1.xpose.msra.mxu0 0.0
    %2022 = vmatprep.subr.mxu0 0.0
    %2023 = vmatpush1.xpose.msra.mxu0 0.0
    %2024 = vmatprep.subr.mxu0 0.0
    %2025 = vmatpush1.xpose.msra.mxu0 0.0
    %2026 = vmatprep.subr.mxu0 0.0
    %2027 = vmatpush1.xpose.msra.mxu0 0.0
    %2028 = vmatprep.subr.mxu0 0.0
    %2029 = vmatpush1.xpose.msra.mxu0 0.0
    %2030 = vmatprep.subr.mxu0 0.0
    %2031 = vmatpush1.xpose.msra.mxu0 0.0
    %2032 = vmatprep.subr.mxu0 0.0
    %2033 = vmatpush1.xpose.msra.mxu0 0.0
    %2034 = vmatprep.subr.mxu0 0.0
    %2035 = vmatpush1.xpose.msra.mxu0 0.0
    %2036 = vmatprep.subr.mxu0 0.0
    %2037 = vmatpush1.xpose.msra.mxu0 0.0
    %2038 = vmatprep.subr.mxu0 0.0
    %2039 = vmatpush1.xpose.msra.mxu0 0.0
    %2040 = vmatprep.subr.mxu0 0.0
    %2041 = vmatpush1.xpose.msra.mxu0 0.0
    %2042 = vmatprep.subr.mxu0 0.0
    %2043 = vmatpush1.xpose.msra.mxu0 %v2010
    %2044 = vmatprep.subr.mxu0 0.0
    %2045 = vmatpush2.xpose.msra.mxu0 0.0
    %2046 = vmatprep.subr.mxu0 0.0
    %2047 = vmatpush2.xpose.msra.mxu0 0.0
    %2048 = vmatprep.subr.mxu0 0.0
    %2049 = vmatpush2.xpose.msra.mxu0 0.0
    %2050 = vmatprep.subr.mxu0 0.0
    %2051 = vmatpush2.xpose.msra.mxu0 0.0
    %2052 = vmatprep.subr.mxu0 0.0
    %2053 = vmatpush2.xpose.msra.mxu0 0.0
    %2054 = vmatprep.subr.mxu0 0.0
    %2055 = vmatpush2.xpose.msra.mxu0 0.0
    %2056 = vmatprep.subr.mxu0 0.0
    %2057 = vmatpush2.xpose.msra.mxu0 0.0
    %2058 = vmatprep.subr.mxu0 0.0
    %2059 = vmatpush2.xpose.msra.mxu0 0.0
    %2060 = vmatprep.subr.mxu0 0.0
    %2061 = vmatpush2.xpose.msra.mxu0 0.0
    %2062 = vmatprep.subr.mxu0 0.0
    %2063 = vmatpush2.xpose.msra.mxu0 0.0
    %2064 = vmatprep.subr.mxu0 0.0
    %2065 = vmatpush2.xpose.msra.mxu0 0.0
    %2066 = vmatprep.subr.mxu0 0.0
    %2067 = vmatpush2.xpose.msra.mxu0 0.0
    %2068 = vmatprep.subr.mxu0 0.0
    %2069 = vmatpush2.xpose.msra.mxu0 0.0
    %2070 = vmatprep.subr.mxu0 0.0
    %2071 = vmatpush2.xpose.msra.mxu0 0.0
    %2072 = vmatprep.subr.mxu0 0.0
    %2073 = vmatpush2.xpose.msra.mxu0 0.0
    %2074 = vmatprep.subr.mxu0 0.0
    %2075 = vmatpush2.xpose.msra.mxu0 0.0
    %2076 = vmatprep.mubr.f32.mxu0 0.0
    %2077 = vmatmul.mubr.f32.gmra.mxu0 %v2008
    %v2078 = vpop.f32.mrf.mxu0
    %v2079 = vadd.f32 %v1292, %v2078
    %v2080 = vpop.f32.mrf.mxu0
    %2081 = vdwg.mxu0
    %v2082 = vsel %vm397, %v2079, -inf
    %2083 = vmax.xlane.f32.xlu0 %v2082
    %v2084 = vpop.xlane.xlu0 %2083
    %v2085 = vsub.f32 %v2079, %v2084
    %v2086 = vmul.f32 %v2085, 1.442695
    %v2087 = vpow.pop %v2086
    %v2088 = vsel %vm397, %v2087, 0.0
    %2089 = vadd.xlane.f32.xlu0 %v2088
    %v2090 = vpop.xlane.xlu0 %2089
    %v2091 = vrcp.pop %v2090
    %v2092 = vmul.f32 %v2087, %v2091
    %2093 = vrot.lane.b32.xlu0 %v317, 32
    %v2094 = vpop.permute.xlu0 %2093
    %v2097 = vsel %vm397, %v2092, 0
    %2099 = vmatprep.subr.mxu0 0.0
    %2100 = vmatpush1.msra.mxu0 0.0
    %2101 = vmatprep.subr.mxu0 0.0
    %2102 = vmatpush1.msra.mxu0 0.0
    %2103 = vmatprep.subr.mxu0 0.0
    %2104 = vmatpush1.msra.mxu0 0.0
    %2105 = vmatprep.subr.mxu0 0.0
    %2106 = vmatpush1.msra.mxu0 0.0
    %2107 = vmatprep.subr.mxu0 0.0
    %2108 = vmatpush1.msra.mxu0 0.0
    %2109 = vmatprep.subr.mxu0 0.0
    %2110 = vmatpush1.msra.mxu0 0.0
    %2111 = vmatprep.subr.mxu0 0.0
    %2112 = vmatpush1.msra.mxu0 0.0
    %2113 = vmatprep.subr.mxu0 0.0
    %2114 = vmatpush1.msra.mxu0 0.0
    %2115 = vmatprep.subr.mxu0 0.0
    %2116 = vmatpush1.msra.mxu0 0.0
    %2117 = vmatprep.subr.mxu0 0.0
    %2118 = vmatpush1.msra.mxu0 0.0
    %2119 = vmatprep.subr.mxu0 0.0
    %2120 = vmatpush1.msra.mxu0 0.0
    %2121 = vmatprep.subr.mxu0 0.0
    %2122 = vmatpush1.msra.mxu0 0.0
    %2123 = vmatprep.subr.mxu0 0.0
    %2124 = vmatpush1.msra.mxu0 0.0
    %2125 = vmatprep.subr.mxu0 0.0
    %2126 = vmatpush1.msra.mxu0 0.0
    %2127 = vmatprep.subr.mxu0 0.0
    %2128 = vmatpush1.msra.mxu0 0.0
    %2129 = vmatprep.subr.mxu0 0.0
    %2130 = vmatpush1.msra.mxu0 %v2094
    %2131 = vmatprep.subr.mxu0 0.0
    %2132 = vmatpush2.msra.mxu0 0.0
    %2133 = vmatprep.subr.mxu0 0.0
    %2134 = vmatpush2.msra.mxu0 0.0
    %2135 = vmatprep.subr.mxu0 0.0
    %2136 = vmatpush2.msra.mxu0 0.0
    %2137 = vmatprep.subr.mxu0 0.0
    %2138 = vmatpush2.msra.mxu0 0.0
    %2139 = vmatprep.subr.mxu0 0.0
    %2140 = vmatpush2.msra.mxu0 0.0
    %2141 = vmatprep.subr.mxu0 0.0
    %2142 = vmatpush2.msra.mxu0 0.0
    %2143 = vmatprep.subr.mxu0 0.0
    %2144 = vmatpush2.msra.mxu0 0.0
    %2145 = vmatprep.subr.mxu0 0.0
    %2146 = vmatpush2.msra.mxu0 0.0
    %2147 = vmatprep.subr.mxu0 0.0
    %2148 = vmatpush2.msra.mxu0 0.0
    %2149 = vmatprep.subr.mxu0 0.0
    %2150 = vmatpush2.msra.mxu0 0.0
    %2151 = vmatprep.subr.mxu0 0.0
    %2152 = vmatpush2.msra.mxu0 0.0
    %2153 = vmatprep.subr.mxu0 0.0
    %2154 = vmatpush2.msra.mxu0 0.0
    %2155 = vmatprep.subr.mxu0 0.0
    %2156 = vmatpush2.msra.mxu0 0.0
    %2157 = vmatprep.subr.mxu0 0.0
    %2158 = vmatpush2.msra.mxu0 0.0
    %2159 = vmatprep.subr.mxu0 0.0
    %2160 = vmatpush2.msra.mxu0 0.0
    %2161 = vmatprep.subr.mxu0 0.0
    %2162 = vmatpush2.msra.mxu0 0.0
    %2163 = vmatprep.mubr.f32.mxu0 0.0
    %2164 = vmatmul.mubr.f32.gmra.mxu0 %v2097
    %v2165 = vpop.f32.mrf.mxu0
    %v2166 = vadd.f32 0.0, %v2165
    %v2167 = vpop.f32.mrf.mxu0
    %2168 = vdwg.mxu0
    %v2170 = vsel %vm161, %v2166, 0
    %2172 = vmatprep.subr.mxu0 0.0
    %2173 = vmatpush1.msra.mxu0 0.0
    %2174 = vmatprep.subr.mxu0 0.0
    %2175 = vmatpush1.msra.mxu0 0.0
    %2176 = vmatprep.subr.mxu0 0.0
    %2177 = vmatpush1.msra.mxu0 0.0
    %2178 = vmatprep.subr.mxu0 0.0
    %2179 = vmatpush1.msra.mxu0 0.0
    %2180 = vmatprep.subr.mxu0 0.0
    %2181 = vmatpush1.msra.mxu0 0.0
    %2182 = vmatprep.subr.mxu0 0.0
    %2183 = vmatpush1.msra.mxu0 0.0
    %2184 = vmatprep.subr.mxu0 0.0
    %2185 = vmatpush1.msra.mxu0 0.0
    %2186 = vmatprep.subr.mxu0 0.0
    %2187 = vmatpush1.msra.mxu0 0.0
    %2188 = vmatprep.subr.mxu0 0.0
    %2189 = vmatpush1.msra.mxu0 0.0
    %2190 = vmatprep.subr.mxu0 0.0
    %2191 = vmatpush1.msra.mxu0 0.0
    %2192 = vmatprep.subr.mxu0 0.0
    %2193 = vmatpush1.msra.mxu0 0.0
    %2194 = vmatprep.subr.mxu0 0.0
    %2195 = vmatpush1.msra.mxu0 0.0
    %2196 = vmatprep.subr.mxu0 0.0
    %2197 = vmatpush1.msra.mxu0 %v1216
    %2198 = vmatprep.subr.mxu0 0.0
    %2199 = vmatpush1.msra.mxu0 %v1215
    %2200 = vmatprep.subr.mxu0 0.0
    %2201 = vmatpush1.msra.mxu0 %v1214
    %2202 = vmatprep.subr.mxu0 0.0
    %2203 = vmatpush1.msra.mxu0 %v1213
    %2204 = vmatprep.subr.mxu0 0.0
    %2205 = vmatpush2.msra.mxu0 0.0
    %2206 = vmatprep.subr.mxu0 0.0
    %2207 = vmatpush2.msra.mxu0 0.0
    %2208 = vmatprep.subr.mxu0 0.0
    %2209 = vmatpush2.msra.mxu0 0.0
    %2210 = vmatprep.subr.mxu0 0.0
    %2211 = vmatpush2.msra.mxu0 0.0
    %2212 = vmatprep.subr.mxu0 0.0
    %2213 = vmatpush2.msra.mxu0 0.0
    %2214 = vmatprep.subr.mxu0 0.0
    %2215 = vmatpush2.msra.mxu0 0.0
    %2216 = vmatprep.subr.mxu0 0.0
    %2217 = vmatpush2.msra.mxu0 0.0
    %2218 = vmatprep.subr.mxu0 0.0
    %2219 = vmatpush2.msra.mxu0 0.0
    %2220 = vmatprep.subr.mxu0 0.0
    %2221 = vmatpush2.msra.mxu0 0.0
    %2222 = vmatprep.subr.mxu0 0.0
    %2223 = vmatpush2.msra.mxu0 0.0
    %2224 = vmatprep.subr.mxu0 0.0
    %2225 = vmatpush2.msra.mxu0 0.0
    %2226 = vmatprep.subr.mxu0 0.0
    %2227 = vmatpush2.msra.mxu0 0.0
    %2228 = vmatprep.subr.mxu0 0.0
    %2229 = vmatpush2.msra.mxu0 0.0
    %2230 = vmatprep.subr.mxu0 0.0
    %2231 = vmatpush2.msra.mxu0 0.0
    %2232 = vmatprep.subr.mxu0 0.0
    %2233 = vmatpush2.msra.mxu0 0.0
    %2234 = vmatprep.subr.mxu0 0.0
    %2235 = vmatpush2.msra.mxu0 0.0
    %2236 = vmatprep.mubr.f32.mxu0 0.0
    %2237 = vmatmul.mubr.f32.gmra.mxu0 %v2170
    %v2238 = vpop.f32.mrf.mxu0
    %v2239 = vadd.f32 0.0, %v2238
    %v2240 = vpop.f32.mrf.mxu0
    %2241 = vdwg.mxu0
    %v2242 = vadd.f32 %v2003, %v2239
    %v2243 = vld [vmem:[%s5] sm:$0x1]
    %v2245 = vlaneseq
    %v2246 = vshrl.u32 %v2245, 7
    %v2247 = vsub.s32 0, %v2246
    %v2248 = vrot.slane %v2243, %v2247
    %v2250 = vadd.f32 %v1290, %v2248
    %v2251 = vadd.f32 %v2242, %v2248
    %v2252 = vld [vmem:[%s6] sm:$0x1]
    %v2253 = vld [vmem:[%s7] sm:$0x1]
    %v2254 = vsel %vm161, %v2250, 0.0
    %2255 = vadd.xlane.f32.xlu0 %v2254
    %v2256 = vpop.xlane.xlu0 %2255
    %v2257 = vsel %vm161, %v2251, 0.0
    %2258 = vadd.xlane.f32.xlu0 %v2257
    %v2259 = vpop.xlane.xlu0 %2258
    %v2260 = vrcp.pop 32.0
    %v2261 = vmul.f32 %v2256, %v2260
    %v2262 = vmul.f32 %v2259, %v2260
    %v2263 = vsub.f32 %v2250, %v2261
    %v2264 = vsub.f32 %v2251, %v2262
    %v2265 = vmul.f32 %v2263, %v2263
    %v2266 = vmul.f32 %v2264, %v2264
    %v2267 = vsel %vm161, %v2265, 0.0
    %2268 = vadd.xlane.f32.xlu0 %v2267
    %v2269 = vpop.xlane.xlu0 %2268
    %v2270 = vsel %vm161, %v2266, 0.0
    %2271 = vadd.xlane.f32.xlu0 %v2270
    %v2272 = vpop.xlane.xlu0 %2271
    %v2273 = vmul.f32 %v2269, %v2260
    %v2274 = vmul.f32 %v2272, %v2260
    %v2275 = vadd.f32 %v2273, 1e-05
    %v2276 = vadd.f32 %v2274, 1e-05
    %v2277 = vrsqrt.pop %v2275
    %v2278 = vrsqrt.pop %v2276
    %v2279 = vmul.f32 %v2263, %v2277
    %v2280 = vmul.f32 %v2264, %v2278
    %v2282 = vlaneseq
    %v2283 = vshrl.u32 %v2282, 7
    %v2284 = vsub.s32 0, %v2283
    %v2285 = vrot.slane %v2252, %v2284
    %v2287 = vmul.f32 %v2279, %v2285
    %v2288 = vmul.f32 %v2280, %v2285
    %v2290 = vlaneseq
    %v2291 = vshrl.u32 %v2290, 7
    %v2292 = vsub.s32 0, %v2291
    %v2293 = vrot.slane %v2253, %v2292
    %v2295 = vadd.f32 %v2287, %v2293
    %v2296 = vadd.f32 %v2288, %v2293
    %v2297 = vld [vmem:[#allocation10] sm:$0xff]
    %v2298 = vld [vmem:[#allocation10 + $0x8] sm:$0xff]
    %v2299 = vld [vmem:[#allocation10 + $0x10] sm:$0xff]
    %v2300 = vld [vmem:[#allocation10 + $0x18] sm:$0xff]
    %v2301 = vld [vmem:[%s9] sm:$0x1]
    %v2303 = vlaneseq
    %v2304 = vshrl.u32 %v2303, 7
    %v2305 = vsub.s32 0, %v2304
    %v2306 = vrot.slane %v2301, %v2305
    %v2309 = vsel %vm161, %v2295, 0
    %v2312 = vsel %vm161, %v2296, 0
    %2314 = vmatprep.subr.mxu0 0.0
    %2315 = vmatpush1.msra.mxu0 0.0
    %2316 = vmatprep.subr.mxu0 0.0
    %2317 = vmatpush1.msra.mxu0 0.0
    %2318 = vmatprep.subr.mxu0 0.0
    %2319 = vmatpush1.msra.mxu0 0.0
    %2320 = vmatprep.subr.mxu0 0.0
    %2321 = vmatpush1.msra.mxu0 0.0
    %2322 = vmatprep.subr.mxu0 0.0
    %2323 = vmatpush1.msra.mxu0 0.0
    %2324 = vmatprep.subr.mxu0 0.0
    %2325 = vmatpush1.msra.mxu0 0.0
    %2326 = vmatprep.subr.mxu0 0.0
    %2327 = vmatpush1.msra.mxu0 0.0
    %2328 = vmatprep.subr.mxu0 0.0
    %2329 = vmatpush1.msra.mxu0 0.0
    %2330 = vmatprep.subr.mxu0 0.0
    %2331 = vmatpush1.msra.mxu0 0.0
    %2332 = vmatprep.subr.mxu0 0.0
    %2333 = vmatpush1.msra.mxu0 0.0
    %2334 = vmatprep.subr.mxu0 0.0
    %2335 = vmatpush1.msra.mxu0 0.0
    %2336 = vmatprep.subr.mxu0 0.0
    %2337 = vmatpush1.msra.mxu0 0.0
    %2338 = vmatprep.subr.mxu0 0.0
    %2339 = vmatpush1.msra.mxu0 %v2300
    %2340 = vmatprep.subr.mxu0 0.0
    %2341 = vmatpush1.msra.mxu0 %v2299
    %2342 = vmatprep.subr.mxu0 0.0
    %2343 = vmatpush1.msra.mxu0 %v2298
    %2344 = vmatprep.subr.mxu0 0.0
    %2345 = vmatpush1.msra.mxu0 %v2297
    %2346 = vmatprep.subr.mxu0 0.0
    %2347 = vmatpush2.msra.mxu0 0.0
    %2348 = vmatprep.subr.mxu0 0.0
    %2349 = vmatpush2.msra.mxu0 0.0
    %2350 = vmatprep.subr.mxu0 0.0
    %2351 = vmatpush2.msra.mxu0 0.0
    %2352 = vmatprep.subr.mxu0 0.0
    %2353 = vmatpush2.msra.mxu0 0.0
    %2354 = vmatprep.subr.mxu0 0.0
    %2355 = vmatpush2.msra.mxu0 0.0
    %2356 = vmatprep.subr.mxu0 0.0
    %2357 = vmatpush2.msra.mxu0 0.0
    %2358 = vmatprep.subr.mxu0 0.0
    %2359 = vmatpush2.msra.mxu0 0.0
    %2360 = vmatprep.subr.mxu0 0.0
    %2361 = vmatpush2.msra.mxu0 0.0
    %2362 = vmatprep.subr.mxu0 0.0
    %2363 = vmatpush2.msra.mxu0 0.0
    %2364 = vmatprep.subr.mxu0 0.0
    %2365 = vmatpush2.msra.mxu0 0.0
    %2366 = vmatprep.subr.mxu0 0.0
    %2367 = vmatpush2.msra.mxu0 0.0
    %2368 = vmatprep.subr.mxu0 0.0
    %2369 = vmatpush2.msra.mxu0 0.0
    %2370 = vmatprep.subr.mxu0 0.0
    %2371 = vmatpush2.msra.mxu0 0.0
    %2372 = vmatprep.subr.mxu0 0.0
    %2373 = vmatpush2.msra.mxu0 0.0
    %2374 = vmatprep.subr.mxu0 0.0
    %2375 = vmatpush2.msra.mxu0 0.0
    %2376 = vmatprep.subr.mxu0 0.0
    %2377 = vmatpush2.msra.mxu0 0.0
    %2378 = vmatprep.mubr.f32.mxu0 0.0
    %2379 = vmatmul.mubr.f32.gmra.mxu0 %v2309
    %v2380 = vpop.f32.mrf.mxu0
    %v2381 = vadd.f32 %v2306, %v2380
    %v2382 = vpop.f32.mrf.mxu0
    %2383 = vmatprep.mubr.f32.mxu0 0.0
    %2384 = vmatmul.mubr.f32.gmra.mxu0 %v2312
    %v2385 = vpop.f32.mrf.mxu0
    %v2386 = vadd.f32 %v2306, %v2385
    %v2387 = vpop.f32.mrf.mxu0
    %2388 = vdwg.mxu0
    %v2389 = vmul.f32 %v2381, 0.5
    %v2390 = vmul.f32 %v2386, 0.5
    %v2391 = vmul.f32 %v2381, 0.70710677
    %v2392 = vmul.f32 %v2386, 0.70710677
    %vm2393 = vcmp.ge.f32.partialorder %v2391, 0.0
    %vm2394 = vcmp.ge.f32.partialorder %v2392, 0.0
    %v2395 = vsel %vm2393, 1.0, -1.0
    %v2396 = vsel %vm2394, 1.0, -1.0
    %v2397 = vand.u32 2147483647, %v2391
    %v2398 = vand.u32 2147483647, %v2392
    %v2399 = vmul.f32 %v2397, 0.3275911
    %v2400 = vmul.f32 %v2398, 0.3275911
    %v2401 = vadd.f32 %v2399, 1.0
    %v2402 = vadd.f32 %v2400, 1.0
    %v2403 = vrcp.pop %v2401
    %v2404 = vmul.f32 1.0, %v2403
    %v2405 = vrcp.pop %v2402
    %v2406 = vmul.f32 1.0, %v2405
    %v2407 = vmul.f32 %v2404, 1.0614054
    %v2408 = vmul.f32 %v2406, 1.0614054
    %v2409 = vadd.f32 %v2407, -1.4531521
    %v2410 = vadd.f32 %v2408, -1.4531521
    %v2411 = vmul.f32 %v2404, %v2409
    %v2412 = vmul.f32 %v2406, %v2410
    %v2413 = vadd.f32 %v2411, 1.4214138
    %v2414 = vadd.f32 %v2412, 1.4214138
    %v2415 = vmul.f32 %v2404, %v2413
    %v2416 = vmul.f32 %v2406, %v2414
    %v2417 = vadd.f32 %v2415, -0.28449672
    %v2418 = vadd.f32 %v2416, -0.28449672
    %v2419 = vmul.f32 %v2404, %v2417
    %v2420 = vmul.f32 %v2406, %v2418
    %v2421 = vadd.f32 %v2419, 0.2548296
    %v2422 = vadd.f32 %v2420, 0.2548296
    %v2423 = vmul.f32 %v2404, %v2421
    %v2424 = vmul.f32 %v2406, %v2422
    %v2425 = vsub.f32 0.0, %v2397
    %v2426 = vsub.f32 0.0, %v2398
    %v2427 = vmul.f32 %v2425, %v2397
    %v2428 = vmul.f32 %v2426, %v2398
    %v2429 = vmul.f32 %v2427, 1.442695
    %v2430 = vpow.pop %v2429
    %v2431 = vmul.f32 %v2428, 1.442695
    %v2432 = vpow.pop %v2431
    %v2433 = vmul.f32 %v2423, %v2430
    %v2434 = vmul.f32 %v2424, %v2432
    %v2435 = vsub.f32 1.0, %v2433
    %v2436 = vsub.f32 1.0, %v2434
    %v2437 = vmul.f32 %v2395, %v2435
    %v2438 = vmul.f32 %v2396, %v2436
    %v2439 = vadd.f32 %v2437, 1.0
    %v2440 = vadd.f32 %v2438, 1.0
    %v2441 = vmul.f32 %v2389, %v2439
    %v2442 = vmul.f32 %v2390, %v2440
    %v2443 = vld [vmem:[#allocation11] sm:$0xff]
    %v2444 = vld [vmem:[#allocation11 + $0x8] sm:$0xff]
    %v2445 = vld [vmem:[#allocation11 + $0x10] sm:$0xff]
    %v2446 = vld [vmem:[#allocation11 + $0x18] sm:$0xff]
    %v2447 = vld [vmem:[%s11] sm:$0x1]
    %v2449 = vlaneseq
    %v2450 = vshrl.u32 %v2449, 7
    %v2451 = vsub.s32 0, %v2450
    %v2452 = vrot.slane %v2447, %v2451
    %v2455 = vsel %vm161, %v2441, 0
    %v2458 = vsel %vm161, %v2442, 0
    %2460 = vmatprep.subr.mxu0 0.0
    %2461 = vmatpush1.msra.mxu0 0.0
    %2462 = vmatprep.subr.mxu0 0.0
    %2463 = vmatpush1.msra.mxu0 0.0
    %2464 = vmatprep.subr.mxu0 0.0
    %2465 = vmatpush1.msra.mxu0 0.0
    %2466 = vmatprep.subr.mxu0 0.0
    %2467 = vmatpush1.msra.mxu0 0.0
    %2468 = vmatprep.subr.mxu0 0.0
    %2469 = vmatpush1.msra.mxu0 0.0
    %2470 = vmatprep.subr.mxu0 0.0
    %2471 = vmatpush1.msra.mxu0 0.0
    %2472 = vmatprep.subr.mxu0 0.0
    %2473 = vmatpush1.msra.mxu0 0.0
    %2474 = vmatprep.subr.mxu0 0.0
    %2475 = vmatpush1.msra.mxu0 0.0
    %2476 = vmatprep.subr.mxu0 0.0
    %2477 = vmatpush1.msra.mxu0 0.0
    %2478 = vmatprep.subr.mxu0 0.0
    %2479 = vmatpush1.msra.mxu0 0.0
    %2480 = vmatprep.subr.mxu0 0.0
    %2481 = vmatpush1.msra.mxu0 0.0
    %2482 = vmatprep.subr.mxu0 0.0
    %2483 = vmatpush1.msra.mxu0 0.0
    %2484 = vmatprep.subr.mxu0 0.0
    %2485 = vmatpush1.msra.mxu0 %v2446
    %2486 = vmatprep.subr.mxu0 0.0
    %2487 = vmatpush1.msra.mxu0 %v2445
    %2488 = vmatprep.subr.mxu0 0.0
    %2489 = vmatpush1.msra.mxu0 %v2444
    %2490 = vmatprep.subr.mxu0 0.0
    %2491 = vmatpush1.msra.mxu0 %v2443
    %2492 = vmatprep.subr.mxu0 0.0
    %2493 = vmatpush2.msra.mxu0 0.0
    %2494 = vmatprep.subr.mxu0 0.0
    %2495 = vmatpush2.msra.mxu0 0.0
    %2496 = vmatprep.subr.mxu0 0.0
    %2497 = vmatpush2.msra.mxu0 0.0
    %2498 = vmatprep.subr.mxu0 0.0
    %2499 = vmatpush2.msra.mxu0 0.0
    %2500 = vmatprep.subr.mxu0 0.0
    %2501 = vmatpush2.msra.mxu0 0.0
    %2502 = vmatprep.subr.mxu0 0.0
    %2503 = vmatpush2.msra.mxu0 0.0
    %2504 = vmatprep.subr.mxu0 0.0
    %2505 = vmatpush2.msra.mxu0 0.0
    %2506 = vmatprep.subr.mxu0 0.0
    %2507 = vmatpush2.msra.mxu0 0.0
    %2508 = vmatprep.subr.mxu0 0.0
    %2509 = vmatpush2.msra.mxu0 0.0
    %2510 = vmatprep.subr.mxu0 0.0
    %2511 = vmatpush2.msra.mxu0 0.0
    %2512 = vmatprep.subr.mxu0 0.0
    %2513 = vmatpush2.msra.mxu0 0.0
    %2514 = vmatprep.subr.mxu0 0.0
    %2515 = vmatpush2.msra.mxu0 0.0
    %2516 = vmatprep.subr.mxu0 0.0
    %2517 = vmatpush2.msra.mxu0 0.0
    %2518 = vmatprep.subr.mxu0 0.0
    %2519 = vmatpush2.msra.mxu0 0.0
    %2520 = vmatprep.subr.mxu0 0.0
    %2521 = vmatpush2.msra.mxu0 0.0
    %2522 = vmatprep.subr.mxu0 0.0
    %2523 = vmatpush2.msra.mxu0 0.0
    %2524 = vmatprep.mubr.f32.mxu0 0.0
    %2525 = vmatmul.mubr.f32.gmra.mxu0 %v2455
    %v2526 = vpop.f32.mrf.mxu0
    %v2527 = vadd.f32 %v2452, %v2526
    %v2528 = vpop.f32.mrf.mxu0
    %2529 = vmatprep.mubr.f32.mxu0 0.0
    %2530 = vmatmul.mubr.f32.gmra.mxu0 %v2458
    %v2531 = vpop.f32.mrf.mxu0
    %v2532 = vadd.f32 %v2452, %v2531
    %v2533 = vpop.f32.mrf.mxu0
    %2534 = vdwg.mxu0
    %v2535 = vld [vmem:[%s12] sm:$0x1]
    %v2536 = vld [vmem:[%s13] sm:$0x1]
    %v2537 = vsel %vm161, %v2527, 0.0
    %2538 = vadd.xlane.f32.xlu0 %v2537
    %v2539 = vpop.xlane.xlu0 %2538
    %v2540 = vsel %vm161, %v2532, 0.0
    %2541 = vadd.xlane.f32.xlu0 %v2540
    %v2542 = vpop.xlane.xlu0 %2541
    %v2543 = vmul.f32 %v2539, %v2260
    %v2544 = vmul.f32 %v2542, %v2260
    %v2545 = vsub.f32 %v2527, %v2543
    %v2546 = vsub.f32 %v2532, %v2544
    %v2547 = vmul.f32 %v2545, %v2545
    %v2548 = vmul.f32 %v2546, %v2546
    %v2549 = vsel %vm161, %v2547, 0.0
    %2550 = vadd.xlane.f32.xlu0 %v2549
    %v2551 = vpop.xlane.xlu0 %2550
    %v2552 = vsel %vm161, %v2548, 0.0
    %2553 = vadd.xlane.f32.xlu0 %v2552
    %v2554 = vpop.xlane.xlu0 %2553
    %v2555 = vmul.f32 %v2551, %v2260
    %v2556 = vmul.f32 %v2554, %v2260
    %v2557 = vadd.f32 %v2555, 1e-05
    %v2558 = vadd.f32 %v2556, 1e-05
    %v2559 = vrsqrt.pop %v2557
    %v2560 = vrsqrt.pop %v2558
    %v2561 = vmul.f32 %v2545, %v2559
    %v2562 = vmul.f32 %v2546, %v2560
    %v2564 = vlaneseq
    %v2565 = vshrl.u32 %v2564, 7
    %v2566 = vsub.s32 0, %v2565
    %v2567 = vrot.slane %v2535, %v2566
    %v2569 = vmul.f32 %v2561, %v2567
    %v2570 = vmul.f32 %v2562, %v2567
    %v2572 = vlaneseq
    %v2573 = vshrl.u32 %v2572, 7
    %v2574 = vsub.s32 0, %v2573
    %v2575 = vrot.slane %v2536, %v2574
    %v2577 = vadd.f32 %v2569, %v2575
    %v2578 = vadd.f32 %v2570, %v2575
    %2579 = vst.msk [vmem:[#allocation13] sm:$0xff] %vm161, %v2577
    %2580 = vst.msk [vmem:[#allocation13 + $0x8] sm:$0xff] %vm161, %v2578
    // Predicated region
    $region82: #{tpu_custom_call.1} parent=1 // pred_check
      _
    $region83: #{tpu_custom_call.1} parent=1 // pred_check_branch
      %2582 = sbr.rel (0) target = $region85
    $region84: #{tpu_custom_call.1} parent=1 // pred_region
      %s2584 = ssub.s32 256, 256
      %2585 = vsyncadd [#allocation4], %s2584
      %s2586 = sshll.u32 [#allocation13], 4
      %s2587 = int_to_ptr.vmem [resolvable:$true] %s2586
      %2592 = dma.vmem_to_hbm [thread:$0]  %s2587, 256, %s14, [#allocation4], 128, 128, 8
    $region85: #{tpu_custom_call.1} parent=1 // pred_fallthru
      _
    // Predicated region
    $region86: #{tpu_custom_call.1} parent=1 // pred_check
      _
    $region87: #{tpu_custom_call.1} parent=1 // pred_check_branch
      %2594 = sbr.rel (0) target = $region89
    $region88: #{tpu_custom_call.1} parent=1 // pred_region
      %2595 = dma.done [#allocation4], 256
    $region89: #{tpu_custom_call.1} parent=1 // pred_fallthru
      _
    %2596 = vsyncpa [#allocation3], 1
    %2597 = vsyncpa [#allocation6], 1
    %2598 = vsyncpa [#allocation9], 1
    %2599 = vsyncpa [#allocation12], 1
    %2600 = vsyncpa [#allocation4], 1

</llo_original>
